<compile_context>
chip_gen: v5e
topology: v5e:2x2
jax: 0.10.0
libtpu: 0.0.40
codegen_flags: <defaults>
</compile_context>

<pallas_src>
import functools

import jax
import jax.numpy as jnp
from jax.experimental import pallas as pl
from jax.experimental.pallas import tpu as pltpu

LN_EPS = 1e-5


def _round_up(n, m):
    return ((n + m - 1) // m) * m


def _linear_ln_relu(h, w, b, g, beta):
    # Linear: bf16 operands on the MXU, f32 accumulation.
    y = jnp.dot(h.astype(jnp.bfloat16), w,
                preferred_element_type=jnp.float32) + b
    # LayerNorm over the last dim (two-pass, biased variance -- PyTorch).
    mu = jnp.mean(y, axis=-1, keepdims=True)
    yc = y - mu
    var = jnp.mean(yc * yc, axis=-1, keepdims=True)
    y = yc * jax.lax.rsqrt(var + LN_EPS) * g + beta
    # ReLU (Dropout == identity at inference).
    return jnp.maximum(y, 0.0)


def mlp_kernel(x_ref, *refs):
    # refs = 4 blocks of (w, b, gamma, beta), then (w_out_row, b_out), then o_ref.
    o_ref = refs[-1]
    params = refs[:-1]

    h = x_ref[...].astype(jnp.float32)
    for i in range(4):
        w, b, g, beta = params[4 * i: 4 * i + 4]
        h = _linear_ln_relu(h, w[...], b[...], g[...], beta[...])

    # Final Linear to a single output: VPU multiply + lane reduction instead
    # of an N=1 MXU matmul (w_out is stored as a [1, 64] f32 row).
    w_out, b_out = params[16], params[17]
    z = jnp.sum(h * w_out[...], axis=-1, keepdims=True) + b_out[...]
    o_ref[...] = jax.nn.sigmoid(z).astype(o_ref.dtype)


def make_params(key, input_size, hidden_size=512, num_layers=4):
    """Deterministic PyTorch-style init. Returns flat list of kernel args.

    Hidden-layer weights are stored pre-transposed ([in, out]) and pre-cast to
    bf16 (MXU operand dtype); biases / LayerNorm / final-layer params stay f32.
    """
    sizes = [input_size] + [hidden_size // (2 ** i) for i in range(num_layers)]
    params = []
    for i in range(num_layers):
        fan_in, fan_out = sizes[i], sizes[i + 1]
        key, k1, k2 = jax.random.split(key, 3)
        bound = 1.0 / (fan_in ** 0.5)
        w = jax.random.uniform(k1, (fan_in, fan_out), jnp.float32, -bound, bound)
        b = jax.random.uniform(k2, (1, fan_out), jnp.float32, -bound, bound)
        params += [w.astype(jnp.bfloat16), b,
                   jnp.ones((1, fan_out), jnp.float32),
                   jnp.zeros((1, fan_out), jnp.float32)]
    fan_in = sizes[-1]
    key, k1, k2 = jax.random.split(key, 3)
    bound = 1.0 / (fan_in ** 0.5)
    # Final weight kept in PyTorch layout [out=1, in] == a [1, fan_in] f32 row.
    w_out = jax.random.uniform(k1, (1, fan_in), jnp.float32, -bound, bound)
    b_out = jax.random.uniform(k2, (1, 1), jnp.float32, -bound, bound)
    params += [w_out, b_out]
    return params


@functools.partial(jax.jit, static_argnames=("tb",))
def mlp_forward(x, params, *, tb=512):
    assert tb % 8 == 0, "batch tile must be a multiple of 8 sublanes"
    B, F = x.shape

    # Effective tile: multiple of 8 sublanes, no larger than tb, and small
    # enough that the batch grid has ~4+ steps (megacore sharding on v7x plus
    # DMA/compute overlap for small batches).  Pad batch to a tile multiple.
    tb_eff = max(8, min(tb, _round_up(pl.cdiv(B, 4), 8)))
    Bp = _round_up(B, tb_eff)
    if Bp != B:
        x = jnp.pad(x, ((0, Bp - B), (0, 0)))

    # x tiled over batch; all parameters (~0.5 MiB, weights in bf16) passed as
    # full resident blocks (constant index_map => DMA'd once, stay in VMEM).
    in_specs = [pl.BlockSpec((tb_eff, F), lambda i: (i, 0))]
    for p in params:
        in_specs.append(pl.BlockSpec(p.shape, lambda i, nd=p.ndim: (0,) * nd))
    out_spec = pl.BlockSpec((tb_eff, 1), lambda i: (i, 0))

    # Advisory cost estimate so XLA schedules surrounding ops sensibly.
    flops = 0
    for i in range(4):
        w = params[4 * i]
        flops += 2 * Bp * w.shape[0] * w.shape[1]
    flops += 2 * Bp * params[16].shape[1]
    bytes_accessed = (x.size * x.dtype.itemsize + Bp * 4
                      + sum(p.size * p.dtype.itemsize for p in params))
    cost = pl.CostEstimate(flops=flops, transcendentals=5 * Bp,
                           bytes_accessed=bytes_accessed)

    out = pl.pallas_call(
        mlp_kernel,
        out_shape=jax.ShapeDtypeStruct((Bp, 1), x.dtype),
        grid_spec=pltpu.PrefetchScalarGridSpec(
            num_scalar_prefetch=0,
            grid=(Bp // tb_eff,),
            in_specs=in_specs,
            out_specs=out_spec,
        ),
        compiler_params=pltpu.CompilerParams(
            # Batch grid shards across TensorCores on v7x.
            dimension_semantics=("parallel",),
            # NOTE: at tb=512 the footprint is ~2-3 MiB, well inside every
            # generation's default scoped-VMEM limit.  If tb is pushed past
            # ~2048 on v5e, set vmem_limit_bytes explicitly here.
        ),
        cost_estimate=cost,
    )(x, *params)
    return out[:B]


def mlp_reference(x, params):
    """Plain-JAX f32 reference (PyTorch semantics, using the stored weights)."""
    h = x.astype(jnp.float32)
    for i in range(4):
        w, b, g, beta = params[4 * i: 4 * i + 4]
        y = h @ w.astype(jnp.float32) + b
        mu = jnp.mean(y, axis=-1, keepdims=True)
        var = jnp.mean((y - mu) ** 2, axis=-1, keepdims=True)
        y = (y - mu) / jnp.sqrt(var + LN_EPS) * g + beta
        h = jnp.maximum(y, 0.0)
    # params[16] is in PyTorch layout [1, in]
    z = h @ params[16].T + params[17]
    return jax.nn.sigmoid(z).astype(x.dtype)


if __name__ == "__main__":
    key = jax.random.PRNGKey(0)
    kx, kp = jax.random.split(key)

    # Small shapes consistent with the module; batch chosen to exercise the
    # adaptive-tile + pad-and-slice path (300 -> 4 tiles of 80 rows -> 300).
    batch, input_size = 300, 128
    x = jax.random.normal(kx, (batch, input_size), jnp.float32)
    params = make_params(kp, input_size, hidden_size=512, num_layers=4)

    out = mlp_forward(x, params)
    out = jax.block_until_ready(out)

    ref = mlp_reference(x, params)
    assert out.shape == (batch, 1), out.shape
    # Kernel uses bf16 matmul operands vs. the f32 reference path, so the
    # tolerance is loosened (sigmoid outputs typically agree to ~1e-3).
    err = float(jnp.max(jnp.abs(out - ref)))
    assert err < 2e-2, err
    print("KERNEL_OK")
</pallas_src>

<mosaic_0001>
module attributes {stable_mosaic.version = 11 : i64} {
  func.func @mlp_kernel(%arg0: i32, %arg1: memref<80x128xf32, #tpu.memory_space<vmem>>, %arg2: memref<128x512xbf16, #tpu.memory_space<vmem>>, %arg3: memref<1x512xf32, #tpu.memory_space<vmem>>, %arg4: memref<1x512xf32, #tpu.memory_space<vmem>>, %arg5: memref<1x512xf32, #tpu.memory_space<vmem>>, %arg6: memref<512x256xbf16, #tpu.memory_space<vmem>>, %arg7: memref<1x256xf32, #tpu.memory_space<vmem>>, %arg8: memref<1x256xf32, #tpu.memory_space<vmem>>, %arg9: memref<1x256xf32, #tpu.memory_space<vmem>>, %arg10: memref<256x128xbf16, #tpu.memory_space<vmem>>, %arg11: memref<1x128xf32, #tpu.memory_space<vmem>>, %arg12: memref<1x128xf32, #tpu.memory_space<vmem>>, %arg13: memref<1x128xf32, #tpu.memory_space<vmem>>, %arg14: memref<128x64xbf16, #tpu.memory_space<vmem>>, %arg15: memref<1x64xf32, #tpu.memory_space<vmem>>, %arg16: memref<1x64xf32, #tpu.memory_space<vmem>>, %arg17: memref<1x64xf32, #tpu.memory_space<vmem>>, %arg18: memref<1x64xf32, #tpu.memory_space<vmem>>, %arg19: memref<1x1xf32, #tpu.memory_space<vmem>>, %arg20: memref<80x1xf32, #tpu.memory_space<vmem>>) attributes {dimension_semantics = [#tpu.dimension_semantics<parallel>], iteration_bounds = array<i64: 4>, scalar_prefetch = 0 : i64, scratch_operands = 0 : i64, tpu.core_type = #tpu.core_type<tc>, window_params = [{transform_indices = @transform_0, window_bounds = array<i64: 80, 128>}, {pipeline_mode = #tpu.pipeline_mode<synchronous>, transform_indices = @transform_1, window_bounds = array<i64: 128, 512>}, {pipeline_mode = #tpu.pipeline_mode<synchronous>, transform_indices = @transform_2, window_bounds = array<i64: 1, 512>}, {pipeline_mode = #tpu.pipeline_mode<synchronous>, transform_indices = @transform_3, window_bounds = array<i64: 1, 512>}, {pipeline_mode = #tpu.pipeline_mode<synchronous>, transform_indices = @transform_4, window_bounds = array<i64: 1, 512>}, {pipeline_mode = #tpu.pipeline_mode<synchronous>, transform_indices = @transform_5, window_bounds = array<i64: 512, 256>}, {pipeline_mode = #tpu.pipeline_mode<synchronous>, transform_indices = @transform_6, window_bounds = array<i64: 1, 256>}, {pipeline_mode = #tpu.pipeline_mode<synchronous>, transform_indices = @transform_7, window_bounds = array<i64: 1, 256>}, {pipeline_mode = #tpu.pipeline_mode<synchronous>, transform_indices = @transform_8, window_bounds = array<i64: 1, 256>}, {pipeline_mode = #tpu.pipeline_mode<synchronous>, transform_indices = @transform_9, window_bounds = array<i64: 256, 128>}, {pipeline_mode = #tpu.pipeline_mode<synchronous>, transform_indices = @transform_10, window_bounds = array<i64: 1, 128>}, {pipeline_mode = #tpu.pipeline_mode<synchronous>, transform_indices = @transform_11, window_bounds = array<i64: 1, 128>}, {pipeline_mode = #tpu.pipeline_mode<synchronous>, transform_indices = @transform_12, window_bounds = array<i64: 1, 128>}, {pipeline_mode = #tpu.pipeline_mode<synchronous>, transform_indices = @transform_13, window_bounds = array<i64: 128, 64>}, {pipeline_mode = #tpu.pipeline_mode<synchronous>, transform_indices = @transform_14, window_bounds = array<i64: 1, 64>}, {pipeline_mode = #tpu.pipeline_mode<synchronous>, transform_indices = @transform_15, window_bounds = array<i64: 1, 64>}, {pipeline_mode = #tpu.pipeline_mode<synchronous>, transform_indices = @transform_16, window_bounds = array<i64: 1, 64>}, {pipeline_mode = #tpu.pipeline_mode<synchronous>, transform_indices = @transform_17, window_bounds = array<i64: 1, 64>}, {pipeline_mode = #tpu.pipeline_mode<synchronous>, transform_indices = @transform_18, window_bounds = array<i64: 1, 1>}, {transform_indices = @transform_19, window_bounds = array<i64: 80, 1>}]} {
    %c0 = arith.constant 0 : index
    %c0_0 = arith.constant 0 : index
    %0 = vector.load %arg1[%c0, %c0_0] : memref<80x128xf32, #tpu.memory_space<vmem>>, vector<80x128xf32>
    %c0_1 = arith.constant 0 : index
    %c0_2 = arith.constant 0 : index
    %1 = vector.load %arg2[%c0_1, %c0_2] : memref<128x512xbf16, #tpu.memory_space<vmem>>, vector<128x512xbf16>
    %c0_3 = arith.constant 0 : index
    %c0_4 = arith.constant 0 : index
    %2 = vector.load %arg3[%c0_3, %c0_4] : memref<1x512xf32, #tpu.memory_space<vmem>>, vector<1x512xf32>
    %c0_5 = arith.constant 0 : index
    %c0_6 = arith.constant 0 : index
    %3 = vector.load %arg4[%c0_5, %c0_6] : memref<1x512xf32, #tpu.memory_space<vmem>>, vector<1x512xf32>
    %c0_7 = arith.constant 0 : index
    %c0_8 = arith.constant 0 : index
    %4 = vector.load %arg5[%c0_7, %c0_8] : memref<1x512xf32, #tpu.memory_space<vmem>>, vector<1x512xf32>
    %5 = arith.truncf %0 : vector<80x128xf32> to vector<80x128xbf16>
    %cst = arith.constant dense<0.000000e+00> : vector<80x512xf32>
    %6 = tpu.matmul %5, %1, %cst {dimension_numbers = #tpu.dot_dimension_numbers<[1], [0], [0], [1], [0, 0, 1, 1], [], []>} : vector<80x128xbf16>, vector<128x512xbf16>, vector<80x512xf32> -> vector<80x512xf32>
    %7 = vector.broadcast %2 : vector<1x512xf32> to vector<80x512xf32>
    %8 = arith.addf %6, %7 : vector<80x512xf32>
    %cst_9 = arith.constant dense<0.000000e+00> : vector<80xf32>
    %9 = vector.multi_reduction <add>, %8, %cst_9 [1] : vector<80x512xf32> to vector<80xf32>
    %10 = vector.shape_cast %9 : vector<80xf32> to vector<80x1xf32>
    %cst_10 = arith.constant 5.120000e+02 : f32
    %11 = vector.broadcast %cst_10 : f32 to vector<80x1xf32>
    %12 = arith.divf %10, %11 : vector<80x1xf32>
    %13 = vector.broadcast %12 : vector<80x1xf32> to vector<80x512xf32>
    %14 = arith.subf %8, %13 : vector<80x512xf32>
    %15 = arith.mulf %14, %14 : vector<80x512xf32>
    %cst_11 = arith.constant dense<0.000000e+00> : vector<80xf32>
    %16 = vector.multi_reduction <add>, %15, %cst_11 [1] : vector<80x512xf32> to vector<80xf32>
    %17 = vector.shape_cast %16 : vector<80xf32> to vector<80x1xf32>
    %cst_12 = arith.constant 5.120000e+02 : f32
    %18 = vector.broadcast %cst_12 : f32 to vector<80x1xf32>
    %19 = arith.divf %17, %18 : vector<80x1xf32>
    %cst_13 = arith.constant 9.99999974E-6 : f32
    %20 = vector.broadcast %cst_13 : f32 to vector<80x1xf32>
    %21 = arith.addf %19, %20 : vector<80x1xf32>
    %22 = math.rsqrt %21 : vector<80x1xf32>
    %23 = vector.broadcast %22 : vector<80x1xf32> to vector<80x512xf32>
    %24 = arith.mulf %14, %23 : vector<80x512xf32>
    %25 = vector.broadcast %3 : vector<1x512xf32> to vector<80x512xf32>
    %26 = arith.mulf %24, %25 : vector<80x512xf32>
    %27 = vector.broadcast %4 : vector<1x512xf32> to vector<80x512xf32>
    %28 = arith.addf %26, %27 : vector<80x512xf32>
    %cst_14 = arith.constant 0.000000e+00 : f32
    %29 = vector.broadcast %cst_14 : f32 to vector<80x512xf32>
    %30 = arith.maximumf %28, %29 : vector<80x512xf32>
    %c0_15 = arith.constant 0 : index
    %c0_16 = arith.constant 0 : index
    %31 = vector.load %arg6[%c0_15, %c0_16] : memref<512x256xbf16, #tpu.memory_space<vmem>>, vector<512x256xbf16>
    %c0_17 = arith.constant 0 : index
    %c0_18 = arith.constant 0 : index
    %32 = vector.load %arg7[%c0_17, %c0_18] : memref<1x256xf32, #tpu.memory_space<vmem>>, vector<1x256xf32>
    %c0_19 = arith.constant 0 : index
    %c0_20 = arith.constant 0 : index
    %33 = vector.load %arg8[%c0_19, %c0_20] : memref<1x256xf32, #tpu.memory_space<vmem>>, vector<1x256xf32>
    %c0_21 = arith.constant 0 : index
    %c0_22 = arith.constant 0 : index
    %34 = vector.load %arg9[%c0_21, %c0_22] : memref<1x256xf32, #tpu.memory_space<vmem>>, vector<1x256xf32>
    %35 = arith.truncf %30 : vector<80x512xf32> to vector<80x512xbf16>
    %cst_23 = arith.constant dense<0.000000e+00> : vector<80x256xf32>
    %36 = tpu.matmul %35, %31, %cst_23 {dimension_numbers = #tpu.dot_dimension_numbers<[1], [0], [0], [1], [0, 0, 1, 1], [], []>} : vector<80x512xbf16>, vector<512x256xbf16>, vector<80x256xf32> -> vector<80x256xf32>
    %37 = vector.broadcast %32 : vector<1x256xf32> to vector<80x256xf32>
    %38 = arith.addf %36, %37 : vector<80x256xf32>
    %cst_24 = arith.constant dense<0.000000e+00> : vector<80xf32>
    %39 = vector.multi_reduction <add>, %38, %cst_24 [1] : vector<80x256xf32> to vector<80xf32>
    %40 = vector.shape_cast %39 : vector<80xf32> to vector<80x1xf32>
    %cst_25 = arith.constant 2.560000e+02 : f32
    %41 = vector.broadcast %cst_25 : f32 to vector<80x1xf32>
    %42 = arith.divf %40, %41 : vector<80x1xf32>
    %43 = vector.broadcast %42 : vector<80x1xf32> to vector<80x256xf32>
    %44 = arith.subf %38, %43 : vector<80x256xf32>
    %45 = arith.mulf %44, %44 : vector<80x256xf32>
    %cst_26 = arith.constant dense<0.000000e+00> : vector<80xf32>
    %46 = vector.multi_reduction <add>, %45, %cst_26 [1] : vector<80x256xf32> to vector<80xf32>
    %47 = vector.shape_cast %46 : vector<80xf32> to vector<80x1xf32>
    %cst_27 = arith.constant 2.560000e+02 : f32
    %48 = vector.broadcast %cst_27 : f32 to vector<80x1xf32>
    %49 = arith.divf %47, %48 : vector<80x1xf32>
    %cst_28 = arith.constant 9.99999974E-6 : f32
    %50 = vector.broadcast %cst_28 : f32 to vector<80x1xf32>
    %51 = arith.addf %49, %50 : vector<80x1xf32>
    %52 = math.rsqrt %51 : vector<80x1xf32>
    %53 = vector.broadcast %52 : vector<80x1xf32> to vector<80x256xf32>
    %54 = arith.mulf %44, %53 : vector<80x256xf32>
    %55 = vector.broadcast %33 : vector<1x256xf32> to vector<80x256xf32>
    %56 = arith.mulf %54, %55 : vector<80x256xf32>
    %57 = vector.broadcast %34 : vector<1x256xf32> to vector<80x256xf32>
    %58 = arith.addf %56, %57 : vector<80x256xf32>
    %cst_29 = arith.constant 0.000000e+00 : f32
    %59 = vector.broadcast %cst_29 : f32 to vector<80x256xf32>
    %60 = arith.maximumf %58, %59 : vector<80x256xf32>
    %c0_30 = arith.constant 0 : index
    %c0_31 = arith.constant 0 : index
    %61 = vector.load %arg10[%c0_30, %c0_31] : memref<256x128xbf16, #tpu.memory_space<vmem>>, vector<256x128xbf16>
    %c0_32 = arith.constant 0 : index
    %c0_33 = arith.constant 0 : index
    %62 = vector.load %arg11[%c0_32, %c0_33] : memref<1x128xf32, #tpu.memory_space<vmem>>, vector<1x128xf32>
    %c0_34 = arith.constant 0 : index
    %c0_35 = arith.constant 0 : index
    %63 = vector.load %arg12[%c0_34, %c0_35] : memref<1x128xf32, #tpu.memory_space<vmem>>, vector<1x128xf32>
    %c0_36 = arith.constant 0 : index
    %c0_37 = arith.constant 0 : index
    %64 = vector.load %arg13[%c0_36, %c0_37] : memref<1x128xf32, #tpu.memory_space<vmem>>, vector<1x128xf32>
    %65 = arith.truncf %60 : vector<80x256xf32> to vector<80x256xbf16>
    %cst_38 = arith.constant dense<0.000000e+00> : vector<80x128xf32>
    %66 = tpu.matmul %65, %61, %cst_38 {dimension_numbers = #tpu.dot_dimension_numbers<[1], [0], [0], [1], [0, 0, 1, 1], [], []>} : vector<80x256xbf16>, vector<256x128xbf16>, vector<80x128xf32> -> vector<80x128xf32>
    %67 = vector.broadcast %62 : vector<1x128xf32> to vector<80x128xf32>
    %68 = arith.addf %66, %67 : vector<80x128xf32>
    %cst_39 = arith.constant dense<0.000000e+00> : vector<80xf32>
    %69 = vector.multi_reduction <add>, %68, %cst_39 [1] : vector<80x128xf32> to vector<80xf32>
    %70 = vector.shape_cast %69 : vector<80xf32> to vector<80x1xf32>
    %cst_40 = arith.constant 1.280000e+02 : f32
    %71 = vector.broadcast %cst_40 : f32 to vector<80x1xf32>
    %72 = arith.divf %70, %71 : vector<80x1xf32>
    %73 = vector.broadcast %72 : vector<80x1xf32> to vector<80x128xf32>
    %74 = arith.subf %68, %73 : vector<80x128xf32>
    %75 = arith.mulf %74, %74 : vector<80x128xf32>
    %cst_41 = arith.constant dense<0.000000e+00> : vector<80xf32>
    %76 = vector.multi_reduction <add>, %75, %cst_41 [1] : vector<80x128xf32> to vector<80xf32>
    %77 = vector.shape_cast %76 : vector<80xf32> to vector<80x1xf32>
    %cst_42 = arith.constant 1.280000e+02 : f32
    %78 = vector.broadcast %cst_42 : f32 to vector<80x1xf32>
    %79 = arith.divf %77, %78 : vector<80x1xf32>
    %cst_43 = arith.constant 9.99999974E-6 : f32
    %80 = vector.broadcast %cst_43 : f32 to vector<80x1xf32>
    %81 = arith.addf %79, %80 : vector<80x1xf32>
    %82 = math.rsqrt %81 : vector<80x1xf32>
    %83 = vector.broadcast %82 : vector<80x1xf32> to vector<80x128xf32>
    %84 = arith.mulf %74, %83 : vector<80x128xf32>
    %85 = vector.broadcast %63 : vector<1x128xf32> to vector<80x128xf32>
    %86 = arith.mulf %84, %85 : vector<80x128xf32>
    %87 = vector.broadcast %64 : vector<1x128xf32> to vector<80x128xf32>
    %88 = arith.addf %86, %87 : vector<80x128xf32>
    %cst_44 = arith.constant 0.000000e+00 : f32
    %89 = vector.broadcast %cst_44 : f32 to vector<80x128xf32>
    %90 = arith.maximumf %88, %89 : vector<80x128xf32>
    %c0_45 = arith.constant 0 : index
    %c0_46 = arith.constant 0 : index
    %91 = vector.load %arg14[%c0_45, %c0_46] : memref<128x64xbf16, #tpu.memory_space<vmem>>, vector<128x64xbf16>
    %c0_47 = arith.constant 0 : index
    %c0_48 = arith.constant 0 : index
    %92 = vector.load %arg15[%c0_47, %c0_48] : memref<1x64xf32, #tpu.memory_space<vmem>>, vector<1x64xf32>
    %c0_49 = arith.constant 0 : index
    %c0_50 = arith.constant 0 : index
    %93 = vector.load %arg16[%c0_49, %c0_50] : memref<1x64xf32, #tpu.memory_space<vmem>>, vector<1x64xf32>
    %c0_51 = arith.constant 0 : index
    %c0_52 = arith.constant 0 : index
    %94 = vector.load %arg17[%c0_51, %c0_52] : memref<1x64xf32, #tpu.memory_space<vmem>>, vector<1x64xf32>
    %95 = arith.truncf %90 : vector<80x128xf32> to vector<80x128xbf16>
    %cst_53 = arith.constant dense<0.000000e+00> : vector<80x64xf32>
    %96 = tpu.matmul %95, %91, %cst_53 {dimension_numbers = #tpu.dot_dimension_numbers<[1], [0], [0], [1], [0, 0, 1, 1], [], []>} : vector<80x128xbf16>, vector<128x64xbf16>, vector<80x64xf32> -> vector<80x64xf32>
    %97 = vector.broadcast %92 : vector<1x64xf32> to vector<80x64xf32>
    %98 = arith.addf %96, %97 : vector<80x64xf32>
    %cst_54 = arith.constant dense<0.000000e+00> : vector<80xf32>
    %99 = vector.multi_reduction <add>, %98, %cst_54 [1] : vector<80x64xf32> to vector<80xf32>
    %100 = vector.shape_cast %99 : vector<80xf32> to vector<80x1xf32>
    %cst_55 = arith.constant 6.400000e+01 : f32
    %101 = vector.broadcast %cst_55 : f32 to vector<80x1xf32>
    %102 = arith.divf %100, %101 : vector<80x1xf32>
    %103 = vector.broadcast %102 : vector<80x1xf32> to vector<80x64xf32>
    %104 = arith.subf %98, %103 : vector<80x64xf32>
    %105 = arith.mulf %104, %104 : vector<80x64xf32>
    %cst_56 = arith.constant dense<0.000000e+00> : vector<80xf32>
    %106 = vector.multi_reduction <add>, %105, %cst_56 [1] : vector<80x64xf32> to vector<80xf32>
    %107 = vector.shape_cast %106 : vector<80xf32> to vector<80x1xf32>
    %cst_57 = arith.constant 6.400000e+01 : f32
    %108 = vector.broadcast %cst_57 : f32 to vector<80x1xf32>
    %109 = arith.divf %107, %108 : vector<80x1xf32>
    %cst_58 = arith.constant 9.99999974E-6 : f32
    %110 = vector.broadcast %cst_58 : f32 to vector<80x1xf32>
    %111 = arith.addf %109, %110 : vector<80x1xf32>
    %112 = math.rsqrt %111 : vector<80x1xf32>
    %113 = vector.broadcast %112 : vector<80x1xf32> to vector<80x64xf32>
    %114 = arith.mulf %104, %113 : vector<80x64xf32>
    %115 = vector.broadcast %93 : vector<1x64xf32> to vector<80x64xf32>
    %116 = arith.mulf %114, %115 : vector<80x64xf32>
    %117 = vector.broadcast %94 : vector<1x64xf32> to vector<80x64xf32>
    %118 = arith.addf %116, %117 : vector<80x64xf32>
    %cst_59 = arith.constant 0.000000e+00 : f32
    %119 = vector.broadcast %cst_59 : f32 to vector<80x64xf32>
    %120 = arith.maximumf %118, %119 : vector<80x64xf32>
    %c0_60 = arith.constant 0 : index
    %c0_61 = arith.constant 0 : index
    %121 = vector.load %arg18[%c0_60, %c0_61] : memref<1x64xf32, #tpu.memory_space<vmem>>, vector<1x64xf32>
    %122 = vector.broadcast %121 : vector<1x64xf32> to vector<80x64xf32>
    %123 = arith.mulf %120, %122 : vector<80x64xf32>
    %cst_62 = arith.constant dense<0.000000e+00> : vector<80xf32>
    %124 = vector.multi_reduction <add>, %123, %cst_62 [1] : vector<80x64xf32> to vector<80xf32>
    %125 = vector.shape_cast %124 : vector<80xf32> to vector<80x1xf32>
    %c0_63 = arith.constant 0 : index
    %c0_64 = arith.constant 0 : index
    %126 = vector.load %arg19[%c0_63, %c0_64] : memref<1x1xf32, #tpu.memory_space<vmem>>, vector<1x1xf32>
    %127 = vector.broadcast %126 : vector<1x1xf32> to vector<80x1xf32>
    %128 = arith.addf %125, %127 : vector<80x1xf32>
    %129 = arith.negf %128 : vector<80x1xf32>
    %130 = math.exp %129 : vector<80x1xf32>
    %cst_65 = arith.constant 1.000000e+00 : f32
    %131 = vector.broadcast %cst_65 : f32 to vector<80x1xf32>
    %132 = arith.addf %131, %130 : vector<80x1xf32>
    %133 = arith.divf %131, %132 : vector<80x1xf32>
    %c0_66 = arith.constant 0 : index
    %c0_67 = arith.constant 0 : index
    %134 = vector.load %arg20[%c0_66, %c0_67] : memref<80x1xf32, #tpu.memory_space<vmem>>, vector<80x1xf32>
    tpu.vector_store %arg20[%c0_66, %c0_67], %133 {strides = array<i32>} : memref<80x1xf32, #tpu.memory_space<vmem>>, vector<80x1xf32>,
    return
  }
  func.func @transform_0(%arg0: i32) -> (i32, i32) {
    %c0_i32 = arith.constant 0 : i32
    %c0_i32_0 = arith.constant 0 : i32
    return %arg0, %c0_i32 : i32, i32
  }
  func.func @transform_1(%arg0: i32) -> (i32, i32) {
    %c0_i32 = arith.constant 0 : i32
    %c0_i32_0 = arith.constant 0 : i32
    %c0_i32_1 = arith.constant 0 : i32
    return %c0_i32, %c0_i32_0 : i32, i32
  }
  func.func @transform_2(%arg0: i32) -> (i32, i32) {
    %c0_i32 = arith.constant 0 : i32
    %c0_i32_0 = arith.constant 0 : i32
    %c0_i32_1 = arith.constant 0 : i32
    return %c0_i32, %c0_i32_0 : i32, i32
  }
  func.func @transform_3(%arg0: i32) -> (i32, i32) {
    %c0_i32 = arith.constant 0 : i32
    %c0_i32_0 = arith.constant 0 : i32
    %c0_i32_1 = arith.constant 0 : i32
    return %c0_i32, %c0_i32_0 : i32, i32
  }
  func.func @transform_4(%arg0: i32) -> (i32, i32) {
    %c0_i32 = arith.constant 0 : i32
    %c0_i32_0 = arith.constant 0 : i32
    %c0_i32_1 = arith.constant 0 : i32
    return %c0_i32, %c0_i32_0 : i32, i32
  }
  func.func @transform_5(%arg0: i32) -> (i32, i32) {
    %c0_i32 = arith.constant 0 : i32
    %c0_i32_0 = arith.constant 0 : i32
    %c0_i32_1 = arith.constant 0 : i32
    return %c0_i32, %c0_i32_0 : i32, i32
  }
  func.func @transform_6(%arg0: i32) -> (i32, i32) {
    %c0_i32 = arith.constant 0 : i32
    %c0_i32_0 = arith.constant 0 : i32
    %c0_i32_1 = arith.constant 0 : i32
    return %c0_i32, %c0_i32_0 : i32, i32
  }
  func.func @transform_7(%arg0: i32) -> (i32, i32) {
    %c0_i32 = arith.constant 0 : i32
    %c0_i32_0 = arith.constant 0 : i32
    %c0_i32_1 = arith.constant 0 : i32
    return %c0_i32, %c0_i32_0 : i32, i32
  }
  func.func @transform_8(%arg0: i32) -> (i32, i32) {
    %c0_i32 = arith.constant 0 : i32
    %c0_i32_0 = arith.constant 0 : i32
    %c0_i32_1 = arith.constant 0 : i32
    return %c0_i32, %c0_i32_0 : i32, i32
  }
  func.func @transform_9(%arg0: i32) -> (i32, i32) {
    %c0_i32 = arith.constant 0 : i32
    %c0_i32_0 = arith.constant 0 : i32
    %c0_i32_1 = arith.constant 0 : i32
    return %c0_i32, %c0_i32_0 : i32, i32
  }
  func.func @transform_10(%arg0: i32) -> (i32, i32) {
    %c0_i32 = arith.constant 0 : i32
    %c0_i32_0 = arith.constant 0 : i32
    %c0_i32_1 = arith.constant 0 : i32
    return %c0_i32, %c0_i32_0 : i32, i32
  }
  func.func @transform_11(%arg0: i32) -> (i32, i32) {
    %c0_i32 = arith.constant 0 : i32
    %c0_i32_0 = arith.constant 0 : i32
    %c0_i32_1 = arith.constant 0 : i32
    return %c0_i32, %c0_i32_0 : i32, i32
  }
  func.func @transform_12(%arg0: i32) -> (i32, i32) {
    %c0_i32 = arith.constant 0 : i32
    %c0_i32_0 = arith.constant 0 : i32
    %c0_i32_1 = arith.constant 0 : i32
    return %c0_i32, %c0_i32_0 : i32, i32
  }
  func.func @transform_13(%arg0: i32) -> (i32, i32) {
    %c0_i32 = arith.constant 0 : i32
    %c0_i32_0 = arith.constant 0 : i32
    %c0_i32_1 = arith.constant 0 : i32
    return %c0_i32, %c0_i32_0 : i32, i32
  }
  func.func @transform_14(%arg0: i32) -> (i32, i32) {
    %c0_i32 = arith.constant 0 : i32
    %c0_i32_0 = arith.constant 0 : i32
    %c0_i32_1 = arith.constant 0 : i32
    return %c0_i32, %c0_i32_0 : i32, i32
  }
  func.func @transform_15(%arg0: i32) -> (i32, i32) {
    %c0_i32 = arith.constant 0 : i32
    %c0_i32_0 = arith.constant 0 : i32
    %c0_i32_1 = arith.constant 0 : i32
    return %c0_i32, %c0_i32_0 : i32, i32
  }
  func.func @transform_16(%arg0: i32) -> (i32, i32) {
    %c0_i32 = arith.constant 0 : i32
    %c0_i32_0 = arith.constant 0 : i32
    %c0_i32_1 = arith.constant 0 : i32
    return %c0_i32, %c0_i32_0 : i32, i32
  }
  func.func @transform_17(%arg0: i32) -> (i32, i32) {
    %c0_i32 = arith.constant 0 : i32
    %c0_i32_0 = arith.constant 0 : i32
    %c0_i32_1 = arith.constant 0 : i32
    return %c0_i32, %c0_i32_0 : i32, i32
  }
  func.func @transform_18(%arg0: i32) -> (i32, i32) {
    %c0_i32 = arith.constant 0 : i32
    %c0_i32_0 = arith.constant 0 : i32
    %c0_i32_1 = arith.constant 0 : i32
    return %c0_i32, %c0_i32_0 : i32, i32
  }
  func.func @transform_19(%arg0: i32) -> (i32, i32) {
    %c0_i32 = arith.constant 0 : i32
    %c0_i32_0 = arith.constant 0 : i32
    return %arg0, %c0_i32 : i32, i32
  }
}

</mosaic_0001>

<llo_original>
// kernel: mlp_forward.1
$region0: #{mlp_forward.1}
  #allocation0 [shape = 'u32[]', space=smem, size = 0x4, offset = 0x4, fixed_abs, tag = 'smem constant byte address 0x4 - core index']
  #allocation1 [shape = 'u32[72,128]{1,0:T(1,128)}', space=vmem, size = 0x9000, scoped, tag = 'internal scratch']
  #allocation2 [shape = 'f32[1,1]{1,0:T(1,128)S(1)}', space=vmem, size = 0x200, scoped, tag = 'scoped memory for mlp_forward.1']
  %s0 = inlined_call_operand.vmem [shape: f32[320,128], index: 0, kind: input, shape index: {}]
  %s1 = inlined_call_operand.hbm [shape: bf16[128,512], index: 1, kind: input, shape index: {}]
  %s2 = inlined_call_operand.vmem [shape: f32[1,512], index: 2, kind: input, shape index: {}]
  %s3 = inlined_call_operand.vmem [shape: f32[1,512], index: 3, kind: input, shape index: {}]
  %s4 = inlined_call_operand.vmem [shape: f32[1,512], index: 4, kind: input, shape index: {}]
  %s5 = inlined_call_operand.vmem [shape: bf16[512,256], index: 5, kind: input, shape index: {}]
  %s6 = inlined_call_operand.vmem [shape: f32[1,256], index: 6, kind: input, shape index: {}]
  %s7 = inlined_call_operand.vmem [shape: f32[1,256], index: 7, kind: input, shape index: {}]
  %s8 = inlined_call_operand.vmem [shape: f32[1,256], index: 8, kind: input, shape index: {}]
  %s9 = inlined_call_operand.vmem [shape: bf16[256,128], index: 9, kind: input, shape index: {}]
  %s10 = inlined_call_operand.vmem [shape: f32[1,128], index: 10, kind: input, shape index: {}]
  %s11 = inlined_call_operand.vmem [shape: f32[1,128], index: 11, kind: input, shape index: {}]
  %s12 = inlined_call_operand.vmem [shape: f32[1,128], index: 12, kind: input, shape index: {}]
  %s13 = inlined_call_operand.vmem [shape: bf16[128,64], index: 13, kind: input, shape index: {}]
  %s14 = inlined_call_operand.vmem [shape: f32[1,64], index: 14, kind: input, shape index: {}]
  %s15 = inlined_call_operand.vmem [shape: f32[1,64], index: 15, kind: input, shape index: {}]
  %s16 = inlined_call_operand.vmem [shape: f32[1,64], index: 16, kind: input, shape index: {}]
  %s17 = inlined_call_operand.vmem [shape: f32[1,64], index: 17, kind: input, shape index: {}]
  %s18 = inlined_call_operand.<no memory space> [shape: f32[1,1], index: 18, kind: input, shape index: {}]
  %s19 = inlined_call_operand.vmem [shape: f32[320,1], index: 19, kind: output, shape index: {}]
  %s20 = sld [smem:[#allocation0]]
  $region113: #{mlp_forward.1} parent=0
    _
  %s22 = ssub.s32 1, %s20
  %s23 = scalar_select 0, %s22, %s20
  %v24 = vstv %s18
  %25 = vst [vmem:[#allocation2] sm:$0x1] %v24
  $region1: #{mlp_forward.1} parent=0
    #allocation3 [shape = 'u8[131072]{0}', space=vmem, size = 0x20000, scoped, tag = 'input window, operand 1, single buffered']
    #allocation4 [shape = 's32[2]{0}', space=sflag, size = 0x8, scoped, tag = 'scoped memory for mlp_forward.1']
    %26 = vsyncpa [#allocation4], 0
    loop: start=0, step=1, limit=6
    $region2: #{mlp_forward.1} parent=1 // loop_pre_header
      _
    $region3: #{mlp_forward.1} parent=1 // loop_header
      %s28 = sphi 0, %s32
      %p29 = scmp.ge.s32.totalorder %s28, 6
      %s38 = sphi 0, %s40
      %s41 = sphi 0, %s38
      %s42 = sphi 0, %s41
      %s58 = sphi 0, %s42
      %s62 = sphi 0, %s62
      %s64 = sphi 0, %s62
      %s65 = sphi 0, %s64
      %s79 = sphi 0, %s65
      %s83 = sphi 0, %s83
      %s85 = sphi 0, %s83
      %s86 = sphi 0, %s85
      %s100 = sphi 0, %s86
      %s104 = sphi 0, %s104
      %s106 = sphi 0, %s104
      %s107 = sphi 0, %s106
      %s121 = sphi 0, %s107
      %s125 = sphi 0, %s125
      %s127 = sphi 0, %s125
      %s128 = sphi 0, %s127
      %s142 = sphi 0, %s128
      %s146 = sphi 0, %s146
      %s148 = sphi 0, %s146
      %s149 = sphi 0, %s148
      %s163 = sphi 0, %s149
      %s167 = sphi 0, %s167
      %s169 = sphi 0, %s167
      %s170 = sphi 0, %s169
      %s184 = sphi 0, %s170
      %s188 = sphi 0, %s188
      %s190 = sphi 0, %s188
      %s191 = sphi 0, %s190
      %s205 = sphi 0, %s191
      %s209 = sphi 0, %s209
      %s211 = sphi 0, %s209
      %s212 = sphi 0, %s211
      %s226 = sphi 0, %s212
      %s230 = sphi 0, %s230
      %s232 = sphi 0, %s230
      %s233 = sphi 0, %s232
      %s247 = sphi 0, %s233
      %s251 = sphi 0, %s251
      %s253 = sphi 0, %s251
      %s254 = sphi 0, %s253
      %s268 = sphi 0, %s254
      %s272 = sphi 0, %s272
      %s274 = sphi 0, %s272
      %s275 = sphi 0, %s274
      %s289 = sphi 0, %s275
      %s293 = sphi 0, %s293
      %s295 = sphi 0, %s293
      %s296 = sphi 0, %s295
      %s310 = sphi 0, %s296
      %s314 = sphi 0, %s314
      %s316 = sphi 0, %s314
      %s317 = sphi 0, %s316
      %s331 = sphi 0, %s317
      %s335 = sphi 0, %s335
      %s337 = sphi 0, %s335
      %s338 = sphi 0, %s337
      %s352 = sphi 0, %s338
      %s356 = sphi 0, %s356
      %s358 = sphi 0, %s356
      %s359 = sphi 0, %s358
      %s373 = sphi 0, %s359
      %s377 = sphi 0, %s377
      %s379 = sphi 0, %s377
      %s380 = sphi 0, %s379
      %s394 = sphi 0, %s380
      %s398 = sphi 0, %s398
      %s400 = sphi 0, %s398
      %s401 = sphi 0, %s400
      %s415 = sphi 0, %s401
      %s419 = sphi 0, %s419
      %s421 = sphi 0, %s419
      %s422 = sphi 0, %s421
      %s436 = sphi 0, %s422
      %s442 = sphi 0, %s444
      %s445 = sphi 0, %s442
      %s446 = sphi 0, %s445
      %s462 = sphi 0, %s446
    $region4: #{mlp_forward.1} parent=1 // loop_header_branch
      %31 = sbr.rel (%p29) target = $region8
    $region5: #{mlp_forward.1} parent=1 // loop_body
      %s33 = ssub.s32 %s28, 1
      %s34 = ssub.s32 %s28, 2
      %s35 = sadd.s32 %s28, 1
      %s36 = ssub.s32 %s28, %s35
      %p37 = scmp.eq.s32.totalorder %s36, 0
      %s39 = sadd.s32 %s38, 1
      %s40 = scalar_select %p37, %s38, %s39
      %p43 = pneg %p37
      %p44 = scmp.eq.s32.totalorder %s28, 3
      %p45 = por %p43, %p44
      %p46 = scmp.ne.s32.totalorder %s38, %s41
      %p47 = scmp.eq.s32.totalorder %s28, 0
      %p48 = por %p46, %p47
      %p49 = scmp.ne.s32.totalorder %s38, %s41
      %p50 = scmp.eq.s32.totalorder %s33, 3
      %p51 = por %p49, %p50
      %p52 = scmp.ne.s32.totalorder %s41, %s42
      %p53 = scmp.eq.s32.totalorder %s33, 0
      %p54 = por %p52, %p53
      %p55 = scmp.ne.s32.totalorder %s41, %s42
      %p56 = scmp.eq.s32.totalorder %s34, 3
      %p57 = por %p55, %p56
      %p59 = scmp.ne.s32.totalorder %s42, %s58
      %p60 = scmp.eq.s32.totalorder %s34, 0
      %p61 = por %p59, %p60
      %s63 = sadd.s32 %s62, 1
      %p66 = scmp.eq.s32.totalorder %s28, 3
      %p67 = scmp.ne.s32.totalorder %s62, %s64
      %p68 = scmp.eq.s32.totalorder %s28, 0
      %p69 = por %p67, %p68
      %p70 = scmp.ne.s32.totalorder %s62, %s64
      %p71 = scmp.eq.s32.totalorder %s33, 3
      %p72 = por %p70, %p71
      %p73 = scmp.ne.s32.totalorder %s64, %s65
      %p74 = scmp.eq.s32.totalorder %s33, 0
      %p75 = por %p73, %p74
      %p76 = scmp.ne.s32.totalorder %s64, %s65
      %p77 = scmp.eq.s32.totalorder %s34, 3
      %p78 = por %p76, %p77
      %p80 = scmp.ne.s32.totalorder %s65, %s79
      %p81 = scmp.eq.s32.totalorder %s34, 0
      %p82 = por %p80, %p81
      %s84 = sadd.s32 %s83, 1
      %p87 = scmp.eq.s32.totalorder %s28, 3
      %p88 = scmp.ne.s32.totalorder %s83, %s85
      %p89 = scmp.eq.s32.totalorder %s28, 0
      %p90 = por %p88, %p89
      %p91 = scmp.ne.s32.totalorder %s83, %s85
      %p92 = scmp.eq.s32.totalorder %s33, 3
      %p93 = por %p91, %p92
      %p94 = scmp.ne.s32.totalorder %s85, %s86
      %p95 = scmp.eq.s32.totalorder %s33, 0
      %p96 = por %p94, %p95
      %p97 = scmp.ne.s32.totalorder %s85, %s86
      %p98 = scmp.eq.s32.totalorder %s34, 3
      %p99 = por %p97, %p98
      %p101 = scmp.ne.s32.totalorder %s86, %s100
      %p102 = scmp.eq.s32.totalorder %s34, 0
      %p103 = por %p101, %p102
      %s105 = sadd.s32 %s104, 1
      %p108 = scmp.eq.s32.totalorder %s28, 3
      %p109 = scmp.ne.s32.totalorder %s104, %s106
      %p110 = scmp.eq.s32.totalorder %s28, 0
      %p111 = por %p109, %p110
      %p112 = scmp.ne.s32.totalorder %s104, %s106
      %p113 = scmp.eq.s32.totalorder %s33, 3
      %p114 = por %p112, %p113
      %p115 = scmp.ne.s32.totalorder %s106, %s107
      %p116 = scmp.eq.s32.totalorder %s33, 0
      %p117 = por %p115, %p116
      %p118 = scmp.ne.s32.totalorder %s106, %s107
      %p119 = scmp.eq.s32.totalorder %s34, 3
      %p120 = por %p118, %p119
      %p122 = scmp.ne.s32.totalorder %s107, %s121
      %p123 = scmp.eq.s32.totalorder %s34, 0
      %p124 = por %p122, %p123
      %s126 = sadd.s32 %s125, 1
      %p129 = scmp.eq.s32.totalorder %s28, 3
      %p130 = scmp.ne.s32.totalorder %s125, %s127
      %p131 = scmp.eq.s32.totalorder %s28, 0
      %p132 = por %p130, %p131
      %p133 = scmp.ne.s32.totalorder %s125, %s127
      %p134 = scmp.eq.s32.totalorder %s33, 3
      %p135 = por %p133, %p134
      %p136 = scmp.ne.s32.totalorder %s127, %s128
      %p137 = scmp.eq.s32.totalorder %s33, 0
      %p138 = por %p136, %p137
      %p139 = scmp.ne.s32.totalorder %s127, %s128
      %p140 = scmp.eq.s32.totalorder %s34, 3
      %p141 = por %p139, %p140
      %p143 = scmp.ne.s32.totalorder %s128, %s142
      %p144 = scmp.eq.s32.totalorder %s34, 0
      %p145 = por %p143, %p144
      %s147 = sadd.s32 %s146, 1
      %p150 = scmp.eq.s32.totalorder %s28, 3
      %p151 = scmp.ne.s32.totalorder %s146, %s148
      %p152 = scmp.eq.s32.totalorder %s28, 0
      %p153 = por %p151, %p152
      %p154 = scmp.ne.s32.totalorder %s146, %s148
      %p155 = scmp.eq.s32.totalorder %s33, 3
      %p156 = por %p154, %p155
      %p157 = scmp.ne.s32.totalorder %s148, %s149
      %p158 = scmp.eq.s32.totalorder %s33, 0
      %p159 = por %p157, %p158
      %p160 = scmp.ne.s32.totalorder %s148, %s149
      %p161 = scmp.eq.s32.totalorder %s34, 3
      %p162 = por %p160, %p161
      %p164 = scmp.ne.s32.totalorder %s149, %s163
      %p165 = scmp.eq.s32.totalorder %s34, 0
      %p166 = por %p164, %p165
      %s168 = sadd.s32 %s167, 1
      %p171 = scmp.eq.s32.totalorder %s28, 3
      %p172 = scmp.ne.s32.totalorder %s167, %s169
      %p173 = scmp.eq.s32.totalorder %s28, 0
      %p174 = por %p172, %p173
      %p175 = scmp.ne.s32.totalorder %s167, %s169
      %p176 = scmp.eq.s32.totalorder %s33, 3
      %p177 = por %p175, %p176
      %p178 = scmp.ne.s32.totalorder %s169, %s170
      %p179 = scmp.eq.s32.totalorder %s33, 0
      %p180 = por %p178, %p179
      %p181 = scmp.ne.s32.totalorder %s169, %s170
      %p182 = scmp.eq.s32.totalorder %s34, 3
      %p183 = por %p181, %p182
      %p185 = scmp.ne.s32.totalorder %s170, %s184
      %p186 = scmp.eq.s32.totalorder %s34, 0
      %p187 = por %p185, %p186
      %s189 = sadd.s32 %s188, 1
      %p192 = scmp.eq.s32.totalorder %s28, 3
      %p193 = scmp.ne.s32.totalorder %s188, %s190
      %p194 = scmp.eq.s32.totalorder %s28, 0
      %p195 = por %p193, %p194
      %p196 = scmp.ne.s32.totalorder %s188, %s190
      %p197 = scmp.eq.s32.totalorder %s33, 3
      %p198 = por %p196, %p197
      %p199 = scmp.ne.s32.totalorder %s190, %s191
      %p200 = scmp.eq.s32.totalorder %s33, 0
      %p201 = por %p199, %p200
      %p202 = scmp.ne.s32.totalorder %s190, %s191
      %p203 = scmp.eq.s32.totalorder %s34, 3
      %p204 = por %p202, %p203
      %p206 = scmp.ne.s32.totalorder %s191, %s205
      %p207 = scmp.eq.s32.totalorder %s34, 0
      %p208 = por %p206, %p207
      %s210 = sadd.s32 %s209, 1
      %p213 = scmp.eq.s32.totalorder %s28, 3
      %p214 = scmp.ne.s32.totalorder %s209, %s211
      %p215 = scmp.eq.s32.totalorder %s28, 0
      %p216 = por %p214, %p215
      %p217 = scmp.ne.s32.totalorder %s209, %s211
      %p218 = scmp.eq.s32.totalorder %s33, 3
      %p219 = por %p217, %p218
      %p220 = scmp.ne.s32.totalorder %s211, %s212
      %p221 = scmp.eq.s32.totalorder %s33, 0
      %p222 = por %p220, %p221
      %p223 = scmp.ne.s32.totalorder %s211, %s212
      %p224 = scmp.eq.s32.totalorder %s34, 3
      %p225 = por %p223, %p224
      %p227 = scmp.ne.s32.totalorder %s212, %s226
      %p228 = scmp.eq.s32.totalorder %s34, 0
      %p229 = por %p227, %p228
      %s231 = sadd.s32 %s230, 1
      %p234 = scmp.eq.s32.totalorder %s28, 3
      %p235 = scmp.ne.s32.totalorder %s230, %s232
      %p236 = scmp.eq.s32.totalorder %s28, 0
      %p237 = por %p235, %p236
      %p238 = scmp.ne.s32.totalorder %s230, %s232
      %p239 = scmp.eq.s32.totalorder %s33, 3
      %p240 = por %p238, %p239
      %p241 = scmp.ne.s32.totalorder %s232, %s233
      %p242 = scmp.eq.s32.totalorder %s33, 0
      %p243 = por %p241, %p242
      %p244 = scmp.ne.s32.totalorder %s232, %s233
      %p245 = scmp.eq.s32.totalorder %s34, 3
      %p246 = por %p244, %p245
      %p248 = scmp.ne.s32.totalorder %s233, %s247
      %p249 = scmp.eq.s32.totalorder %s34, 0
      %p250 = por %p248, %p249
      %s252 = sadd.s32 %s251, 1
      %p255 = scmp.eq.s32.totalorder %s28, 3
      %p256 = scmp.ne.s32.totalorder %s251, %s253
      %p257 = scmp.eq.s32.totalorder %s28, 0
      %p258 = por %p256, %p257
      %p259 = scmp.ne.s32.totalorder %s251, %s253
      %p260 = scmp.eq.s32.totalorder %s33, 3
      %p261 = por %p259, %p260
      %p262 = scmp.ne.s32.totalorder %s253, %s254
      %p263 = scmp.eq.s32.totalorder %s33, 0
      %p264 = por %p262, %p263
      %p265 = scmp.ne.s32.totalorder %s253, %s254
      %p266 = scmp.eq.s32.totalorder %s34, 3
      %p267 = por %p265, %p266
      %p269 = scmp.ne.s32.totalorder %s254, %s268
      %p270 = scmp.eq.s32.totalorder %s34, 0
      %p271 = por %p269, %p270
      %s273 = sadd.s32 %s272, 1
      %p276 = scmp.eq.s32.totalorder %s28, 3
      %p277 = scmp.ne.s32.totalorder %s272, %s274
      %p278 = scmp.eq.s32.totalorder %s28, 0
      %p279 = por %p277, %p278
      %p280 = scmp.ne.s32.totalorder %s272, %s274
      %p281 = scmp.eq.s32.totalorder %s33, 3
      %p282 = por %p280, %p281
      %p283 = scmp.ne.s32.totalorder %s274, %s275
      %p284 = scmp.eq.s32.totalorder %s33, 0
      %p285 = por %p283, %p284
      %p286 = scmp.ne.s32.totalorder %s274, %s275
      %p287 = scmp.eq.s32.totalorder %s34, 3
      %p288 = por %p286, %p287
      %p290 = scmp.ne.s32.totalorder %s275, %s289
      %p291 = scmp.eq.s32.totalorder %s34, 0
      %p292 = por %p290, %p291
      %s294 = sadd.s32 %s293, 1
      %p297 = scmp.eq.s32.totalorder %s28, 3
      %p298 = scmp.ne.s32.totalorder %s293, %s295
      %p299 = scmp.eq.s32.totalorder %s28, 0
      %p300 = por %p298, %p299
      %p301 = scmp.ne.s32.totalorder %s293, %s295
      %p302 = scmp.eq.s32.totalorder %s33, 3
      %p303 = por %p301, %p302
      %p304 = scmp.ne.s32.totalorder %s295, %s296
      %p305 = scmp.eq.s32.totalorder %s33, 0
      %p306 = por %p304, %p305
      %p307 = scmp.ne.s32.totalorder %s295, %s296
      %p308 = scmp.eq.s32.totalorder %s34, 3
      %p309 = por %p307, %p308
      %p311 = scmp.ne.s32.totalorder %s296, %s310
      %p312 = scmp.eq.s32.totalorder %s34, 0
      %p313 = por %p311, %p312
      %s315 = sadd.s32 %s314, 1
      %p318 = scmp.eq.s32.totalorder %s28, 3
      %p319 = scmp.ne.s32.totalorder %s314, %s316
      %p320 = scmp.eq.s32.totalorder %s28, 0
      %p321 = por %p319, %p320
      %p322 = scmp.ne.s32.totalorder %s314, %s316
      %p323 = scmp.eq.s32.totalorder %s33, 3
      %p324 = por %p322, %p323
      %p325 = scmp.ne.s32.totalorder %s316, %s317
      %p326 = scmp.eq.s32.totalorder %s33, 0
      %p327 = por %p325, %p326
      %p328 = scmp.ne.s32.totalorder %s316, %s317
      %p329 = scmp.eq.s32.totalorder %s34, 3
      %p330 = por %p328, %p329
      %p332 = scmp.ne.s32.totalorder %s317, %s331
      %p333 = scmp.eq.s32.totalorder %s34, 0
      %p334 = por %p332, %p333
      %s336 = sadd.s32 %s335, 1
      %p339 = scmp.eq.s32.totalorder %s28, 3
      %p340 = scmp.ne.s32.totalorder %s335, %s337
      %p341 = scmp.eq.s32.totalorder %s28, 0
      %p342 = por %p340, %p341
      %p343 = scmp.ne.s32.totalorder %s335, %s337
      %p344 = scmp.eq.s32.totalorder %s33, 3
      %p345 = por %p343, %p344
      %p346 = scmp.ne.s32.totalorder %s337, %s338
      %p347 = scmp.eq.s32.totalorder %s33, 0
      %p348 = por %p346, %p347
      %p349 = scmp.ne.s32.totalorder %s337, %s338
      %p350 = scmp.eq.s32.totalorder %s34, 3
      %p351 = por %p349, %p350
      %p353 = scmp.ne.s32.totalorder %s338, %s352
      %p354 = scmp.eq.s32.totalorder %s34, 0
      %p355 = por %p353, %p354
      %s357 = sadd.s32 %s356, 1
      %p360 = scmp.eq.s32.totalorder %s28, 3
      %p361 = scmp.ne.s32.totalorder %s356, %s358
      %p362 = scmp.eq.s32.totalorder %s28, 0
      %p363 = por %p361, %p362
      %p364 = scmp.ne.s32.totalorder %s356, %s358
      %p365 = scmp.eq.s32.totalorder %s33, 3
      %p366 = por %p364, %p365
      %p367 = scmp.ne.s32.totalorder %s358, %s359
      %p368 = scmp.eq.s32.totalorder %s33, 0
      %p369 = por %p367, %p368
      %p370 = scmp.ne.s32.totalorder %s358, %s359
      %p371 = scmp.eq.s32.totalorder %s34, 3
      %p372 = por %p370, %p371
      %p374 = scmp.ne.s32.totalorder %s359, %s373
      %p375 = scmp.eq.s32.totalorder %s34, 0
      %p376 = por %p374, %p375
      %s378 = sadd.s32 %s377, 1
      %p381 = scmp.eq.s32.totalorder %s28, 3
      %p382 = scmp.ne.s32.totalorder %s377, %s379
      %p383 = scmp.eq.s32.totalorder %s28, 0
      %p384 = por %p382, %p383
      %p385 = scmp.ne.s32.totalorder %s377, %s379
      %p386 = scmp.eq.s32.totalorder %s33, 3
      %p387 = por %p385, %p386
      %p388 = scmp.ne.s32.totalorder %s379, %s380
      %p389 = scmp.eq.s32.totalorder %s33, 0
      %p390 = por %p388, %p389
      %p391 = scmp.ne.s32.totalorder %s379, %s380
      %p392 = scmp.eq.s32.totalorder %s34, 3
      %p393 = por %p391, %p392
      %p395 = scmp.ne.s32.totalorder %s380, %s394
      %p396 = scmp.eq.s32.totalorder %s34, 0
      %p397 = por %p395, %p396
      %s399 = sadd.s32 %s398, 1
      %p402 = scmp.eq.s32.totalorder %s28, 3
      %p403 = scmp.ne.s32.totalorder %s398, %s400
      %p404 = scmp.eq.s32.totalorder %s28, 0
      %p405 = por %p403, %p404
      %p406 = scmp.ne.s32.totalorder %s398, %s400
      %p407 = scmp.eq.s32.totalorder %s33, 3
      %p408 = por %p406, %p407
      %p409 = scmp.ne.s32.totalorder %s400, %s401
      %p410 = scmp.eq.s32.totalorder %s33, 0
      %p411 = por %p409, %p410
      %p412 = scmp.ne.s32.totalorder %s400, %s401
      %p413 = scmp.eq.s32.totalorder %s34, 3
      %p414 = por %p412, %p413
      %p416 = scmp.ne.s32.totalorder %s401, %s415
      %p417 = scmp.eq.s32.totalorder %s34, 0
      %p418 = por %p416, %p417
      %s420 = sadd.s32 %s419, 1
      %p423 = scmp.eq.s32.totalorder %s28, 3
      %p424 = scmp.ne.s32.totalorder %s419, %s421
      %p425 = scmp.eq.s32.totalorder %s28, 0
      %p426 = por %p424, %p425
      %p427 = scmp.ne.s32.totalorder %s419, %s421
      %p428 = scmp.eq.s32.totalorder %s33, 3
      %p429 = por %p427, %p428
      %p430 = scmp.ne.s32.totalorder %s421, %s422
      %p431 = scmp.eq.s32.totalorder %s33, 0
      %p432 = por %p430, %p431
      %p433 = scmp.ne.s32.totalorder %s421, %s422
      %p434 = scmp.eq.s32.totalorder %s34, 3
      %p435 = por %p433, %p434
      %p437 = scmp.ne.s32.totalorder %s422, %s436
      %p438 = scmp.eq.s32.totalorder %s34, 0
      %p439 = por %p437, %p438
      %s440 = ssub.s32 %s28, %s35
      %p441 = scmp.eq.s32.totalorder %s440, 0
      %s443 = sadd.s32 %s442, 1
      %s444 = scalar_select %p441, %s442, %s443
      %p447 = pneg %p441
      %p448 = scmp.eq.s32.totalorder %s28, 3
      %p449 = por %p447, %p448
      %p450 = scmp.ne.s32.totalorder %s442, %s445
      %p451 = scmp.eq.s32.totalorder %s28, 0
      %p452 = por %p450, %p451
      %p453 = scmp.ne.s32.totalorder %s442, %s445
      %p454 = scmp.eq.s32.totalorder %s33, 3
      %p455 = por %p453, %p454
      %p456 = scmp.ne.s32.totalorder %s445, %s446
      %p457 = scmp.eq.s32.totalorder %s33, 0
      %p458 = por %p456, %p457
      %p459 = scmp.ne.s32.totalorder %s445, %s446
      %p460 = scmp.eq.s32.totalorder %s34, 3
      %p461 = por %p459, %p460
      %p463 = scmp.ne.s32.totalorder %s446, %s462
      %p464 = scmp.eq.s32.totalorder %s34, 0
      %p465 = por %p463, %p464
      %p466 = scmp.le.s32.totalorder 1, %s28
      %p467 = scmp.lt.s32.totalorder %s28, 5
      %p468 = pnand %p466, %p467
      %p469 = pneg %p468
      // Predicated region
      $region9: #{mlp_forward.1} parent=5 // pred_check
        _
      $region10: #{mlp_forward.1} parent=5 // pred_check_branch
        %471 = sbr.rel (%p468) target = $region12
      $region11: #{mlp_forward.1} parent=5 // pred_region
        %s472 = ssub.s32 %s28, 1
        // Predicated region
        $region13: #{mlp_forward.1} parent=11 // pred_check
          %p473 = pneg %p75
        $region14: #{mlp_forward.1} parent=11 // pred_check_branch
          %475 = sbr.rel (%p473) target = $region16
        $region15: #{mlp_forward.1} parent=11 // pred_region
          %477 = vsyncadd [#allocation4], 0
          %s478 = sshll.u32 %s1, 4
          %s479 = int_to_ptr.hbm [resolvable:$true] %s478
          %s480 = sshll.u32 [#allocation3], 4
          %s481 = int_to_ptr.vmem [resolvable:$true] %s480
          %486 = dma.hbm_to_vmem [thread:$0]  %s479, 4096, %s481, [#allocation4], 256, 256, 16
        $region16: #{mlp_forward.1} parent=11 // pred_fallthru
          _
        // Predicated region
        $region17: #{mlp_forward.1} parent=11 // pred_check
          %p487 = pneg %p96
        $region18: #{mlp_forward.1} parent=11 // pred_check_branch
          %489 = sbr.rel (%p487) target = $region20
        $region19: #{mlp_forward.1} parent=11 // pred_region
          _
        $region20: #{mlp_forward.1} parent=11 // pred_fallthru
          _
        // Predicated region
        $region21: #{mlp_forward.1} parent=11 // pred_check
          %p490 = pneg %p117
        $region22: #{mlp_forward.1} parent=11 // pred_check_branch
          %492 = sbr.rel (%p490) target = $region24
        $region23: #{mlp_forward.1} parent=11 // pred_region
          _
        $region24: #{mlp_forward.1} parent=11 // pred_fallthru
          _
        // Predicated region
        $region25: #{mlp_forward.1} parent=11 // pred_check
          %p493 = pneg %p138
        $region26: #{mlp_forward.1} parent=11 // pred_check_branch
          %495 = sbr.rel (%p493) target = $region28
        $region27: #{mlp_forward.1} parent=11 // pred_region
          _
        $region28: #{mlp_forward.1} parent=11 // pred_fallthru
          _
        // Predicated region
        $region29: #{mlp_forward.1} parent=11 // pred_check
          %p496 = pneg %p159
        $region30: #{mlp_forward.1} parent=11 // pred_check_branch
          %498 = sbr.rel (%p496) target = $region32
        $region31: #{mlp_forward.1} parent=11 // pred_region
          _
        $region32: #{mlp_forward.1} parent=11 // pred_fallthru
          _
        // Predicated region
        $region33: #{mlp_forward.1} parent=11 // pred_check
          %p499 = pneg %p180
        $region34: #{mlp_forward.1} parent=11 // pred_check_branch
          %501 = sbr.rel (%p499) target = $region36
        $region35: #{mlp_forward.1} parent=11 // pred_region
          _
        $region36: #{mlp_forward.1} parent=11 // pred_fallthru
          _
        // Predicated region
        $region37: #{mlp_forward.1} parent=11 // pred_check
          %p502 = pneg %p201
        $region38: #{mlp_forward.1} parent=11 // pred_check_branch
          %504 = sbr.rel (%p502) target = $region40
        $region39: #{mlp_forward.1} parent=11 // pred_region
          _
        $region40: #{mlp_forward.1} parent=11 // pred_fallthru
          _
        // Predicated region
        $region41: #{mlp_forward.1} parent=11 // pred_check
          %p505 = pneg %p222
        $region42: #{mlp_forward.1} parent=11 // pred_check_branch
          %507 = sbr.rel (%p505) target = $region44
        $region43: #{mlp_forward.1} parent=11 // pred_region
          _
        $region44: #{mlp_forward.1} parent=11 // pred_fallthru
          _
        // Predicated region
        $region45: #{mlp_forward.1} parent=11 // pred_check
          %p508 = pneg %p243
        $region46: #{mlp_forward.1} parent=11 // pred_check_branch
          %510 = sbr.rel (%p508) target = $region48
        $region47: #{mlp_forward.1} parent=11 // pred_region
          _
        $region48: #{mlp_forward.1} parent=11 // pred_fallthru
          _
        // Predicated region
        $region49: #{mlp_forward.1} parent=11 // pred_check
          %p511 = pneg %p264
        $region50: #{mlp_forward.1} parent=11 // pred_check_branch
          %513 = sbr.rel (%p511) target = $region52
        $region51: #{mlp_forward.1} parent=11 // pred_region
          _
        $region52: #{mlp_forward.1} parent=11 // pred_fallthru
          _
        // Predicated region
        $region53: #{mlp_forward.1} parent=11 // pred_check
          %p514 = pneg %p285
        $region54: #{mlp_forward.1} parent=11 // pred_check_branch
          %516 = sbr.rel (%p514) target = $region56
        $region55: #{mlp_forward.1} parent=11 // pred_region
          _
        $region56: #{mlp_forward.1} parent=11 // pred_fallthru
          _
        // Predicated region
        $region57: #{mlp_forward.1} parent=11 // pred_check
          %p517 = pneg %p306
        $region58: #{mlp_forward.1} parent=11 // pred_check_branch
          %519 = sbr.rel (%p517) target = $region60
        $region59: #{mlp_forward.1} parent=11 // pred_region
          _
        $region60: #{mlp_forward.1} parent=11 // pred_fallthru
          _
        // Predicated region
        $region61: #{mlp_forward.1} parent=11 // pred_check
          %p520 = pneg %p327
        $region62: #{mlp_forward.1} parent=11 // pred_check_branch
          %522 = sbr.rel (%p520) target = $region64
        $region63: #{mlp_forward.1} parent=11 // pred_region
          _
        $region64: #{mlp_forward.1} parent=11 // pred_fallthru
          _
        // Predicated region
        $region65: #{mlp_forward.1} parent=11 // pred_check
          %p523 = pneg %p348
        $region66: #{mlp_forward.1} parent=11 // pred_check_branch
          %525 = sbr.rel (%p523) target = $region68
        $region67: #{mlp_forward.1} parent=11 // pred_region
          _
        $region68: #{mlp_forward.1} parent=11 // pred_fallthru
          _
        // Predicated region
        $region69: #{mlp_forward.1} parent=11 // pred_check
          %p526 = pneg %p369
        $region70: #{mlp_forward.1} parent=11 // pred_check_branch
          %528 = sbr.rel (%p526) target = $region72
        $region71: #{mlp_forward.1} parent=11 // pred_region
          _
        $region72: #{mlp_forward.1} parent=11 // pred_fallthru
          _
        // Predicated region
        $region73: #{mlp_forward.1} parent=11 // pred_check
          %p529 = pneg %p390
        $region74: #{mlp_forward.1} parent=11 // pred_check_branch
          %531 = sbr.rel (%p529) target = $region76
        $region75: #{mlp_forward.1} parent=11 // pred_region
          _
        $region76: #{mlp_forward.1} parent=11 // pred_fallthru
          _
        // Predicated region
        $region77: #{mlp_forward.1} parent=11 // pred_check
          %p532 = pneg %p411
        $region78: #{mlp_forward.1} parent=11 // pred_check_branch
          %534 = sbr.rel (%p532) target = $region80
        $region79: #{mlp_forward.1} parent=11 // pred_region
          _
        $region80: #{mlp_forward.1} parent=11 // pred_fallthru
          _
        // Predicated region
        $region81: #{mlp_forward.1} parent=11 // pred_check
          %p535 = pneg %p432
        $region82: #{mlp_forward.1} parent=11 // pred_check_branch
          %537 = sbr.rel (%p535) target = $region84
        $region83: #{mlp_forward.1} parent=11 // pred_region
          _
        $region84: #{mlp_forward.1} parent=11 // pred_fallthru
          _
      $region12: #{mlp_forward.1} parent=5 // pred_fallthru
        _
      %p538 = scmp.lt.s32.totalorder %s28, 4
      // Predicated region
      $region85: #{mlp_forward.1} parent=5 // pred_check
        %p539 = pneg %p538
      $region86: #{mlp_forward.1} parent=5 // pred_check_branch
        %541 = sbr.rel (%p539) target = $region88
      $region87: #{mlp_forward.1} parent=5 // pred_region
        // Predicated region
        $region89: #{mlp_forward.1} parent=87 // pred_check
          %p542 = pneg %p48
        $region90: #{mlp_forward.1} parent=87 // pred_check_branch
          %544 = sbr.rel (%p542) target = $region92
        $region91: #{mlp_forward.1} parent=87 // pred_region
          %s545 = smul.u32 10, %s28
          %p546 = scmp.lt.s32.totalorder %s545, 39
          %s547 = scalar_select %p546, %s545, 39
          %s548 = smul.addr %s547, 8
          %s549 = scalar_lea.vmem %s0, %s548
          %s550 = smul.u32 10, %s28
        $region92: #{mlp_forward.1} parent=87 // pred_fallthru
          _
      $region88: #{mlp_forward.1} parent=5 // pred_fallthru
        _
      %p551 = scmp.le.s32.totalorder 1, %s28
      %p552 = scmp.lt.s32.totalorder %s28, 5
      %p553 = pnand %p551, %p552
      %p554 = pneg %p553
      // Predicated region
      $region93: #{mlp_forward.1} parent=5 // pred_check
        _
      $region94: #{mlp_forward.1} parent=5 // pred_check_branch
        %556 = sbr.rel (%p553) target = $region96
      $region95: #{mlp_forward.1} parent=5 // pred_region
        %s557 = ssub.s32 %s28, 1
        // Predicated region
        $region97: #{mlp_forward.1} parent=95 // pred_check
          %p558 = pneg %p75
        $region98: #{mlp_forward.1} parent=95 // pred_check_branch
          %560 = sbr.rel (%p558) target = $region100
        $region99: #{mlp_forward.1} parent=95 // pred_region
          %562 = dma.done [#allocation4], 4096
        $region100: #{mlp_forward.1} parent=95 // pred_fallthru
          _
        %s563 = smul.u32 10, %s33
        %p564 = scmp.lt.s32.totalorder %s563, 39
        %s565 = scalar_select %p564, %s563, 39
        %s566 = smul.addr %s565, 8
        %s567 = scalar_lea.vmem %s0, %s566
        %p568 = pneg %p54
        %p569 = pneg %p51
        %p570 = pneg %p75
        %p571 = pneg %p72
        %p572 = pneg %p96
        %p573 = pneg %p93
        %p574 = pneg %p117
        %p575 = pneg %p114
        %p576 = pneg %p138
        %p577 = pneg %p135
        %p578 = pneg %p159
        %p579 = pneg %p156
        %p580 = pneg %p180
        %p581 = pneg %p177
        %p582 = pneg %p201
        %p583 = pneg %p198
        %p584 = pneg %p222
        %p585 = pneg %p219
        %p586 = pneg %p243
        %p587 = pneg %p240
        %p588 = pneg %p264
        %p589 = pneg %p261
        %p590 = pneg %p285
        %p591 = pneg %p282
        %p592 = pneg %p306
        %p593 = pneg %p303
        %p594 = pneg %p327
        %p595 = pneg %p324
        %p596 = pneg %p348
        %p597 = pneg %p345
        %p598 = pneg %p369
        %p599 = pneg %p366
        %p600 = pneg %p390
        %p601 = pneg %p387
        %p602 = pneg %p411
        %p603 = pneg %p408
        %p604 = pneg %p432
        %p605 = pneg %p429
        %p606 = pneg %p458
        %p607 = pneg %p455
        %s608 = smul.u32 10, %s33
        %p609 = scmp.lt.s32.totalorder %s608, 39
        %s610 = scalar_select %p609, %s608, 39
        %s611 = smul.addr %s610, 8
        %s612 = scalar_lea.vmem %s19, %s611
        %s613 = smul.u32 10, %s33
        %p614 = scmp.lt.s32.totalorder %s613, 39
        %s615 = scalar_select %p614, %s613, 39
        %s616 = smul.addr %s615, 8
        %s617 = scalar_lea.vmem %s0, %s616
        %s618 = smul.u32 10, %s33
        %s619 = smul.u32 10, %s33
        %p620 = scmp.lt.s32.totalorder %s619, 39
        %s621 = scalar_select %p620, %s619, 39
        %s622 = smul.addr %s621, 8
        %s623 = scalar_lea.vmem %s19, %s622
        %s624 = smul.u32 10, %s33
        %v625 = vld [vmem:[%s617] sm:$0xff]
        %v626 = vld [vmem:[%s617 + $0x8] sm:$0xff]
        %v627 = vld [vmem:[%s617 + $0x10] sm:$0xff]
        %v628 = vld [vmem:[%s617 + $0x18] sm:$0xff]
        %v629 = vld [vmem:[%s617 + $0x20] sm:$0xff]
        %v630 = vld [vmem:[%s617 + $0x28] sm:$0xff]
        %v631 = vld [vmem:[%s617 + $0x30] sm:$0xff]
        %v632 = vld [vmem:[%s617 + $0x38] sm:$0xff]
        %v633 = vld [vmem:[%s617 + $0x40] sm:$0xff]
        %v634 = vld [vmem:[%s617 + $0x48] sm:$0xff]
        %v635 = vld [vmem:[#allocation3] sm:$0xff]
        %v636 = vld [vmem:[#allocation3 + $0x8] sm:$0xff]
        %v637 = vld [vmem:[#allocation3 + $0x10] sm:$0xff]
        %v638 = vld [vmem:[#allocation3 + $0x18] sm:$0xff]
        %v639 = vld [vmem:[#allocation3 + $0x20] sm:$0xff]
        %v640 = vld [vmem:[#allocation3 + $0x28] sm:$0xff]
        %v641 = vld [vmem:[#allocation3 + $0x30] sm:$0xff]
        %v642 = vld [vmem:[#allocation3 + $0x38] sm:$0xff]
        %v643 = vld [vmem:[#allocation3 + $0x40] sm:$0xff]
        %v644 = vld [vmem:[#allocation3 + $0x48] sm:$0xff]
        %v645 = vld [vmem:[#allocation3 + $0x50] sm:$0xff]
        %v646 = vld [vmem:[#allocation3 + $0x58] sm:$0xff]
        %v647 = vld [vmem:[#allocation3 + $0x60] sm:$0xff]
        %v648 = vld [vmem:[#allocation3 + $0x68] sm:$0xff]
        %v649 = vld [vmem:[#allocation3 + $0x70] sm:$0xff]
        %v650 = vld [vmem:[#allocation3 + $0x78] sm:$0xff]
        %v651 = vld [vmem:[#allocation3 + $0x80] sm:$0xff]
        %v652 = vld [vmem:[#allocation3 + $0x88] sm:$0xff]
        %v653 = vld [vmem:[#allocation3 + $0x90] sm:$0xff]
        %v654 = vld [vmem:[#allocation3 + $0x98] sm:$0xff]
        %v655 = vld [vmem:[#allocation3 + $0xa0] sm:$0xff]
        %v656 = vld [vmem:[#allocation3 + $0xa8] sm:$0xff]
        %v657 = vld [vmem:[#allocation3 + $0xb0] sm:$0xff]
        %v658 = vld [vmem:[#allocation3 + $0xb8] sm:$0xff]
        %v659 = vld [vmem:[#allocation3 + $0xc0] sm:$0xff]
        %v660 = vld [vmem:[#allocation3 + $0xc8] sm:$0xff]
        %v661 = vld [vmem:[#allocation3 + $0xd0] sm:$0xff]
        %v662 = vld [vmem:[#allocation3 + $0xd8] sm:$0xff]
        %v663 = vld [vmem:[#allocation3 + $0xe0] sm:$0xff]
        %v664 = vld [vmem:[#allocation3 + $0xe8] sm:$0xff]
        %v665 = vld [vmem:[#allocation3 + $0xf0] sm:$0xff]
        %v666 = vld [vmem:[#allocation3 + $0xf8] sm:$0xff]
        %v667 = vld [vmem:[%s2] sm:$0xf]
        %v668 = vld [vmem:[%s3] sm:$0xf]
        %v669 = vld [vmem:[%s4] sm:$0xf]
        %v670 = vpack.c.bf16 %v626, %v625
        %v671 = vpack.c.bf16 %v628, %v627
        %v672 = vpack.c.bf16 %v630, %v629
        %v673 = vpack.c.bf16 %v632, %v631
        %v674 = vpack.c.bf16 %v634, %v633
        %v676 = vperm.slane %v667, 0
        %v677 = vperm.slane %v667, 1
        %v678 = vperm.slane %v667, 2
        %v679 = vperm.slane %v667, 3
        %v716 = vunpack.c.l.b16 %v635
        %v717 = vunpack.c.h.b16 %v635
        %v718 = vunpack.c.l.b16 %v636
        %v719 = vunpack.c.h.b16 %v636
        %v720 = vunpack.c.l.b16 %v637
        %v721 = vunpack.c.h.b16 %v637
        %v722 = vunpack.c.l.b16 %v638
        %v723 = vunpack.c.h.b16 %v638
        %v724 = vunpack.c.l.b16 %v639
        %v725 = vunpack.c.h.b16 %v639
        %v726 = vunpack.c.l.b16 %v640
        %v727 = vunpack.c.h.b16 %v640
        %v728 = vunpack.c.l.b16 %v641
        %v729 = vunpack.c.h.b16 %v641
        %v730 = vunpack.c.l.b16 %v642
        %v731 = vunpack.c.h.b16 %v642
        %v732 = vunpack.c.l.b16 %v643
        %v733 = vunpack.c.h.b16 %v643
        %v734 = vunpack.c.l.b16 %v644
        %v735 = vunpack.c.h.b16 %v644
        %v736 = vunpack.c.l.b16 %v645
        %v737 = vunpack.c.h.b16 %v645
        %v738 = vunpack.c.l.b16 %v646
        %v739 = vunpack.c.h.b16 %v646
        %v740 = vunpack.c.l.b16 %v647
        %v741 = vunpack.c.h.b16 %v647
        %v742 = vunpack.c.l.b16 %v648
        %v743 = vunpack.c.h.b16 %v648
        %v744 = vunpack.c.l.b16 %v649
        %v745 = vunpack.c.h.b16 %v649
        %v746 = vunpack.c.l.b16 %v650
        %v747 = vunpack.c.h.b16 %v650
        %v748 = vunpack.c.l.b16 %v651
        %v749 = vunpack.c.h.b16 %v651
        %v750 = vunpack.c.l.b16 %v652
        %v751 = vunpack.c.h.b16 %v652
        %v752 = vunpack.c.l.b16 %v653
        %v753 = vunpack.c.h.b16 %v653
        %v754 = vunpack.c.l.b16 %v654
        %v755 = vunpack.c.h.b16 %v654
        %v756 = vunpack.c.l.b16 %v655
        %v757 = vunpack.c.h.b16 %v655
        %v758 = vunpack.c.l.b16 %v656
        %v759 = vunpack.c.h.b16 %v656
        %v760 = vunpack.c.l.b16 %v657
        %v761 = vunpack.c.h.b16 %v657
        %v762 = vunpack.c.l.b16 %v658
        %v763 = vunpack.c.h.b16 %v658
        %v764 = vunpack.c.l.b16 %v659
        %v765 = vunpack.c.h.b16 %v659
        %v766 = vunpack.c.l.b16 %v660
        %v767 = vunpack.c.h.b16 %v660
        %v768 = vunpack.c.l.b16 %v661
        %v769 = vunpack.c.h.b16 %v661
        %v770 = vunpack.c.l.b16 %v662
        %v771 = vunpack.c.h.b16 %v662
        %v772 = vunpack.c.l.b16 %v663
        %v773 = vunpack.c.h.b16 %v663
        %v774 = vunpack.c.l.b16 %v664
        %v775 = vunpack.c.h.b16 %v664
        %v776 = vunpack.c.l.b16 %v665
        %v777 = vunpack.c.h.b16 %v665
        %v778 = vunpack.c.l.b16 %v666
        %v779 = vunpack.c.h.b16 %v666
        %v780 = vpack.c.b16 %v720, %v716
        %v781 = vpack.c.b16 %v721, %v717
        %v782 = vpack.c.b16 %v722, %v718
        %v783 = vpack.c.b16 %v723, %v719
        %v784 = vpack.c.b16 %v728, %v724
        %v785 = vpack.c.b16 %v729, %v725
        %v786 = vpack.c.b16 %v730, %v726
        %v787 = vpack.c.b16 %v731, %v727
        %v788 = vpack.c.b16 %v736, %v732
        %v789 = vpack.c.b16 %v737, %v733
        %v790 = vpack.c.b16 %v738, %v734
        %v791 = vpack.c.b16 %v739, %v735
        %v792 = vpack.c.b16 %v744, %v740
        %v793 = vpack.c.b16 %v745, %v741
        %v794 = vpack.c.b16 %v746, %v742
        %v795 = vpack.c.b16 %v747, %v743
        %v796 = vpack.c.b16 %v752, %v748
        %v797 = vpack.c.b16 %v753, %v749
        %v798 = vpack.c.b16 %v754, %v750
        %v799 = vpack.c.b16 %v755, %v751
        %v800 = vpack.c.b16 %v760, %v756
        %v801 = vpack.c.b16 %v761, %v757
        %v802 = vpack.c.b16 %v762, %v758
        %v803 = vpack.c.b16 %v763, %v759
        %v804 = vpack.c.b16 %v768, %v764
        %v805 = vpack.c.b16 %v769, %v765
        %v806 = vpack.c.b16 %v770, %v766
        %v807 = vpack.c.b16 %v771, %v767
        %v808 = vpack.c.b16 %v776, %v772
        %v809 = vpack.c.b16 %v777, %v773
        %v810 = vpack.c.b16 %v778, %v774
        %v811 = vpack.c.b16 %v779, %v775
        %844 = vmatpush.bf16.msra.mxu0 %v808
        %845 = vmatpush.bf16.msra.mxu0 %v804
        %846 = vmatpush.bf16.msra.mxu0 %v800
        %847 = vmatpush.bf16.msra.mxu0 %v796
        %848 = vmatpush.bf16.msra.mxu0 %v792
        %849 = vmatpush.bf16.msra.mxu0 %v788
        %850 = vmatpush.bf16.msra.mxu0 %v784
        %851 = vmatpush.bf16.msra.mxu0 %v780
        %852 = vmatmul.bf16.gmra.mxu0 %v670
        %v853 = vpop.f32.mrf.mxu0
        %v854 = vadd.f32 %v676, %v853
        %v855 = vpop.f32.mrf.mxu0
        %v856 = vadd.f32 %v676, %v855
        %857 = vmatmul.bf16.gmra.mxu0 %v671
        %v858 = vpop.f32.mrf.mxu0
        %v859 = vadd.f32 %v676, %v858
        %v860 = vpop.f32.mrf.mxu0
        %v861 = vadd.f32 %v676, %v860
        %862 = vmatmul.bf16.gmra.mxu0 %v672
        %v863 = vpop.f32.mrf.mxu0
        %v864 = vadd.f32 %v676, %v863
        %v865 = vpop.f32.mrf.mxu0
        %v866 = vadd.f32 %v676, %v865
        %867 = vmatmul.bf16.gmra.mxu0 %v673
        %v868 = vpop.f32.mrf.mxu0
        %v869 = vadd.f32 %v676, %v868
        %v870 = vpop.f32.mrf.mxu0
        %v871 = vadd.f32 %v676, %v870
        %872 = vmatmul.bf16.gmra.mxu0 %v674
        %v873 = vpop.f32.mrf.mxu0
        %v874 = vadd.f32 %v676, %v873
        %v875 = vpop.f32.mrf.mxu0
        %v876 = vadd.f32 %v676, %v875
        %877 = vdwg.mxu0
        %878 = vmatpush.bf16.msra.mxu0 %v809
        %879 = vmatpush.bf16.msra.mxu0 %v805
        %880 = vmatpush.bf16.msra.mxu0 %v801
        %881 = vmatpush.bf16.msra.mxu0 %v797
        %882 = vmatpush.bf16.msra.mxu0 %v793
        %883 = vmatpush.bf16.msra.mxu0 %v789
        %884 = vmatpush.bf16.msra.mxu0 %v785
        %885 = vmatpush.bf16.msra.mxu0 %v781
        %886 = vmatmul.bf16.gmra.mxu0 %v670
        %v887 = vpop.f32.mrf.mxu0
        %v888 = vadd.f32 %v677, %v887
        %v889 = vpop.f32.mrf.mxu0
        %v890 = vadd.f32 %v677, %v889
        %891 = vmatmul.bf16.gmra.mxu0 %v671
        %v892 = vpop.f32.mrf.mxu0
        %v893 = vadd.f32 %v677, %v892
        %v894 = vpop.f32.mrf.mxu0
        %v895 = vadd.f32 %v677, %v894
        %896 = vmatmul.bf16.gmra.mxu0 %v672
        %v897 = vpop.f32.mrf.mxu0
        %v898 = vadd.f32 %v677, %v897
        %v899 = vpop.f32.mrf.mxu0
        %v900 = vadd.f32 %v677, %v899
        %901 = vmatmul.bf16.gmra.mxu0 %v673
        %v902 = vpop.f32.mrf.mxu0
        %v903 = vadd.f32 %v677, %v902
        %v904 = vpop.f32.mrf.mxu0
        %v905 = vadd.f32 %v677, %v904
        %906 = vmatmul.bf16.gmra.mxu0 %v674
        %v907 = vpop.f32.mrf.mxu0
        %v908 = vadd.f32 %v677, %v907
        %v909 = vpop.f32.mrf.mxu0
        %v910 = vadd.f32 %v677, %v909
        %911 = vdwg.mxu0
        %912 = vmatpush.bf16.msra.mxu0 %v810
        %913 = vmatpush.bf16.msra.mxu0 %v806
        %914 = vmatpush.bf16.msra.mxu0 %v802
        %915 = vmatpush.bf16.msra.mxu0 %v798
        %916 = vmatpush.bf16.msra.mxu0 %v794
        %917 = vmatpush.bf16.msra.mxu0 %v790
        %918 = vmatpush.bf16.msra.mxu0 %v786
        %919 = vmatpush.bf16.msra.mxu0 %v782
        %920 = vmatmul.bf16.gmra.mxu0 %v670
        %v921 = vpop.f32.mrf.mxu0
        %v922 = vadd.f32 %v678, %v921
        %v923 = vpop.f32.mrf.mxu0
        %v924 = vadd.f32 %v678, %v923
        %925 = vmatmul.bf16.gmra.mxu0 %v671
        %v926 = vpop.f32.mrf.mxu0
        %v927 = vadd.f32 %v678, %v926
        %v928 = vpop.f32.mrf.mxu0
        %v929 = vadd.f32 %v678, %v928
        %930 = vmatmul.bf16.gmra.mxu0 %v672
        %v931 = vpop.f32.mrf.mxu0
        %v932 = vadd.f32 %v678, %v931
        %v933 = vpop.f32.mrf.mxu0
        %v934 = vadd.f32 %v678, %v933
        %935 = vmatmul.bf16.gmra.mxu0 %v673
        %v936 = vpop.f32.mrf.mxu0
        %v937 = vadd.f32 %v678, %v936
        %v938 = vpop.f32.mrf.mxu0
        %v939 = vadd.f32 %v678, %v938
        %940 = vmatmul.bf16.gmra.mxu0 %v674
        %v941 = vpop.f32.mrf.mxu0
        %v942 = vadd.f32 %v678, %v941
        %v943 = vpop.f32.mrf.mxu0
        %v944 = vadd.f32 %v678, %v943
        %945 = vdwg.mxu0
        %946 = vmatpush.bf16.msra.mxu0 %v811
        %947 = vmatpush.bf16.msra.mxu0 %v807
        %948 = vmatpush.bf16.msra.mxu0 %v803
        %949 = vmatpush.bf16.msra.mxu0 %v799
        %950 = vmatpush.bf16.msra.mxu0 %v795
        %951 = vmatpush.bf16.msra.mxu0 %v791
        %952 = vmatpush.bf16.msra.mxu0 %v787
        %953 = vmatpush.bf16.msra.mxu0 %v783
        %954 = vmatmul.bf16.gmra.mxu0 %v670
        %v955 = vpop.f32.mrf.mxu0
        %v956 = vadd.f32 %v679, %v955
        %v957 = vpop.f32.mrf.mxu0
        %v958 = vadd.f32 %v679, %v957
        %959 = vmatmul.bf16.gmra.mxu0 %v671
        %v960 = vpop.f32.mrf.mxu0
        %v961 = vadd.f32 %v679, %v960
        %v962 = vpop.f32.mrf.mxu0
        %v963 = vadd.f32 %v679, %v962
        %964 = vmatmul.bf16.gmra.mxu0 %v672
        %v965 = vpop.f32.mrf.mxu0
        %v966 = vadd.f32 %v679, %v965
        %v967 = vpop.f32.mrf.mxu0
        %v968 = vadd.f32 %v679, %v967
        %969 = vmatmul.bf16.gmra.mxu0 %v673
        %v970 = vpop.f32.mrf.mxu0
        %v971 = vadd.f32 %v679, %v970
        %v972 = vpop.f32.mrf.mxu0
        %v973 = vadd.f32 %v679, %v972
        %974 = vmatmul.bf16.gmra.mxu0 %v674
        %v975 = vpop.f32.mrf.mxu0
        %v976 = vadd.f32 %v679, %v975
        %v977 = vpop.f32.mrf.mxu0
        %v978 = vadd.f32 %v679, %v977
        %979 = vdwg.mxu0
        %v980 = vadd.f32 %v854, %v888
        %v981 = vadd.f32 %v980, %v922
        %v982 = vadd.f32 %v981, %v956
        %983 = vadd.xlane.f32.xlu0 %v982
        %v984 = vpop.xlane.xlu0 %983
        %v985 = vadd.f32 %v856, %v890
        %v986 = vadd.f32 %v985, %v924
        %v987 = vadd.f32 %v986, %v958
        %988 = vadd.xlane.f32.xlu0 %v987
        %v989 = vpop.xlane.xlu0 %988
        %v990 = vadd.f32 %v859, %v893
        %v991 = vadd.f32 %v990, %v927
        %v992 = vadd.f32 %v991, %v961
        %993 = vadd.xlane.f32.xlu0 %v992
        %v994 = vpop.xlane.xlu0 %993
        %v995 = vadd.f32 %v861, %v895
        %v996 = vadd.f32 %v995, %v929
        %v997 = vadd.f32 %v996, %v963
        %998 = vadd.xlane.f32.xlu0 %v997
        %v999 = vpop.xlane.xlu0 %998
        %v1000 = vadd.f32 %v864, %v898
        %v1001 = vadd.f32 %v1000, %v932
        %v1002 = vadd.f32 %v1001, %v966
        %1003 = vadd.xlane.f32.xlu0 %v1002
        %v1004 = vpop.xlane.xlu0 %1003
        %v1005 = vadd.f32 %v866, %v900
        %v1006 = vadd.f32 %v1005, %v934
        %v1007 = vadd.f32 %v1006, %v968
        %1008 = vadd.xlane.f32.xlu0 %v1007
        %v1009 = vpop.xlane.xlu0 %1008
        %v1010 = vadd.f32 %v869, %v903
        %v1011 = vadd.f32 %v1010, %v937
        %v1012 = vadd.f32 %v1011, %v971
        %1013 = vadd.xlane.f32.xlu0 %v1012
        %v1014 = vpop.xlane.xlu0 %1013
        %v1015 = vadd.f32 %v871, %v905
        %v1016 = vadd.f32 %v1015, %v939
        %v1017 = vadd.f32 %v1016, %v973
        %1018 = vadd.xlane.f32.xlu0 %v1017
        %v1019 = vpop.xlane.xlu0 %1018
        %v1020 = vadd.f32 %v874, %v908
        %v1021 = vadd.f32 %v1020, %v942
        %v1022 = vadd.f32 %v1021, %v976
        %1023 = vadd.xlane.f32.xlu0 %v1022
        %v1024 = vpop.xlane.xlu0 %1023
        %v1025 = vadd.f32 %v876, %v910
        %v1026 = vadd.f32 %v1025, %v944
        %v1027 = vadd.f32 %v1026, %v978
        %1028 = vadd.xlane.f32.xlu0 %v1027
        %v1029 = vpop.xlane.xlu0 %1028
        %v1030 = vrcp.pop 512.0
        %v1031 = vmul.f32 512.0, %v1030
        %v1032 = vsub.f32 1.0, %v1031
        %v1033 = vmul.f32 %v1030, %v1032
        %v1034 = vadd.f32 %v1030, %v1033
        %vm1035 = vweird.f32 %v1030
        %v1036 = vsel %vm1035, %v1030, %v1034
        %v1037 = vmul.f32 %v984, %v1036
        %v1038 = vmul.f32 %v989, %v1036
        %v1039 = vmul.f32 %v994, %v1036
        %v1040 = vmul.f32 %v999, %v1036
        %v1041 = vmul.f32 %v1004, %v1036
        %v1042 = vmul.f32 %v1009, %v1036
        %v1043 = vmul.f32 %v1014, %v1036
        %v1044 = vmul.f32 %v1019, %v1036
        %v1045 = vmul.f32 %v1024, %v1036
        %v1046 = vmul.f32 %v1029, %v1036
        %v1047 = vsub.f32 %v854, %v1037
        %v1048 = vsub.f32 %v888, %v1037
        %v1049 = vsub.f32 %v922, %v1037
        %v1050 = vsub.f32 %v956, %v1037
        %v1051 = vsub.f32 %v856, %v1038
        %v1052 = vsub.f32 %v890, %v1038
        %v1053 = vsub.f32 %v924, %v1038
        %v1054 = vsub.f32 %v958, %v1038
        %v1055 = vsub.f32 %v859, %v1039
        %v1056 = vsub.f32 %v893, %v1039
        %v1057 = vsub.f32 %v927, %v1039
        %v1058 = vsub.f32 %v961, %v1039
        %v1059 = vsub.f32 %v861, %v1040
        %v1060 = vsub.f32 %v895, %v1040
        %v1061 = vsub.f32 %v929, %v1040
        %v1062 = vsub.f32 %v963, %v1040
        %v1063 = vsub.f32 %v864, %v1041
        %v1064 = vsub.f32 %v898, %v1041
        %v1065 = vsub.f32 %v932, %v1041
        %v1066 = vsub.f32 %v966, %v1041
        %v1067 = vsub.f32 %v866, %v1042
        %v1068 = vsub.f32 %v900, %v1042
        %v1069 = vsub.f32 %v934, %v1042
        %v1070 = vsub.f32 %v968, %v1042
        %v1071 = vsub.f32 %v869, %v1043
        %v1072 = vsub.f32 %v903, %v1043
        %v1073 = vsub.f32 %v937, %v1043
        %v1074 = vsub.f32 %v971, %v1043
        %v1075 = vsub.f32 %v871, %v1044
        %v1076 = vsub.f32 %v905, %v1044
        %v1077 = vsub.f32 %v939, %v1044
        %v1078 = vsub.f32 %v973, %v1044
        %v1079 = vsub.f32 %v874, %v1045
        %v1080 = vsub.f32 %v908, %v1045
        %v1081 = vsub.f32 %v942, %v1045
        %v1082 = vsub.f32 %v976, %v1045
        %v1083 = vsub.f32 %v876, %v1046
        %v1084 = vsub.f32 %v910, %v1046
        %v1085 = vsub.f32 %v944, %v1046
        %v1086 = vsub.f32 %v978, %v1046
        %v1087 = vmul.f32 %v1047, %v1047
        %v1088 = vmul.f32 %v1048, %v1048
        %v1089 = vmul.f32 %v1049, %v1049
        %v1090 = vmul.f32 %v1050, %v1050
        %v1091 = vmul.f32 %v1051, %v1051
        %v1092 = vmul.f32 %v1052, %v1052
        %v1093 = vmul.f32 %v1053, %v1053
        %v1094 = vmul.f32 %v1054, %v1054
        %v1095 = vmul.f32 %v1055, %v1055
        %v1096 = vmul.f32 %v1056, %v1056
        %v1097 = vmul.f32 %v1057, %v1057
        %v1098 = vmul.f32 %v1058, %v1058
        %v1099 = vmul.f32 %v1059, %v1059
        %v1100 = vmul.f32 %v1060, %v1060
        %v1101 = vmul.f32 %v1061, %v1061
        %v1102 = vmul.f32 %v1062, %v1062
        %v1103 = vmul.f32 %v1063, %v1063
        %v1104 = vmul.f32 %v1064, %v1064
        %v1105 = vmul.f32 %v1065, %v1065
        %v1106 = vmul.f32 %v1066, %v1066
        %v1107 = vmul.f32 %v1067, %v1067
        %v1108 = vmul.f32 %v1068, %v1068
        %v1109 = vmul.f32 %v1069, %v1069
        %v1110 = vmul.f32 %v1070, %v1070
        %v1111 = vmul.f32 %v1071, %v1071
        %v1112 = vmul.f32 %v1072, %v1072
        %v1113 = vmul.f32 %v1073, %v1073
        %v1114 = vmul.f32 %v1074, %v1074
        %v1115 = vmul.f32 %v1075, %v1075
        %v1116 = vmul.f32 %v1076, %v1076
        %v1117 = vmul.f32 %v1077, %v1077
        %v1118 = vmul.f32 %v1078, %v1078
        %v1119 = vmul.f32 %v1079, %v1079
        %v1120 = vmul.f32 %v1080, %v1080
        %v1121 = vmul.f32 %v1081, %v1081
        %v1122 = vmul.f32 %v1082, %v1082
        %v1123 = vmul.f32 %v1083, %v1083
        %v1124 = vmul.f32 %v1084, %v1084
        %v1125 = vmul.f32 %v1085, %v1085
        %v1126 = vmul.f32 %v1086, %v1086
        %v1127 = vadd.f32 %v1087, %v1088
        %v1128 = vadd.f32 %v1127, %v1089
        %v1129 = vadd.f32 %v1128, %v1090
        %1130 = vadd.xlane.f32.xlu0 %v1129
        %v1131 = vpop.xlane.xlu0 %1130
        %v1132 = vadd.f32 %v1091, %v1092
        %v1133 = vadd.f32 %v1132, %v1093
        %v1134 = vadd.f32 %v1133, %v1094
        %1135 = vadd.xlane.f32.xlu0 %v1134
        %v1136 = vpop.xlane.xlu0 %1135
        %v1137 = vadd.f32 %v1095, %v1096
        %v1138 = vadd.f32 %v1137, %v1097
        %v1139 = vadd.f32 %v1138, %v1098
        %1140 = vadd.xlane.f32.xlu0 %v1139
        %v1141 = vpop.xlane.xlu0 %1140
        %v1142 = vadd.f32 %v1099, %v1100
        %v1143 = vadd.f32 %v1142, %v1101
        %v1144 = vadd.f32 %v1143, %v1102
        %1145 = vadd.xlane.f32.xlu0 %v1144
        %v1146 = vpop.xlane.xlu0 %1145
        %v1147 = vadd.f32 %v1103, %v1104
        %v1148 = vadd.f32 %v1147, %v1105
        %v1149 = vadd.f32 %v1148, %v1106
        %1150 = vadd.xlane.f32.xlu0 %v1149
        %v1151 = vpop.xlane.xlu0 %1150
        %v1152 = vadd.f32 %v1107, %v1108
        %v1153 = vadd.f32 %v1152, %v1109
        %v1154 = vadd.f32 %v1153, %v1110
        %1155 = vadd.xlane.f32.xlu0 %v1154
        %v1156 = vpop.xlane.xlu0 %1155
        %v1157 = vadd.f32 %v1111, %v1112
        %v1158 = vadd.f32 %v1157, %v1113
        %v1159 = vadd.f32 %v1158, %v1114
        %1160 = vadd.xlane.f32.xlu0 %v1159
        %v1161 = vpop.xlane.xlu0 %1160
        %v1162 = vadd.f32 %v1115, %v1116
        %v1163 = vadd.f32 %v1162, %v1117
        %v1164 = vadd.f32 %v1163, %v1118
        %1165 = vadd.xlane.f32.xlu0 %v1164
        %v1166 = vpop.xlane.xlu0 %1165
        %v1167 = vadd.f32 %v1119, %v1120
        %v1168 = vadd.f32 %v1167, %v1121
        %v1169 = vadd.f32 %v1168, %v1122
        %1170 = vadd.xlane.f32.xlu0 %v1169
        %v1171 = vpop.xlane.xlu0 %1170
        %v1172 = vadd.f32 %v1123, %v1124
        %v1173 = vadd.f32 %v1172, %v1125
        %v1174 = vadd.f32 %v1173, %v1126
        %1175 = vadd.xlane.f32.xlu0 %v1174
        %v1176 = vpop.xlane.xlu0 %1175
        %v1177 = vmul.f32 %v1131, %v1036
        %v1178 = vmul.f32 %v1136, %v1036
        %v1179 = vmul.f32 %v1141, %v1036
        %v1180 = vmul.f32 %v1146, %v1036
        %v1181 = vmul.f32 %v1151, %v1036
        %v1182 = vmul.f32 %v1156, %v1036
        %v1183 = vmul.f32 %v1161, %v1036
        %v1184 = vmul.f32 %v1166, %v1036
        %v1185 = vmul.f32 %v1171, %v1036
        %v1186 = vmul.f32 %v1176, %v1036
        %v1187 = vadd.f32 %v1177, 1e-05
        %v1188 = vadd.f32 %v1178, 1e-05
        %v1189 = vadd.f32 %v1179, 1e-05
        %v1190 = vadd.f32 %v1180, 1e-05
        %v1191 = vadd.f32 %v1181, 1e-05
        %v1192 = vadd.f32 %v1182, 1e-05
        %v1193 = vadd.f32 %v1183, 1e-05
        %v1194 = vadd.f32 %v1184, 1e-05
        %v1195 = vadd.f32 %v1185, 1e-05
        %v1196 = vadd.f32 %v1186, 1e-05
        %v1197 = vrsqrt.pop %v1187
        %v1198 = vmul.f32 %v1197, %v1187
        %v1199 = vmul.f32 %v1198, %v1197
        %v1200 = vmul.f32 0.5, %v1199
        %v1201 = vsub.f32 1.5, %v1200
        %v1202 = vmul.f32 %v1197, %v1201
        %vm1203 = vweird.f32 %v1187
        %vm1204 = vweird.f32 %v1197
        %vm1205 = vmor %vm1203, %vm1204
        %v1206 = vsel %vm1205, %v1197, %v1202
        %v1207 = vrsqrt.pop %v1188
        %v1208 = vmul.f32 %v1207, %v1188
        %v1209 = vmul.f32 %v1208, %v1207
        %v1210 = vmul.f32 0.5, %v1209
        %v1211 = vsub.f32 1.5, %v1210
        %v1212 = vmul.f32 %v1207, %v1211
        %vm1213 = vweird.f32 %v1188
        %vm1214 = vweird.f32 %v1207
        %vm1215 = vmor %vm1213, %vm1214
        %v1216 = vsel %vm1215, %v1207, %v1212
        %v1217 = vrsqrt.pop %v1189
        %v1218 = vmul.f32 %v1217, %v1189
        %v1219 = vmul.f32 %v1218, %v1217
        %v1220 = vmul.f32 0.5, %v1219
        %v1221 = vsub.f32 1.5, %v1220
        %v1222 = vmul.f32 %v1217, %v1221
        %vm1223 = vweird.f32 %v1189
        %vm1224 = vweird.f32 %v1217
        %vm1225 = vmor %vm1223, %vm1224
        %v1226 = vsel %vm1225, %v1217, %v1222
        %v1227 = vrsqrt.pop %v1190
        %v1228 = vmul.f32 %v1227, %v1190
        %v1229 = vmul.f32 %v1228, %v1227
        %v1230 = vmul.f32 0.5, %v1229
        %v1231 = vsub.f32 1.5, %v1230
        %v1232 = vmul.f32 %v1227, %v1231
        %vm1233 = vweird.f32 %v1190
        %vm1234 = vweird.f32 %v1227
        %vm1235 = vmor %vm1233, %vm1234
        %v1236 = vsel %vm1235, %v1227, %v1232
        %v1237 = vrsqrt.pop %v1191
        %v1238 = vmul.f32 %v1237, %v1191
        %v1239 = vmul.f32 %v1238, %v1237
        %v1240 = vmul.f32 0.5, %v1239
        %v1241 = vsub.f32 1.5, %v1240
        %v1242 = vmul.f32 %v1237, %v1241
        %vm1243 = vweird.f32 %v1191
        %vm1244 = vweird.f32 %v1237
        %vm1245 = vmor %vm1243, %vm1244
        %v1246 = vsel %vm1245, %v1237, %v1242
        %v1247 = vrsqrt.pop %v1192
        %v1248 = vmul.f32 %v1247, %v1192
        %v1249 = vmul.f32 %v1248, %v1247
        %v1250 = vmul.f32 0.5, %v1249
        %v1251 = vsub.f32 1.5, %v1250
        %v1252 = vmul.f32 %v1247, %v1251
        %vm1253 = vweird.f32 %v1192
        %vm1254 = vweird.f32 %v1247
        %vm1255 = vmor %vm1253, %vm1254
        %v1256 = vsel %vm1255, %v1247, %v1252
        %v1257 = vrsqrt.pop %v1193
        %v1258 = vmul.f32 %v1257, %v1193
        %v1259 = vmul.f32 %v1258, %v1257
        %v1260 = vmul.f32 0.5, %v1259
        %v1261 = vsub.f32 1.5, %v1260
        %v1262 = vmul.f32 %v1257, %v1261
        %vm1263 = vweird.f32 %v1193
        %vm1264 = vweird.f32 %v1257
        %vm1265 = vmor %vm1263, %vm1264
        %v1266 = vsel %vm1265, %v1257, %v1262
        %v1267 = vrsqrt.pop %v1194
        %v1268 = vmul.f32 %v1267, %v1194
        %v1269 = vmul.f32 %v1268, %v1267
        %v1270 = vmul.f32 0.5, %v1269
        %v1271 = vsub.f32 1.5, %v1270
        %v1272 = vmul.f32 %v1267, %v1271
        %vm1273 = vweird.f32 %v1194
        %vm1274 = vweird.f32 %v1267
        %vm1275 = vmor %vm1273, %vm1274
        %v1276 = vsel %vm1275, %v1267, %v1272
        %v1277 = vrsqrt.pop %v1195
        %v1278 = vmul.f32 %v1277, %v1195
        %v1279 = vmul.f32 %v1278, %v1277
        %v1280 = vmul.f32 0.5, %v1279
        %v1281 = vsub.f32 1.5, %v1280
        %v1282 = vmul.f32 %v1277, %v1281
        %vm1283 = vweird.f32 %v1195
        %vm1284 = vweird.f32 %v1277
        %vm1285 = vmor %vm1283, %vm1284
        %v1286 = vsel %vm1285, %v1277, %v1282
        %v1287 = vrsqrt.pop %v1196
        %v1288 = vmul.f32 %v1287, %v1196
        %v1289 = vmul.f32 %v1288, %v1287
        %v1290 = vmul.f32 0.5, %v1289
        %v1291 = vsub.f32 1.5, %v1290
        %v1292 = vmul.f32 %v1287, %v1291
        %vm1293 = vweird.f32 %v1196
        %vm1294 = vweird.f32 %v1287
        %vm1295 = vmor %vm1293, %vm1294
        %v1296 = vsel %vm1295, %v1287, %v1292
        %v1297 = vmul.f32 %v1047, %v1206
        %v1298 = vmul.f32 %v1048, %v1206
        %v1299 = vmul.f32 %v1049, %v1206
        %v1300 = vmul.f32 %v1050, %v1206
        %v1301 = vmul.f32 %v1051, %v1216
        %v1302 = vmul.f32 %v1052, %v1216
        %v1303 = vmul.f32 %v1053, %v1216
        %v1304 = vmul.f32 %v1054, %v1216
        %v1305 = vmul.f32 %v1055, %v1226
        %v1306 = vmul.f32 %v1056, %v1226
        %v1307 = vmul.f32 %v1057, %v1226
        %v1308 = vmul.f32 %v1058, %v1226
        %v1309 = vmul.f32 %v1059, %v1236
        %v1310 = vmul.f32 %v1060, %v1236
        %v1311 = vmul.f32 %v1061, %v1236
        %v1312 = vmul.f32 %v1062, %v1236
        %v1313 = vmul.f32 %v1063, %v1246
        %v1314 = vmul.f32 %v1064, %v1246
        %v1315 = vmul.f32 %v1065, %v1246
        %v1316 = vmul.f32 %v1066, %v1246
        %v1317 = vmul.f32 %v1067, %v1256
        %v1318 = vmul.f32 %v1068, %v1256
        %v1319 = vmul.f32 %v1069, %v1256
        %v1320 = vmul.f32 %v1070, %v1256
        %v1321 = vmul.f32 %v1071, %v1266
        %v1322 = vmul.f32 %v1072, %v1266
        %v1323 = vmul.f32 %v1073, %v1266
        %v1324 = vmul.f32 %v1074, %v1266
        %v1325 = vmul.f32 %v1075, %v1276
        %v1326 = vmul.f32 %v1076, %v1276
        %v1327 = vmul.f32 %v1077, %v1276
        %v1328 = vmul.f32 %v1078, %v1276
        %v1329 = vmul.f32 %v1079, %v1286
        %v1330 = vmul.f32 %v1080, %v1286
        %v1331 = vmul.f32 %v1081, %v1286
        %v1332 = vmul.f32 %v1082, %v1286
        %v1333 = vmul.f32 %v1083, %v1296
        %v1334 = vmul.f32 %v1084, %v1296
        %v1335 = vmul.f32 %v1085, %v1296
        %v1336 = vmul.f32 %v1086, %v1296
        %v1338 = vperm.slane %v668, 0
        %v1339 = vperm.slane %v668, 1
        %v1340 = vperm.slane %v668, 2
        %v1341 = vperm.slane %v668, 3
        %v1346 = vmul.f32 %v1297, %v1338
        %v1347 = vmul.f32 %v1298, %v1339
        %v1348 = vmul.f32 %v1299, %v1340
        %v1349 = vmul.f32 %v1300, %v1341
        %v1350 = vmul.f32 %v1301, %v1338
        %v1351 = vmul.f32 %v1302, %v1339
        %v1352 = vmul.f32 %v1303, %v1340
        %v1353 = vmul.f32 %v1304, %v1341
        %v1354 = vmul.f32 %v1305, %v1338
        %v1355 = vmul.f32 %v1306, %v1339
        %v1356 = vmul.f32 %v1307, %v1340
        %v1357 = vmul.f32 %v1308, %v1341
        %v1358 = vmul.f32 %v1309, %v1338
        %v1359 = vmul.f32 %v1310, %v1339
        %v1360 = vmul.f32 %v1311, %v1340
        %v1361 = vmul.f32 %v1312, %v1341
        %v1362 = vmul.f32 %v1313, %v1338
        %v1363 = vmul.f32 %v1314, %v1339
        %v1364 = vmul.f32 %v1315, %v1340
        %v1365 = vmul.f32 %v1316, %v1341
        %v1366 = vmul.f32 %v1317, %v1338
        %v1367 = vmul.f32 %v1318, %v1339
        %v1368 = vmul.f32 %v1319, %v1340
        %v1369 = vmul.f32 %v1320, %v1341
        %v1370 = vmul.f32 %v1321, %v1338
        %v1371 = vmul.f32 %v1322, %v1339
        %v1372 = vmul.f32 %v1323, %v1340
        %v1373 = vmul.f32 %v1324, %v1341
        %v1374 = vmul.f32 %v1325, %v1338
        %v1375 = vmul.f32 %v1326, %v1339
        %v1376 = vmul.f32 %v1327, %v1340
        %v1377 = vmul.f32 %v1328, %v1341
        %v1378 = vmul.f32 %v1329, %v1338
        %v1379 = vmul.f32 %v1330, %v1339
        %v1380 = vmul.f32 %v1331, %v1340
        %v1381 = vmul.f32 %v1332, %v1341
        %v1382 = vmul.f32 %v1333, %v1338
        %v1383 = vmul.f32 %v1334, %v1339
        %v1384 = vmul.f32 %v1335, %v1340
        %v1385 = vmul.f32 %v1336, %v1341
        %v1387 = vperm.slane %v669, 0
        %v1388 = vperm.slane %v669, 1
        %v1389 = vperm.slane %v669, 2
        %v1390 = vperm.slane %v669, 3
        %v1395 = vadd.f32 %v1346, %v1387
        %v1396 = vadd.f32 %v1347, %v1388
        %v1397 = vadd.f32 %v1348, %v1389
        %v1398 = vadd.f32 %v1349, %v1390
        %v1399 = vadd.f32 %v1350, %v1387
        %v1400 = vadd.f32 %v1351, %v1388
        %v1401 = vadd.f32 %v1352, %v1389
        %v1402 = vadd.f32 %v1353, %v1390
        %v1403 = vadd.f32 %v1354, %v1387
        %v1404 = vadd.f32 %v1355, %v1388
        %v1405 = vadd.f32 %v1356, %v1389
        %v1406 = vadd.f32 %v1357, %v1390
        %v1407 = vadd.f32 %v1358, %v1387
        %v1408 = vadd.f32 %v1359, %v1388
        %v1409 = vadd.f32 %v1360, %v1389
        %v1410 = vadd.f32 %v1361, %v1390
        %v1411 = vadd.f32 %v1362, %v1387
        %v1412 = vadd.f32 %v1363, %v1388
        %v1413 = vadd.f32 %v1364, %v1389
        %v1414 = vadd.f32 %v1365, %v1390
        %v1415 = vadd.f32 %v1366, %v1387
        %v1416 = vadd.f32 %v1367, %v1388
        %v1417 = vadd.f32 %v1368, %v1389
        %v1418 = vadd.f32 %v1369, %v1390
        %v1419 = vadd.f32 %v1370, %v1387
        %v1420 = vadd.f32 %v1371, %v1388
        %v1421 = vadd.f32 %v1372, %v1389
        %v1422 = vadd.f32 %v1373, %v1390
        %v1423 = vadd.f32 %v1374, %v1387
        %v1424 = vadd.f32 %v1375, %v1388
        %v1425 = vadd.f32 %v1376, %v1389
        %v1426 = vadd.f32 %v1377, %v1390
        %v1427 = vadd.f32 %v1378, %v1387
        %v1428 = vadd.f32 %v1379, %v1388
        %v1429 = vadd.f32 %v1380, %v1389
        %v1430 = vadd.f32 %v1381, %v1390
        %v1431 = vadd.f32 %v1382, %v1387
        %v1432 = vadd.f32 %v1383, %v1388
        %v1433 = vadd.f32 %v1384, %v1389
        %v1434 = vadd.f32 %v1385, %v1390
        %v1435 = vmax.f32 %v1395, 0.0
        %v1436 = vmax.f32 %v1396, 0.0
        %v1437 = vmax.f32 %v1397, 0.0
        %v1438 = vmax.f32 %v1398, 0.0
        %v1439 = vmax.f32 %v1399, 0.0
        %v1440 = vmax.f32 %v1400, 0.0
        %v1441 = vmax.f32 %v1401, 0.0
        %v1442 = vmax.f32 %v1402, 0.0
        %v1443 = vmax.f32 %v1403, 0.0
        %v1444 = vmax.f32 %v1404, 0.0
        %v1445 = vmax.f32 %v1405, 0.0
        %v1446 = vmax.f32 %v1406, 0.0
        %v1447 = vmax.f32 %v1407, 0.0
        %v1448 = vmax.f32 %v1408, 0.0
        %v1449 = vmax.f32 %v1409, 0.0
        %v1450 = vmax.f32 %v1410, 0.0
        %v1451 = vmax.f32 %v1411, 0.0
        %v1452 = vmax.f32 %v1412, 0.0
        %v1453 = vmax.f32 %v1413, 0.0
        %v1454 = vmax.f32 %v1414, 0.0
        %v1455 = vmax.f32 %v1415, 0.0
        %v1456 = vmax.f32 %v1416, 0.0
        %v1457 = vmax.f32 %v1417, 0.0
        %v1458 = vmax.f32 %v1418, 0.0
        %v1459 = vmax.f32 %v1419, 0.0
        %v1460 = vmax.f32 %v1420, 0.0
        %v1461 = vmax.f32 %v1421, 0.0
        %v1462 = vmax.f32 %v1422, 0.0
        %v1463 = vmax.f32 %v1423, 0.0
        %v1464 = vmax.f32 %v1424, 0.0
        %v1465 = vmax.f32 %v1425, 0.0
        %v1466 = vmax.f32 %v1426, 0.0
        %v1467 = vmax.f32 %v1427, 0.0
        %v1468 = vmax.f32 %v1428, 0.0
        %v1469 = vmax.f32 %v1429, 0.0
        %v1470 = vmax.f32 %v1430, 0.0
        %v1471 = vmax.f32 %v1431, 0.0
        %v1472 = vmax.f32 %v1432, 0.0
        %v1473 = vmax.f32 %v1433, 0.0
        %v1474 = vmax.f32 %v1434, 0.0
        %v1475 = vld [vmem:[%s5] sm:$0xff]
        %v1476 = vld [vmem:[%s5 + $0x8] sm:$0xff]
        %v1477 = vld [vmem:[%s5 + $0x10] sm:$0xff]
        %v1478 = vld [vmem:[%s5 + $0x18] sm:$0xff]
        %v1479 = vld [vmem:[%s5 + $0x20] sm:$0xff]
        %v1480 = vld [vmem:[%s5 + $0x28] sm:$0xff]
        %v1481 = vld [vmem:[%s5 + $0x30] sm:$0xff]
        %v1482 = vld [vmem:[%s5 + $0x38] sm:$0xff]
        %v1483 = vld [vmem:[%s5 + $0x40] sm:$0xff]
        %v1484 = vld [vmem:[%s5 + $0x48] sm:$0xff]
        %v1485 = vld [vmem:[%s5 + $0x50] sm:$0xff]
        %v1486 = vld [vmem:[%s5 + $0x58] sm:$0xff]
        %v1487 = vld [vmem:[%s5 + $0x60] sm:$0xff]
        %v1488 = vld [vmem:[%s5 + $0x68] sm:$0xff]
        %v1489 = vld [vmem:[%s5 + $0x70] sm:$0xff]
        %v1490 = vld [vmem:[%s5 + $0x78] sm:$0xff]
        %v1491 = vld [vmem:[%s5 + $0x80] sm:$0xff]
        %v1492 = vld [vmem:[%s5 + $0x88] sm:$0xff]
        %v1493 = vld [vmem:[%s5 + $0x90] sm:$0xff]
        %v1494 = vld [vmem:[%s5 + $0x98] sm:$0xff]
        %v1495 = vld [vmem:[%s5 + $0xa0] sm:$0xff]
        %v1496 = vld [vmem:[%s5 + $0xa8] sm:$0xff]
        %v1497 = vld [vmem:[%s5 + $0xb0] sm:$0xff]
        %v1498 = vld [vmem:[%s5 + $0xb8] sm:$0xff]
        %v1499 = vld [vmem:[%s5 + $0xc0] sm:$0xff]
        %v1500 = vld [vmem:[%s5 + $0xc8] sm:$0xff]
        %v1501 = vld [vmem:[%s5 + $0xd0] sm:$0xff]
        %v1502 = vld [vmem:[%s5 + $0xd8] sm:$0xff]
        %v1503 = vld [vmem:[%s5 + $0xe0] sm:$0xff]
        %v1504 = vld [vmem:[%s5 + $0xe8] sm:$0xff]
        %v1505 = vld [vmem:[%s5 + $0xf0] sm:$0xff]
        %v1506 = vld [vmem:[%s5 + $0xf8] sm:$0xff]
        %v1507 = vld [vmem:[%s5 + $0x100] sm:$0xff]
        %v1508 = vld [vmem:[%s5 + $0x108] sm:$0xff]
        %v1509 = vld [vmem:[%s5 + $0x110] sm:$0xff]
        %v1510 = vld [vmem:[%s5 + $0x118] sm:$0xff]
        %v1511 = vld [vmem:[%s5 + $0x120] sm:$0xff]
        %v1512 = vld [vmem:[%s5 + $0x128] sm:$0xff]
        %v1513 = vld [vmem:[%s5 + $0x130] sm:$0xff]
        %v1514 = vld [vmem:[%s5 + $0x138] sm:$0xff]
        %v1515 = vld [vmem:[%s5 + $0x140] sm:$0xff]
        %v1516 = vld [vmem:[%s5 + $0x148] sm:$0xff]
        %v1517 = vld [vmem:[%s5 + $0x150] sm:$0xff]
        %v1518 = vld [vmem:[%s5 + $0x158] sm:$0xff]
        %v1519 = vld [vmem:[%s5 + $0x160] sm:$0xff]
        %v1520 = vld [vmem:[%s5 + $0x168] sm:$0xff]
        %v1521 = vld [vmem:[%s5 + $0x170] sm:$0xff]
        %v1522 = vld [vmem:[%s5 + $0x178] sm:$0xff]
        %v1523 = vld [vmem:[%s5 + $0x180] sm:$0xff]
        %v1524 = vld [vmem:[%s5 + $0x188] sm:$0xff]
        %v1525 = vld [vmem:[%s5 + $0x190] sm:$0xff]
        %v1526 = vld [vmem:[%s5 + $0x198] sm:$0xff]
        %v1527 = vld [vmem:[%s5 + $0x1a0] sm:$0xff]
        %v1528 = vld [vmem:[%s5 + $0x1a8] sm:$0xff]
        %v1529 = vld [vmem:[%s5 + $0x1b0] sm:$0xff]
        %v1530 = vld [vmem:[%s5 + $0x1b8] sm:$0xff]
        %v1531 = vld [vmem:[%s5 + $0x1c0] sm:$0xff]
        %v1532 = vld [vmem:[%s5 + $0x1c8] sm:$0xff]
        %v1533 = vld [vmem:[%s5 + $0x1d0] sm:$0xff]
        %v1534 = vld [vmem:[%s5 + $0x1d8] sm:$0xff]
        %v1535 = vld [vmem:[%s5 + $0x1e0] sm:$0xff]
        %v1536 = vld [vmem:[%s5 + $0x1e8] sm:$0xff]
        %v1537 = vld [vmem:[%s5 + $0x1f0] sm:$0xff]
        %v1538 = vld [vmem:[%s5 + $0x1f8] sm:$0xff]
        %v1539 = vld [vmem:[%s6] sm:$0x3]
        %v1540 = vld [vmem:[%s7] sm:$0x3]
        %v1541 = vld [vmem:[%s8] sm:$0x3]
        %v1542 = vpack.c.bf16 %v1439, %v1435
        %v1543 = vpack.c.bf16 %v1440, %v1436
        %v1544 = vpack.c.bf16 %v1441, %v1437
        %v1545 = vpack.c.bf16 %v1442, %v1438
        %v1546 = vpack.c.bf16 %v1447, %v1443
        %v1547 = vpack.c.bf16 %v1448, %v1444
        %v1548 = vpack.c.bf16 %v1449, %v1445
        %v1549 = vpack.c.bf16 %v1450, %v1446
        %v1550 = vpack.c.bf16 %v1455, %v1451
        %v1551 = vpack.c.bf16 %v1456, %v1452
        %v1552 = vpack.c.bf16 %v1457, %v1453
        %v1553 = vpack.c.bf16 %v1458, %v1454
        %v1554 = vpack.c.bf16 %v1463, %v1459
        %v1555 = vpack.c.bf16 %v1464, %v1460
        %v1556 = vpack.c.bf16 %v1465, %v1461
        %v1557 = vpack.c.bf16 %v1466, %v1462
        %v1558 = vpack.c.bf16 %v1471, %v1467
        %v1559 = vpack.c.bf16 %v1472, %v1468
        %v1560 = vpack.c.bf16 %v1473, %v1469
        %v1561 = vpack.c.bf16 %v1474, %v1470
        %v1563 = vperm.slane %v1539, 0
        %v1564 = vperm.slane %v1539, 1
        %v1631 = vunpack.c.l.b16 %v1475
        %v1632 = vunpack.c.h.b16 %v1475
        %v1633 = vunpack.c.l.b16 %v1476
        %v1634 = vunpack.c.h.b16 %v1476
        %v1635 = vunpack.c.l.b16 %v1477
        %v1636 = vunpack.c.h.b16 %v1477
        %v1637 = vunpack.c.l.b16 %v1478
        %v1638 = vunpack.c.h.b16 %v1478
        %v1639 = vunpack.c.l.b16 %v1479
        %v1640 = vunpack.c.h.b16 %v1479
        %v1641 = vunpack.c.l.b16 %v1480
        %v1642 = vunpack.c.h.b16 %v1480
        %v1643 = vunpack.c.l.b16 %v1481
        %v1644 = vunpack.c.h.b16 %v1481
        %v1645 = vunpack.c.l.b16 %v1482
        %v1646 = vunpack.c.h.b16 %v1482
        %v1647 = vunpack.c.l.b16 %v1483
        %v1648 = vunpack.c.h.b16 %v1483
        %v1649 = vunpack.c.l.b16 %v1484
        %v1650 = vunpack.c.h.b16 %v1484
        %v1651 = vunpack.c.l.b16 %v1485
        %v1652 = vunpack.c.h.b16 %v1485
        %v1653 = vunpack.c.l.b16 %v1486
        %v1654 = vunpack.c.h.b16 %v1486
        %v1655 = vunpack.c.l.b16 %v1487
        %v1656 = vunpack.c.h.b16 %v1487
        %v1657 = vunpack.c.l.b16 %v1488
        %v1658 = vunpack.c.h.b16 %v1488
        %v1659 = vunpack.c.l.b16 %v1489
        %v1660 = vunpack.c.h.b16 %v1489
        %v1661 = vunpack.c.l.b16 %v1490
        %v1662 = vunpack.c.h.b16 %v1490
        %v1663 = vunpack.c.l.b16 %v1491
        %v1664 = vunpack.c.h.b16 %v1491
        %v1665 = vunpack.c.l.b16 %v1492
        %v1666 = vunpack.c.h.b16 %v1492
        %v1667 = vunpack.c.l.b16 %v1493
        %v1668 = vunpack.c.h.b16 %v1493
        %v1669 = vunpack.c.l.b16 %v1494
        %v1670 = vunpack.c.h.b16 %v1494
        %v1671 = vunpack.c.l.b16 %v1495
        %v1672 = vunpack.c.h.b16 %v1495
        %v1673 = vunpack.c.l.b16 %v1496
        %v1674 = vunpack.c.h.b16 %v1496
        %v1675 = vunpack.c.l.b16 %v1497
        %v1676 = vunpack.c.h.b16 %v1497
        %v1677 = vunpack.c.l.b16 %v1498
        %v1678 = vunpack.c.h.b16 %v1498
        %v1679 = vunpack.c.l.b16 %v1499
        %v1680 = vunpack.c.h.b16 %v1499
        %v1681 = vunpack.c.l.b16 %v1500
        %v1682 = vunpack.c.h.b16 %v1500
        %v1683 = vunpack.c.l.b16 %v1501
        %v1684 = vunpack.c.h.b16 %v1501
        %v1685 = vunpack.c.l.b16 %v1502
        %v1686 = vunpack.c.h.b16 %v1502
        %v1687 = vunpack.c.l.b16 %v1503
        %v1688 = vunpack.c.h.b16 %v1503
        %v1689 = vunpack.c.l.b16 %v1504
        %v1690 = vunpack.c.h.b16 %v1504
        %v1691 = vunpack.c.l.b16 %v1505
        %v1692 = vunpack.c.h.b16 %v1505
        %v1693 = vunpack.c.l.b16 %v1506
        %v1694 = vunpack.c.h.b16 %v1506
        %v1695 = vunpack.c.l.b16 %v1507
        %v1696 = vunpack.c.h.b16 %v1507
        %v1697 = vunpack.c.l.b16 %v1508
        %v1698 = vunpack.c.h.b16 %v1508
        %v1699 = vunpack.c.l.b16 %v1509
        %v1700 = vunpack.c.h.b16 %v1509
        %v1701 = vunpack.c.l.b16 %v1510
        %v1702 = vunpack.c.h.b16 %v1510
        %v1703 = vunpack.c.l.b16 %v1511
        %v1704 = vunpack.c.h.b16 %v1511
        %v1705 = vunpack.c.l.b16 %v1512
        %v1706 = vunpack.c.h.b16 %v1512
        %v1707 = vunpack.c.l.b16 %v1513
        %v1708 = vunpack.c.h.b16 %v1513
        %v1709 = vunpack.c.l.b16 %v1514
        %v1710 = vunpack.c.h.b16 %v1514
        %v1711 = vunpack.c.l.b16 %v1515
        %v1712 = vunpack.c.h.b16 %v1515
        %v1713 = vunpack.c.l.b16 %v1516
        %v1714 = vunpack.c.h.b16 %v1516
        %v1715 = vunpack.c.l.b16 %v1517
        %v1716 = vunpack.c.h.b16 %v1517
        %v1717 = vunpack.c.l.b16 %v1518
        %v1718 = vunpack.c.h.b16 %v1518
        %v1719 = vunpack.c.l.b16 %v1519
        %v1720 = vunpack.c.h.b16 %v1519
        %v1721 = vunpack.c.l.b16 %v1520
        %v1722 = vunpack.c.h.b16 %v1520
        %v1723 = vunpack.c.l.b16 %v1521
        %v1724 = vunpack.c.h.b16 %v1521
        %v1725 = vunpack.c.l.b16 %v1522
        %v1726 = vunpack.c.h.b16 %v1522
        %v1727 = vunpack.c.l.b16 %v1523
        %v1728 = vunpack.c.h.b16 %v1523
        %v1729 = vunpack.c.l.b16 %v1524
        %v1730 = vunpack.c.h.b16 %v1524
        %v1731 = vunpack.c.l.b16 %v1525
        %v1732 = vunpack.c.h.b16 %v1525
        %v1733 = vunpack.c.l.b16 %v1526
        %v1734 = vunpack.c.h.b16 %v1526
        %v1735 = vunpack.c.l.b16 %v1527
        %v1736 = vunpack.c.h.b16 %v1527
        %v1737 = vunpack.c.l.b16 %v1528
        %v1738 = vunpack.c.h.b16 %v1528
        %v1739 = vunpack.c.l.b16 %v1529
        %v1740 = vunpack.c.h.b16 %v1529
        %v1741 = vunpack.c.l.b16 %v1530
        %v1742 = vunpack.c.h.b16 %v1530
        %v1743 = vunpack.c.l.b16 %v1531
        %v1744 = vunpack.c.h.b16 %v1531
        %v1745 = vunpack.c.l.b16 %v1532
        %v1746 = vunpack.c.h.b16 %v1532
        %v1747 = vunpack.c.l.b16 %v1533
        %v1748 = vunpack.c.h.b16 %v1533
        %v1749 = vunpack.c.l.b16 %v1534
        %v1750 = vunpack.c.h.b16 %v1534
        %v1751 = vunpack.c.l.b16 %v1535
        %v1752 = vunpack.c.h.b16 %v1535
        %v1753 = vunpack.c.l.b16 %v1536
        %v1754 = vunpack.c.h.b16 %v1536
        %v1755 = vunpack.c.l.b16 %v1537
        %v1756 = vunpack.c.h.b16 %v1537
        %v1757 = vunpack.c.l.b16 %v1538
        %v1758 = vunpack.c.h.b16 %v1538
        %v1759 = vpack.c.b16 %v1633, %v1631
        %v1760 = vpack.c.b16 %v1634, %v1632
        %v1761 = vpack.c.b16 %v1637, %v1635
        %v1762 = vpack.c.b16 %v1638, %v1636
        %v1763 = vpack.c.b16 %v1641, %v1639
        %v1764 = vpack.c.b16 %v1642, %v1640
        %v1765 = vpack.c.b16 %v1645, %v1643
        %v1766 = vpack.c.b16 %v1646, %v1644
        %v1767 = vpack.c.b16 %v1649, %v1647
        %v1768 = vpack.c.b16 %v1650, %v1648
        %v1769 = vpack.c.b16 %v1653, %v1651
        %v1770 = vpack.c.b16 %v1654, %v1652
        %v1771 = vpack.c.b16 %v1657, %v1655
        %v1772 = vpack.c.b16 %v1658, %v1656
        %v1773 = vpack.c.b16 %v1661, %v1659
        %v1774 = vpack.c.b16 %v1662, %v1660
        %v1775 = vpack.c.b16 %v1665, %v1663
        %v1776 = vpack.c.b16 %v1666, %v1664
        %v1777 = vpack.c.b16 %v1669, %v1667
        %v1778 = vpack.c.b16 %v1670, %v1668
        %v1779 = vpack.c.b16 %v1673, %v1671
        %v1780 = vpack.c.b16 %v1674, %v1672
        %v1781 = vpack.c.b16 %v1677, %v1675
        %v1782 = vpack.c.b16 %v1678, %v1676
        %v1783 = vpack.c.b16 %v1681, %v1679
        %v1784 = vpack.c.b16 %v1682, %v1680
        %v1785 = vpack.c.b16 %v1685, %v1683
        %v1786 = vpack.c.b16 %v1686, %v1684
        %v1787 = vpack.c.b16 %v1689, %v1687
        %v1788 = vpack.c.b16 %v1690, %v1688
        %v1789 = vpack.c.b16 %v1693, %v1691
        %v1790 = vpack.c.b16 %v1694, %v1692
        %v1791 = vpack.c.b16 %v1697, %v1695
        %v1792 = vpack.c.b16 %v1698, %v1696
        %v1793 = vpack.c.b16 %v1701, %v1699
        %v1794 = vpack.c.b16 %v1702, %v1700
        %v1795 = vpack.c.b16 %v1705, %v1703
        %v1796 = vpack.c.b16 %v1706, %v1704
        %v1797 = vpack.c.b16 %v1709, %v1707
        %v1798 = vpack.c.b16 %v1710, %v1708
        %v1799 = vpack.c.b16 %v1713, %v1711
        %v1800 = vpack.c.b16 %v1714, %v1712
        %v1801 = vpack.c.b16 %v1717, %v1715
        %v1802 = vpack.c.b16 %v1718, %v1716
        %v1803 = vpack.c.b16 %v1721, %v1719
        %v1804 = vpack.c.b16 %v1722, %v1720
        %v1805 = vpack.c.b16 %v1725, %v1723
        %v1806 = vpack.c.b16 %v1726, %v1724
        %v1807 = vpack.c.b16 %v1729, %v1727
        %v1808 = vpack.c.b16 %v1730, %v1728
        %v1809 = vpack.c.b16 %v1733, %v1731
        %v1810 = vpack.c.b16 %v1734, %v1732
        %v1811 = vpack.c.b16 %v1737, %v1735
        %v1812 = vpack.c.b16 %v1738, %v1736
        %v1813 = vpack.c.b16 %v1741, %v1739
        %v1814 = vpack.c.b16 %v1742, %v1740
        %v1815 = vpack.c.b16 %v1745, %v1743
        %v1816 = vpack.c.b16 %v1746, %v1744
        %v1817 = vpack.c.b16 %v1749, %v1747
        %v1818 = vpack.c.b16 %v1750, %v1748
        %v1819 = vpack.c.b16 %v1753, %v1751
        %v1820 = vpack.c.b16 %v1754, %v1752
        %v1821 = vpack.c.b16 %v1757, %v1755
        %v1822 = vpack.c.b16 %v1758, %v1756
        %1887 = vmatpush.bf16.msra.mxu0 %v1773
        %1888 = vmatpush.bf16.msra.mxu0 %v1771
        %1889 = vmatpush.bf16.msra.mxu0 %v1769
        %1890 = vmatpush.bf16.msra.mxu0 %v1767
        %1891 = vmatpush.bf16.msra.mxu0 %v1765
        %1892 = vmatpush.bf16.msra.mxu0 %v1763
        %1893 = vmatpush.bf16.msra.mxu0 %v1761
        %1894 = vmatpush.bf16.msra.mxu0 %v1759
        %1895 = vmatmul.bf16.gmra.mxu0 %v1542
        %v1896 = vpop.f32.mrf.mxu0
        %v1897 = vadd.f32 %v1563, %v1896
        %v1898 = vpop.f32.mrf.mxu0
        %v1899 = vadd.f32 %v1563, %v1898
        %1900 = vmatmul.bf16.gmra.mxu0 %v1546
        %v1901 = vpop.f32.mrf.mxu0
        %v1902 = vadd.f32 %v1563, %v1901
        %v1903 = vpop.f32.mrf.mxu0
        %v1904 = vadd.f32 %v1563, %v1903
        %1905 = vmatmul.bf16.gmra.mxu0 %v1550
        %v1906 = vpop.f32.mrf.mxu0
        %v1907 = vadd.f32 %v1563, %v1906
        %v1908 = vpop.f32.mrf.mxu0
        %v1909 = vadd.f32 %v1563, %v1908
        %1910 = vmatmul.bf16.gmra.mxu0 %v1554
        %v1911 = vpop.f32.mrf.mxu0
        %v1912 = vadd.f32 %v1563, %v1911
        %v1913 = vpop.f32.mrf.mxu0
        %v1914 = vadd.f32 %v1563, %v1913
        %1915 = vmatmul.bf16.gmra.mxu0 %v1558
        %v1916 = vpop.f32.mrf.mxu0
        %v1917 = vadd.f32 %v1563, %v1916
        %v1918 = vpop.f32.mrf.mxu0
        %v1919 = vadd.f32 %v1563, %v1918
        %1920 = vdwg.mxu0
        %1921 = vmatpush.bf16.msra.mxu0 %v1789
        %1922 = vmatpush.bf16.msra.mxu0 %v1787
        %1923 = vmatpush.bf16.msra.mxu0 %v1785
        %1924 = vmatpush.bf16.msra.mxu0 %v1783
        %1925 = vmatpush.bf16.msra.mxu0 %v1781
        %1926 = vmatpush.bf16.msra.mxu0 %v1779
        %1927 = vmatpush.bf16.msra.mxu0 %v1777
        %1928 = vmatpush.bf16.msra.mxu0 %v1775
        %1929 = vmatmul.bf16.gmra.mxu0 %v1543
        %v1930 = vpop.f32.mrf.mxu0
        %v1931 = vadd.f32 %v1897, %v1930
        %v1932 = vpop.f32.mrf.mxu0
        %v1933 = vadd.f32 %v1899, %v1932
        %1934 = vmatmul.bf16.gmra.mxu0 %v1547
        %v1935 = vpop.f32.mrf.mxu0
        %v1936 = vadd.f32 %v1902, %v1935
        %v1937 = vpop.f32.mrf.mxu0
        %v1938 = vadd.f32 %v1904, %v1937
        %1939 = vmatmul.bf16.gmra.mxu0 %v1551
        %v1940 = vpop.f32.mrf.mxu0
        %v1941 = vadd.f32 %v1907, %v1940
        %v1942 = vpop.f32.mrf.mxu0
        %v1943 = vadd.f32 %v1909, %v1942
        %1944 = vmatmul.bf16.gmra.mxu0 %v1555
        %v1945 = vpop.f32.mrf.mxu0
        %v1946 = vadd.f32 %v1912, %v1945
        %v1947 = vpop.f32.mrf.mxu0
        %v1948 = vadd.f32 %v1914, %v1947
        %1949 = vmatmul.bf16.gmra.mxu0 %v1559
        %v1950 = vpop.f32.mrf.mxu0
        %v1951 = vadd.f32 %v1917, %v1950
        %v1952 = vpop.f32.mrf.mxu0
        %v1953 = vadd.f32 %v1919, %v1952
        %1954 = vdwg.mxu0
        %1955 = vmatpush.bf16.msra.mxu0 %v1805
        %1956 = vmatpush.bf16.msra.mxu0 %v1803
        %1957 = vmatpush.bf16.msra.mxu0 %v1801
        %1958 = vmatpush.bf16.msra.mxu0 %v1799
        %1959 = vmatpush.bf16.msra.mxu0 %v1797
        %1960 = vmatpush.bf16.msra.mxu0 %v1795
        %1961 = vmatpush.bf16.msra.mxu0 %v1793
        %1962 = vmatpush.bf16.msra.mxu0 %v1791
        %1963 = vmatmul.bf16.gmra.mxu0 %v1544
        %v1964 = vpop.f32.mrf.mxu0
        %v1965 = vadd.f32 %v1931, %v1964
        %v1966 = vpop.f32.mrf.mxu0
        %v1967 = vadd.f32 %v1933, %v1966
        %1968 = vmatmul.bf16.gmra.mxu0 %v1548
        %v1969 = vpop.f32.mrf.mxu0
        %v1970 = vadd.f32 %v1936, %v1969
        %v1971 = vpop.f32.mrf.mxu0
        %v1972 = vadd.f32 %v1938, %v1971
        %1973 = vmatmul.bf16.gmra.mxu0 %v1552
        %v1974 = vpop.f32.mrf.mxu0
        %v1975 = vadd.f32 %v1941, %v1974
        %v1976 = vpop.f32.mrf.mxu0
        %v1977 = vadd.f32 %v1943, %v1976
        %1978 = vmatmul.bf16.gmra.mxu0 %v1556
        %v1979 = vpop.f32.mrf.mxu0
        %v1980 = vadd.f32 %v1946, %v1979
        %v1981 = vpop.f32.mrf.mxu0
        %v1982 = vadd.f32 %v1948, %v1981
        %1983 = vmatmul.bf16.gmra.mxu0 %v1560
        %v1984 = vpop.f32.mrf.mxu0
        %v1985 = vadd.f32 %v1951, %v1984
        %v1986 = vpop.f32.mrf.mxu0
        %v1987 = vadd.f32 %v1953, %v1986
        %1988 = vdwg.mxu0
        %1989 = vmatpush.bf16.msra.mxu0 %v1821
        %1990 = vmatpush.bf16.msra.mxu0 %v1819
        %1991 = vmatpush.bf16.msra.mxu0 %v1817
        %1992 = vmatpush.bf16.msra.mxu0 %v1815
        %1993 = vmatpush.bf16.msra.mxu0 %v1813
        %1994 = vmatpush.bf16.msra.mxu0 %v1811
        %1995 = vmatpush.bf16.msra.mxu0 %v1809
        %1996 = vmatpush.bf16.msra.mxu0 %v1807
        %1997 = vmatmul.bf16.gmra.mxu0 %v1545
        %v1998 = vpop.f32.mrf.mxu0
        %v1999 = vadd.f32 %v1965, %v1998
        %v2000 = vpop.f32.mrf.mxu0
        %v2001 = vadd.f32 %v1967, %v2000
        %2002 = vmatmul.bf16.gmra.mxu0 %v1549
        %v2003 = vpop.f32.mrf.mxu0
        %v2004 = vadd.f32 %v1970, %v2003
        %v2005 = vpop.f32.mrf.mxu0
        %v2006 = vadd.f32 %v1972, %v2005
        %2007 = vmatmul.bf16.gmra.mxu0 %v1553
        %v2008 = vpop.f32.mrf.mxu0
        %v2009 = vadd.f32 %v1975, %v2008
        %v2010 = vpop.f32.mrf.mxu0
        %v2011 = vadd.f32 %v1977, %v2010
        %2012 = vmatmul.bf16.gmra.mxu0 %v1557
        %v2013 = vpop.f32.mrf.mxu0
        %v2014 = vadd.f32 %v1980, %v2013
        %v2015 = vpop.f32.mrf.mxu0
        %v2016 = vadd.f32 %v1982, %v2015
        %2017 = vmatmul.bf16.gmra.mxu0 %v1561
        %v2018 = vpop.f32.mrf.mxu0
        %v2019 = vadd.f32 %v1985, %v2018
        %v2020 = vpop.f32.mrf.mxu0
        %v2021 = vadd.f32 %v1987, %v2020
        %2022 = vdwg.mxu0
        %2023 = vmatpush.bf16.msra.mxu0 %v1774
        %2024 = vmatpush.bf16.msra.mxu0 %v1772
        %2025 = vmatpush.bf16.msra.mxu0 %v1770
        %2026 = vmatpush.bf16.msra.mxu0 %v1768
        %2027 = vmatpush.bf16.msra.mxu0 %v1766
        %2028 = vmatpush.bf16.msra.mxu0 %v1764
        %2029 = vmatpush.bf16.msra.mxu0 %v1762
        %2030 = vmatpush.bf16.msra.mxu0 %v1760
        %2031 = vmatmul.bf16.gmra.mxu0 %v1542
        %v2032 = vpop.f32.mrf.mxu0
        %v2033 = vadd.f32 %v1564, %v2032
        %v2034 = vpop.f32.mrf.mxu0
        %v2035 = vadd.f32 %v1564, %v2034
        %2036 = vmatmul.bf16.gmra.mxu0 %v1546
        %v2037 = vpop.f32.mrf.mxu0
        %v2038 = vadd.f32 %v1564, %v2037
        %v2039 = vpop.f32.mrf.mxu0
        %v2040 = vadd.f32 %v1564, %v2039
        %2041 = vmatmul.bf16.gmra.mxu0 %v1550
        %v2042 = vpop.f32.mrf.mxu0
        %v2043 = vadd.f32 %v1564, %v2042
        %v2044 = vpop.f32.mrf.mxu0
        %v2045 = vadd.f32 %v1564, %v2044
        %2046 = vmatmul.bf16.gmra.mxu0 %v1554
        %v2047 = vpop.f32.mrf.mxu0
        %v2048 = vadd.f32 %v1564, %v2047
        %v2049 = vpop.f32.mrf.mxu0
        %v2050 = vadd.f32 %v1564, %v2049
        %2051 = vmatmul.bf16.gmra.mxu0 %v1558
        %v2052 = vpop.f32.mrf.mxu0
        %v2053 = vadd.f32 %v1564, %v2052
        %v2054 = vpop.f32.mrf.mxu0
        %v2055 = vadd.f32 %v1564, %v2054
        %2056 = vdwg.mxu0
        %2057 = vmatpush.bf16.msra.mxu0 %v1790
        %2058 = vmatpush.bf16.msra.mxu0 %v1788
        %2059 = vmatpush.bf16.msra.mxu0 %v1786
        %2060 = vmatpush.bf16.msra.mxu0 %v1784
        %2061 = vmatpush.bf16.msra.mxu0 %v1782
        %2062 = vmatpush.bf16.msra.mxu0 %v1780
        %2063 = vmatpush.bf16.msra.mxu0 %v1778
        %2064 = vmatpush.bf16.msra.mxu0 %v1776
        %2065 = vmatmul.bf16.gmra.mxu0 %v1543
        %v2066 = vpop.f32.mrf.mxu0
        %v2067 = vadd.f32 %v2033, %v2066
        %v2068 = vpop.f32.mrf.mxu0
        %v2069 = vadd.f32 %v2035, %v2068
        %2070 = vmatmul.bf16.gmra.mxu0 %v1547
        %v2071 = vpop.f32.mrf.mxu0
        %v2072 = vadd.f32 %v2038, %v2071
        %v2073 = vpop.f32.mrf.mxu0
        %v2074 = vadd.f32 %v2040, %v2073
        %2075 = vmatmul.bf16.gmra.mxu0 %v1551
        %v2076 = vpop.f32.mrf.mxu0
        %v2077 = vadd.f32 %v2043, %v2076
        %v2078 = vpop.f32.mrf.mxu0
        %v2079 = vadd.f32 %v2045, %v2078
        %2080 = vmatmul.bf16.gmra.mxu0 %v1555
        %v2081 = vpop.f32.mrf.mxu0
        %v2082 = vadd.f32 %v2048, %v2081
        %v2083 = vpop.f32.mrf.mxu0
        %v2084 = vadd.f32 %v2050, %v2083
        %2085 = vmatmul.bf16.gmra.mxu0 %v1559
        %v2086 = vpop.f32.mrf.mxu0
        %v2087 = vadd.f32 %v2053, %v2086
        %v2088 = vpop.f32.mrf.mxu0
        %v2089 = vadd.f32 %v2055, %v2088
        %2090 = vdwg.mxu0
        %2091 = vmatpush.bf16.msra.mxu0 %v1806
        %2092 = vmatpush.bf16.msra.mxu0 %v1804
        %2093 = vmatpush.bf16.msra.mxu0 %v1802
        %2094 = vmatpush.bf16.msra.mxu0 %v1800
        %2095 = vmatpush.bf16.msra.mxu0 %v1798
        %2096 = vmatpush.bf16.msra.mxu0 %v1796
        %2097 = vmatpush.bf16.msra.mxu0 %v1794
        %2098 = vmatpush.bf16.msra.mxu0 %v1792
        %2099 = vmatmul.bf16.gmra.mxu0 %v1544
        %v2100 = vpop.f32.mrf.mxu0
        %v2101 = vadd.f32 %v2067, %v2100
        %v2102 = vpop.f32.mrf.mxu0
        %v2103 = vadd.f32 %v2069, %v2102
        %2104 = vmatmul.bf16.gmra.mxu0 %v1548
        %v2105 = vpop.f32.mrf.mxu0
        %v2106 = vadd.f32 %v2072, %v2105
        %v2107 = vpop.f32.mrf.mxu0
        %v2108 = vadd.f32 %v2074, %v2107
        %2109 = vmatmul.bf16.gmra.mxu0 %v1552
        %v2110 = vpop.f32.mrf.mxu0
        %v2111 = vadd.f32 %v2077, %v2110
        %v2112 = vpop.f32.mrf.mxu0
        %v2113 = vadd.f32 %v2079, %v2112
        %2114 = vmatmul.bf16.gmra.mxu0 %v1556
        %v2115 = vpop.f32.mrf.mxu0
        %v2116 = vadd.f32 %v2082, %v2115
        %v2117 = vpop.f32.mrf.mxu0
        %v2118 = vadd.f32 %v2084, %v2117
        %2119 = vmatmul.bf16.gmra.mxu0 %v1560
        %v2120 = vpop.f32.mrf.mxu0
        %v2121 = vadd.f32 %v2087, %v2120
        %v2122 = vpop.f32.mrf.mxu0
        %v2123 = vadd.f32 %v2089, %v2122
        %2124 = vdwg.mxu0
        %2125 = vmatpush.bf16.msra.mxu0 %v1822
        %2126 = vmatpush.bf16.msra.mxu0 %v1820
        %2127 = vmatpush.bf16.msra.mxu0 %v1818
        %2128 = vmatpush.bf16.msra.mxu0 %v1816
        %2129 = vmatpush.bf16.msra.mxu0 %v1814
        %2130 = vmatpush.bf16.msra.mxu0 %v1812
        %2131 = vmatpush.bf16.msra.mxu0 %v1810
        %2132 = vmatpush.bf16.msra.mxu0 %v1808
        %2133 = vmatmul.bf16.gmra.mxu0 %v1545
        %v2134 = vpop.f32.mrf.mxu0
        %v2135 = vadd.f32 %v2101, %v2134
        %v2136 = vpop.f32.mrf.mxu0
        %v2137 = vadd.f32 %v2103, %v2136
        %2138 = vmatmul.bf16.gmra.mxu0 %v1549
        %v2139 = vpop.f32.mrf.mxu0
        %v2140 = vadd.f32 %v2106, %v2139
        %v2141 = vpop.f32.mrf.mxu0
        %v2142 = vadd.f32 %v2108, %v2141
        %2143 = vmatmul.bf16.gmra.mxu0 %v1553
        %v2144 = vpop.f32.mrf.mxu0
        %v2145 = vadd.f32 %v2111, %v2144
        %v2146 = vpop.f32.mrf.mxu0
        %v2147 = vadd.f32 %v2113, %v2146
        %2148 = vmatmul.bf16.gmra.mxu0 %v1557
        %v2149 = vpop.f32.mrf.mxu0
        %v2150 = vadd.f32 %v2116, %v2149
        %v2151 = vpop.f32.mrf.mxu0
        %v2152 = vadd.f32 %v2118, %v2151
        %2153 = vmatmul.bf16.gmra.mxu0 %v1561
        %v2154 = vpop.f32.mrf.mxu0
        %v2155 = vadd.f32 %v2121, %v2154
        %v2156 = vpop.f32.mrf.mxu0
        %v2157 = vadd.f32 %v2123, %v2156
        %2158 = vdwg.mxu0
        %v2159 = vadd.f32 %v1999, %v2135
        %2160 = vadd.xlane.f32.xlu0 %v2159
        %v2161 = vpop.xlane.xlu0 %2160
        %v2162 = vadd.f32 %v2001, %v2137
        %2163 = vadd.xlane.f32.xlu0 %v2162
        %v2164 = vpop.xlane.xlu0 %2163
        %v2165 = vadd.f32 %v2004, %v2140
        %2166 = vadd.xlane.f32.xlu0 %v2165
        %v2167 = vpop.xlane.xlu0 %2166
        %v2168 = vadd.f32 %v2006, %v2142
        %2169 = vadd.xlane.f32.xlu0 %v2168
        %v2170 = vpop.xlane.xlu0 %2169
        %v2171 = vadd.f32 %v2009, %v2145
        %2172 = vadd.xlane.f32.xlu0 %v2171
        %v2173 = vpop.xlane.xlu0 %2172
        %v2174 = vadd.f32 %v2011, %v2147
        %2175 = vadd.xlane.f32.xlu0 %v2174
        %v2176 = vpop.xlane.xlu0 %2175
        %v2177 = vadd.f32 %v2014, %v2150
        %2178 = vadd.xlane.f32.xlu0 %v2177
        %v2179 = vpop.xlane.xlu0 %2178
        %v2180 = vadd.f32 %v2016, %v2152
        %2181 = vadd.xlane.f32.xlu0 %v2180
        %v2182 = vpop.xlane.xlu0 %2181
        %v2183 = vadd.f32 %v2019, %v2155
        %2184 = vadd.xlane.f32.xlu0 %v2183
        %v2185 = vpop.xlane.xlu0 %2184
        %v2186 = vadd.f32 %v2021, %v2157
        %2187 = vadd.xlane.f32.xlu0 %v2186
        %v2188 = vpop.xlane.xlu0 %2187
        %v2189 = vrcp.pop 256.0
        %v2190 = vmul.f32 256.0, %v2189
        %v2191 = vsub.f32 1.0, %v2190
        %v2192 = vmul.f32 %v2189, %v2191
        %v2193 = vadd.f32 %v2189, %v2192
        %vm2194 = vweird.f32 %v2189
        %v2195 = vsel %vm2194, %v2189, %v2193
        %v2196 = vmul.f32 %v2161, %v2195
        %v2197 = vmul.f32 %v2164, %v2195
        %v2198 = vmul.f32 %v2167, %v2195
        %v2199 = vmul.f32 %v2170, %v2195
        %v2200 = vmul.f32 %v2173, %v2195
        %v2201 = vmul.f32 %v2176, %v2195
        %v2202 = vmul.f32 %v2179, %v2195
        %v2203 = vmul.f32 %v2182, %v2195
        %v2204 = vmul.f32 %v2185, %v2195
        %v2205 = vmul.f32 %v2188, %v2195
        %v2206 = vsub.f32 %v1999, %v2196
        %v2207 = vsub.f32 %v2135, %v2196
        %v2208 = vsub.f32 %v2001, %v2197
        %v2209 = vsub.f32 %v2137, %v2197
        %v2210 = vsub.f32 %v2004, %v2198
        %v2211 = vsub.f32 %v2140, %v2198
        %v2212 = vsub.f32 %v2006, %v2199
        %v2213 = vsub.f32 %v2142, %v2199
        %v2214 = vsub.f32 %v2009, %v2200
        %v2215 = vsub.f32 %v2145, %v2200
        %v2216 = vsub.f32 %v2011, %v2201
        %v2217 = vsub.f32 %v2147, %v2201
        %v2218 = vsub.f32 %v2014, %v2202
        %v2219 = vsub.f32 %v2150, %v2202
        %v2220 = vsub.f32 %v2016, %v2203
        %v2221 = vsub.f32 %v2152, %v2203
        %v2222 = vsub.f32 %v2019, %v2204
        %v2223 = vsub.f32 %v2155, %v2204
        %v2224 = vsub.f32 %v2021, %v2205
        %v2225 = vsub.f32 %v2157, %v2205
        %v2226 = vmul.f32 %v2206, %v2206
        %v2227 = vmul.f32 %v2207, %v2207
        %v2228 = vmul.f32 %v2208, %v2208
        %v2229 = vmul.f32 %v2209, %v2209
        %v2230 = vmul.f32 %v2210, %v2210
        %v2231 = vmul.f32 %v2211, %v2211
        %v2232 = vmul.f32 %v2212, %v2212
        %v2233 = vmul.f32 %v2213, %v2213
        %v2234 = vmul.f32 %v2214, %v2214
        %v2235 = vmul.f32 %v2215, %v2215
        %v2236 = vmul.f32 %v2216, %v2216
        %v2237 = vmul.f32 %v2217, %v2217
        %v2238 = vmul.f32 %v2218, %v2218
        %v2239 = vmul.f32 %v2219, %v2219
        %v2240 = vmul.f32 %v2220, %v2220
        %v2241 = vmul.f32 %v2221, %v2221
        %v2242 = vmul.f32 %v2222, %v2222
        %v2243 = vmul.f32 %v2223, %v2223
        %v2244 = vmul.f32 %v2224, %v2224
        %v2245 = vmul.f32 %v2225, %v2225
        %v2246 = vadd.f32 %v2226, %v2227
        %2247 = vadd.xlane.f32.xlu0 %v2246
        %v2248 = vpop.xlane.xlu0 %2247
        %v2249 = vadd.f32 %v2228, %v2229
        %2250 = vadd.xlane.f32.xlu0 %v2249
        %v2251 = vpop.xlane.xlu0 %2250
        %v2252 = vadd.f32 %v2230, %v2231
        %2253 = vadd.xlane.f32.xlu0 %v2252
        %v2254 = vpop.xlane.xlu0 %2253
        %v2255 = vadd.f32 %v2232, %v2233
        %2256 = vadd.xlane.f32.xlu0 %v2255
        %v2257 = vpop.xlane.xlu0 %2256
        %v2258 = vadd.f32 %v2234, %v2235
        %2259 = vadd.xlane.f32.xlu0 %v2258
        %v2260 = vpop.xlane.xlu0 %2259
        %v2261 = vadd.f32 %v2236, %v2237
        %2262 = vadd.xlane.f32.xlu0 %v2261
        %v2263 = vpop.xlane.xlu0 %2262
        %v2264 = vadd.f32 %v2238, %v2239
        %2265 = vadd.xlane.f32.xlu0 %v2264
        %v2266 = vpop.xlane.xlu0 %2265
        %v2267 = vadd.f32 %v2240, %v2241
        %2268 = vadd.xlane.f32.xlu0 %v2267
        %v2269 = vpop.xlane.xlu0 %2268
        %v2270 = vadd.f32 %v2242, %v2243
        %2271 = vadd.xlane.f32.xlu0 %v2270
        %v2272 = vpop.xlane.xlu0 %2271
        %v2273 = vadd.f32 %v2244, %v2245
        %2274 = vadd.xlane.f32.xlu0 %v2273
        %v2275 = vpop.xlane.xlu0 %2274
        %v2276 = vmul.f32 %v2248, %v2195
        %v2277 = vmul.f32 %v2251, %v2195
        %v2278 = vmul.f32 %v2254, %v2195
        %v2279 = vmul.f32 %v2257, %v2195
        %v2280 = vmul.f32 %v2260, %v2195
        %v2281 = vmul.f32 %v2263, %v2195
        %v2282 = vmul.f32 %v2266, %v2195
        %v2283 = vmul.f32 %v2269, %v2195
        %v2284 = vmul.f32 %v2272, %v2195
        %v2285 = vmul.f32 %v2275, %v2195
        %v2286 = vadd.f32 %v2276, 1e-05
        %v2287 = vadd.f32 %v2277, 1e-05
        %v2288 = vadd.f32 %v2278, 1e-05
        %v2289 = vadd.f32 %v2279, 1e-05
        %v2290 = vadd.f32 %v2280, 1e-05
        %v2291 = vadd.f32 %v2281, 1e-05
        %v2292 = vadd.f32 %v2282, 1e-05
        %v2293 = vadd.f32 %v2283, 1e-05
        %v2294 = vadd.f32 %v2284, 1e-05
        %v2295 = vadd.f32 %v2285, 1e-05
        %v2296 = vrsqrt.pop %v2286
        %v2297 = vmul.f32 %v2296, %v2286
        %v2298 = vmul.f32 %v2297, %v2296
        %v2299 = vmul.f32 0.5, %v2298
        %v2300 = vsub.f32 1.5, %v2299
        %v2301 = vmul.f32 %v2296, %v2300
        %vm2302 = vweird.f32 %v2286
        %vm2303 = vweird.f32 %v2296
        %vm2304 = vmor %vm2302, %vm2303
        %v2305 = vsel %vm2304, %v2296, %v2301
        %v2306 = vrsqrt.pop %v2287
        %v2307 = vmul.f32 %v2306, %v2287
        %v2308 = vmul.f32 %v2307, %v2306
        %v2309 = vmul.f32 0.5, %v2308
        %v2310 = vsub.f32 1.5, %v2309
        %v2311 = vmul.f32 %v2306, %v2310
        %vm2312 = vweird.f32 %v2287
        %vm2313 = vweird.f32 %v2306
        %vm2314 = vmor %vm2312, %vm2313
        %v2315 = vsel %vm2314, %v2306, %v2311
        %v2316 = vrsqrt.pop %v2288
        %v2317 = vmul.f32 %v2316, %v2288
        %v2318 = vmul.f32 %v2317, %v2316
        %v2319 = vmul.f32 0.5, %v2318
        %v2320 = vsub.f32 1.5, %v2319
        %v2321 = vmul.f32 %v2316, %v2320
        %vm2322 = vweird.f32 %v2288
        %vm2323 = vweird.f32 %v2316
        %vm2324 = vmor %vm2322, %vm2323
        %v2325 = vsel %vm2324, %v2316, %v2321
        %v2326 = vrsqrt.pop %v2289
        %v2327 = vmul.f32 %v2326, %v2289
        %v2328 = vmul.f32 %v2327, %v2326
        %v2329 = vmul.f32 0.5, %v2328
        %v2330 = vsub.f32 1.5, %v2329
        %v2331 = vmul.f32 %v2326, %v2330
        %vm2332 = vweird.f32 %v2289
        %vm2333 = vweird.f32 %v2326
        %vm2334 = vmor %vm2332, %vm2333
        %v2335 = vsel %vm2334, %v2326, %v2331
        %v2336 = vrsqrt.pop %v2290
        %v2337 = vmul.f32 %v2336, %v2290
        %v2338 = vmul.f32 %v2337, %v2336
        %v2339 = vmul.f32 0.5, %v2338
        %v2340 = vsub.f32 1.5, %v2339
        %v2341 = vmul.f32 %v2336, %v2340
        %vm2342 = vweird.f32 %v2290
        %vm2343 = vweird.f32 %v2336
        %vm2344 = vmor %vm2342, %vm2343
        %v2345 = vsel %vm2344, %v2336, %v2341
        %v2346 = vrsqrt.pop %v2291
        %v2347 = vmul.f32 %v2346, %v2291
        %v2348 = vmul.f32 %v2347, %v2346
        %v2349 = vmul.f32 0.5, %v2348
        %v2350 = vsub.f32 1.5, %v2349
        %v2351 = vmul.f32 %v2346, %v2350
        %vm2352 = vweird.f32 %v2291
        %vm2353 = vweird.f32 %v2346
        %vm2354 = vmor %vm2352, %vm2353
        %v2355 = vsel %vm2354, %v2346, %v2351
        %v2356 = vrsqrt.pop %v2292
        %v2357 = vmul.f32 %v2356, %v2292
        %v2358 = vmul.f32 %v2357, %v2356
        %v2359 = vmul.f32 0.5, %v2358
        %v2360 = vsub.f32 1.5, %v2359
        %v2361 = vmul.f32 %v2356, %v2360
        %vm2362 = vweird.f32 %v2292
        %vm2363 = vweird.f32 %v2356
        %vm2364 = vmor %vm2362, %vm2363
        %v2365 = vsel %vm2364, %v2356, %v2361
        %v2366 = vrsqrt.pop %v2293
        %v2367 = vmul.f32 %v2366, %v2293
        %v2368 = vmul.f32 %v2367, %v2366
        %v2369 = vmul.f32 0.5, %v2368
        %v2370 = vsub.f32 1.5, %v2369
        %v2371 = vmul.f32 %v2366, %v2370
        %vm2372 = vweird.f32 %v2293
        %vm2373 = vweird.f32 %v2366
        %vm2374 = vmor %vm2372, %vm2373
        %v2375 = vsel %vm2374, %v2366, %v2371
        %v2376 = vrsqrt.pop %v2294
        %v2377 = vmul.f32 %v2376, %v2294
        %v2378 = vmul.f32 %v2377, %v2376
        %v2379 = vmul.f32 0.5, %v2378
        %v2380 = vsub.f32 1.5, %v2379
        %v2381 = vmul.f32 %v2376, %v2380
        %vm2382 = vweird.f32 %v2294
        %vm2383 = vweird.f32 %v2376
        %vm2384 = vmor %vm2382, %vm2383
        %v2385 = vsel %vm2384, %v2376, %v2381
        %v2386 = vrsqrt.pop %v2295
        %v2387 = vmul.f32 %v2386, %v2295
        %v2388 = vmul.f32 %v2387, %v2386
        %v2389 = vmul.f32 0.5, %v2388
        %v2390 = vsub.f32 1.5, %v2389
        %v2391 = vmul.f32 %v2386, %v2390
        %vm2392 = vweird.f32 %v2295
        %vm2393 = vweird.f32 %v2386
        %vm2394 = vmor %vm2392, %vm2393
        %v2395 = vsel %vm2394, %v2386, %v2391
        %v2396 = vmul.f32 %v2206, %v2305
        %v2397 = vmul.f32 %v2207, %v2305
        %v2398 = vmul.f32 %v2208, %v2315
        %v2399 = vmul.f32 %v2209, %v2315
        %v2400 = vmul.f32 %v2210, %v2325
        %v2401 = vmul.f32 %v2211, %v2325
        %v2402 = vmul.f32 %v2212, %v2335
        %v2403 = vmul.f32 %v2213, %v2335
        %v2404 = vmul.f32 %v2214, %v2345
        %v2405 = vmul.f32 %v2215, %v2345
        %v2406 = vmul.f32 %v2216, %v2355
        %v2407 = vmul.f32 %v2217, %v2355
        %v2408 = vmul.f32 %v2218, %v2365
        %v2409 = vmul.f32 %v2219, %v2365
        %v2410 = vmul.f32 %v2220, %v2375
        %v2411 = vmul.f32 %v2221, %v2375
        %v2412 = vmul.f32 %v2222, %v2385
        %v2413 = vmul.f32 %v2223, %v2385
        %v2414 = vmul.f32 %v2224, %v2395
        %v2415 = vmul.f32 %v2225, %v2395
        %v2417 = vperm.slane %v1540, 0
        %v2418 = vperm.slane %v1540, 1
        %v2421 = vmul.f32 %v2396, %v2417
        %v2422 = vmul.f32 %v2397, %v2418
        %v2423 = vmul.f32 %v2398, %v2417
        %v2424 = vmul.f32 %v2399, %v2418
        %v2425 = vmul.f32 %v2400, %v2417
        %v2426 = vmul.f32 %v2401, %v2418
        %v2427 = vmul.f32 %v2402, %v2417
        %v2428 = vmul.f32 %v2403, %v2418
        %v2429 = vmul.f32 %v2404, %v2417
        %v2430 = vmul.f32 %v2405, %v2418
        %v2431 = vmul.f32 %v2406, %v2417
        %v2432 = vmul.f32 %v2407, %v2418
        %v2433 = vmul.f32 %v2408, %v2417
        %v2434 = vmul.f32 %v2409, %v2418
        %v2435 = vmul.f32 %v2410, %v2417
        %v2436 = vmul.f32 %v2411, %v2418
        %v2437 = vmul.f32 %v2412, %v2417
        %v2438 = vmul.f32 %v2413, %v2418
        %v2439 = vmul.f32 %v2414, %v2417
        %v2440 = vmul.f32 %v2415, %v2418
        %v2442 = vperm.slane %v1541, 0
        %v2443 = vperm.slane %v1541, 1
        %v2446 = vadd.f32 %v2421, %v2442
        %v2447 = vadd.f32 %v2422, %v2443
        %v2448 = vadd.f32 %v2423, %v2442
        %v2449 = vadd.f32 %v2424, %v2443
        %v2450 = vadd.f32 %v2425, %v2442
        %v2451 = vadd.f32 %v2426, %v2443
        %v2452 = vadd.f32 %v2427, %v2442
        %v2453 = vadd.f32 %v2428, %v2443
        %v2454 = vadd.f32 %v2429, %v2442
        %v2455 = vadd.f32 %v2430, %v2443
        %v2456 = vadd.f32 %v2431, %v2442
        %v2457 = vadd.f32 %v2432, %v2443
        %v2458 = vadd.f32 %v2433, %v2442
        %v2459 = vadd.f32 %v2434, %v2443
        %v2460 = vadd.f32 %v2435, %v2442
        %v2461 = vadd.f32 %v2436, %v2443
        %v2462 = vadd.f32 %v2437, %v2442
        %v2463 = vadd.f32 %v2438, %v2443
        %v2464 = vadd.f32 %v2439, %v2442
        %v2465 = vadd.f32 %v2440, %v2443
        %v2466 = vmax.f32 %v2446, 0.0
        %v2467 = vmax.f32 %v2447, 0.0
        %v2468 = vmax.f32 %v2448, 0.0
        %v2469 = vmax.f32 %v2449, 0.0
        %v2470 = vmax.f32 %v2450, 0.0
        %v2471 = vmax.f32 %v2451, 0.0
        %v2472 = vmax.f32 %v2452, 0.0
        %v2473 = vmax.f32 %v2453, 0.0
        %v2474 = vmax.f32 %v2454, 0.0
        %v2475 = vmax.f32 %v2455, 0.0
        %v2476 = vmax.f32 %v2456, 0.0
        %v2477 = vmax.f32 %v2457, 0.0
        %v2478 = vmax.f32 %v2458, 0.0
        %v2479 = vmax.f32 %v2459, 0.0
        %v2480 = vmax.f32 %v2460, 0.0
        %v2481 = vmax.f32 %v2461, 0.0
        %v2482 = vmax.f32 %v2462, 0.0
        %v2483 = vmax.f32 %v2463, 0.0
        %v2484 = vmax.f32 %v2464, 0.0
        %v2485 = vmax.f32 %v2465, 0.0
        %v2486 = vld [vmem:[%s9] sm:$0xf]
        %v2487 = vld [vmem:[%s9 + $0x4] sm:$0xf]
        %v2488 = vld [vmem:[%s9 + $0x8] sm:$0xf]
        %v2489 = vld [vmem:[%s9 + $0xc] sm:$0xf]
        %v2490 = vld [vmem:[%s9 + $0x10] sm:$0xf]
        %v2491 = vld [vmem:[%s9 + $0x14] sm:$0xf]
        %v2492 = vld [vmem:[%s9 + $0x18] sm:$0xf]
        %v2493 = vld [vmem:[%s9 + $0x1c] sm:$0xf]
        %v2494 = vld [vmem:[%s9 + $0x20] sm:$0xf]
        %v2495 = vld [vmem:[%s9 + $0x24] sm:$0xf]
        %v2496 = vld [vmem:[%s9 + $0x28] sm:$0xf]
        %v2497 = vld [vmem:[%s9 + $0x2c] sm:$0xf]
        %v2498 = vld [vmem:[%s9 + $0x30] sm:$0xf]
        %v2499 = vld [vmem:[%s9 + $0x34] sm:$0xf]
        %v2500 = vld [vmem:[%s9 + $0x38] sm:$0xf]
        %v2501 = vld [vmem:[%s9 + $0x3c] sm:$0xf]
        %v2502 = vld [vmem:[%s9 + $0x40] sm:$0xf]
        %v2503 = vld [vmem:[%s9 + $0x44] sm:$0xf]
        %v2504 = vld [vmem:[%s9 + $0x48] sm:$0xf]
        %v2505 = vld [vmem:[%s9 + $0x4c] sm:$0xf]
        %v2506 = vld [vmem:[%s9 + $0x50] sm:$0xf]
        %v2507 = vld [vmem:[%s9 + $0x54] sm:$0xf]
        %v2508 = vld [vmem:[%s9 + $0x58] sm:$0xf]
        %v2509 = vld [vmem:[%s9 + $0x5c] sm:$0xf]
        %v2510 = vld [vmem:[%s9 + $0x60] sm:$0xf]
        %v2511 = vld [vmem:[%s9 + $0x64] sm:$0xf]
        %v2512 = vld [vmem:[%s9 + $0x68] sm:$0xf]
        %v2513 = vld [vmem:[%s9 + $0x6c] sm:$0xf]
        %v2514 = vld [vmem:[%s9 + $0x70] sm:$0xf]
        %v2515 = vld [vmem:[%s9 + $0x74] sm:$0xf]
        %v2516 = vld [vmem:[%s9 + $0x78] sm:$0xf]
        %v2517 = vld [vmem:[%s9 + $0x7c] sm:$0xf]
        %v2518 = vld [vmem:[%s10] sm:$0x1]
        %v2519 = vld [vmem:[%s11] sm:$0x1]
        %v2520 = vld [vmem:[%s12] sm:$0x1]
        %v2521 = vpack.c.bf16 %v2468, %v2466
        %v2522 = vpack.c.bf16 %v2469, %v2467
        %v2523 = vpack.c.bf16 %v2472, %v2470
        %v2524 = vpack.c.bf16 %v2473, %v2471
        %v2525 = vpack.c.bf16 %v2476, %v2474
        %v2526 = vpack.c.bf16 %v2477, %v2475
        %v2527 = vpack.c.bf16 %v2480, %v2478
        %v2528 = vpack.c.bf16 %v2481, %v2479
        %v2529 = vpack.c.bf16 %v2484, %v2482
        %v2530 = vpack.c.bf16 %v2485, %v2483
        %v2532 = vperm.slane %v2518, 0
        %v2566 = vunpack.c.l.b16 %v2486
        %v2567 = vunpack.c.l.b16 %v2487
        %v2568 = vunpack.c.l.b16 %v2488
        %v2569 = vunpack.c.l.b16 %v2489
        %v2570 = vunpack.c.l.b16 %v2490
        %v2571 = vunpack.c.l.b16 %v2491
        %v2572 = vunpack.c.l.b16 %v2492
        %v2573 = vunpack.c.l.b16 %v2493
        %v2574 = vunpack.c.l.b16 %v2494
        %v2575 = vunpack.c.l.b16 %v2495
        %v2576 = vunpack.c.l.b16 %v2496
        %v2577 = vunpack.c.l.b16 %v2497
        %v2578 = vunpack.c.l.b16 %v2498
        %v2579 = vunpack.c.l.b16 %v2499
        %v2580 = vunpack.c.l.b16 %v2500
        %v2581 = vunpack.c.l.b16 %v2501
        %v2582 = vunpack.c.l.b16 %v2502
        %v2583 = vunpack.c.l.b16 %v2503
        %v2584 = vunpack.c.l.b16 %v2504
        %v2585 = vunpack.c.l.b16 %v2505
        %v2586 = vunpack.c.l.b16 %v2506
        %v2587 = vunpack.c.l.b16 %v2507
        %v2588 = vunpack.c.l.b16 %v2508
        %v2589 = vunpack.c.l.b16 %v2509
        %v2590 = vunpack.c.l.b16 %v2510
        %v2591 = vunpack.c.l.b16 %v2511
        %v2592 = vunpack.c.l.b16 %v2512
        %v2593 = vunpack.c.l.b16 %v2513
        %v2594 = vunpack.c.l.b16 %v2514
        %v2595 = vunpack.c.l.b16 %v2515
        %v2596 = vunpack.c.l.b16 %v2516
        %v2597 = vunpack.c.l.b16 %v2517
        %v2598 = vpack.c.b16 %v2567, %v2566
        %v2599 = vpack.c.b16 %v2569, %v2568
        %v2600 = vpack.c.b16 %v2571, %v2570
        %v2601 = vpack.c.b16 %v2573, %v2572
        %v2602 = vpack.c.b16 %v2575, %v2574
        %v2603 = vpack.c.b16 %v2577, %v2576
        %v2604 = vpack.c.b16 %v2579, %v2578
        %v2605 = vpack.c.b16 %v2581, %v2580
        %v2606 = vpack.c.b16 %v2583, %v2582
        %v2607 = vpack.c.b16 %v2585, %v2584
        %v2608 = vpack.c.b16 %v2587, %v2586
        %v2609 = vpack.c.b16 %v2589, %v2588
        %v2610 = vpack.c.b16 %v2591, %v2590
        %v2611 = vpack.c.b16 %v2593, %v2592
        %v2612 = vpack.c.b16 %v2595, %v2594
        %v2613 = vpack.c.b16 %v2597, %v2596
        %2630 = vmatpush.bf16.msra.mxu0 %v2605
        %2631 = vmatpush.bf16.msra.mxu0 %v2604
        %2632 = vmatpush.bf16.msra.mxu0 %v2603
        %2633 = vmatpush.bf16.msra.mxu0 %v2602
        %2634 = vmatpush.bf16.msra.mxu0 %v2601
        %2635 = vmatpush.bf16.msra.mxu0 %v2600
        %2636 = vmatpush.bf16.msra.mxu0 %v2599
        %2637 = vmatpush.bf16.msra.mxu0 %v2598
        %2638 = vmatmul.bf16.gmra.mxu0 %v2521
        %v2639 = vpop.f32.mrf.mxu0
        %v2640 = vadd.f32 %v2532, %v2639
        %v2641 = vpop.f32.mrf.mxu0
        %v2642 = vadd.f32 %v2532, %v2641
        %2643 = vmatmul.bf16.gmra.mxu0 %v2523
        %v2644 = vpop.f32.mrf.mxu0
        %v2645 = vadd.f32 %v2532, %v2644
        %v2646 = vpop.f32.mrf.mxu0
        %v2647 = vadd.f32 %v2532, %v2646
        %2648 = vmatmul.bf16.gmra.mxu0 %v2525
        %v2649 = vpop.f32.mrf.mxu0
        %v2650 = vadd.f32 %v2532, %v2649
        %v2651 = vpop.f32.mrf.mxu0
        %v2652 = vadd.f32 %v2532, %v2651
        %2653 = vmatmul.bf16.gmra.mxu0 %v2527
        %v2654 = vpop.f32.mrf.mxu0
        %v2655 = vadd.f32 %v2532, %v2654
        %v2656 = vpop.f32.mrf.mxu0
        %v2657 = vadd.f32 %v2532, %v2656
        %2658 = vmatmul.bf16.gmra.mxu0 %v2529
        %v2659 = vpop.f32.mrf.mxu0
        %v2660 = vadd.f32 %v2532, %v2659
        %v2661 = vpop.f32.mrf.mxu0
        %v2662 = vadd.f32 %v2532, %v2661
        %2663 = vdwg.mxu0
        %2664 = vmatpush.bf16.msra.mxu0 %v2613
        %2665 = vmatpush.bf16.msra.mxu0 %v2612
        %2666 = vmatpush.bf16.msra.mxu0 %v2611
        %2667 = vmatpush.bf16.msra.mxu0 %v2610
        %2668 = vmatpush.bf16.msra.mxu0 %v2609
        %2669 = vmatpush.bf16.msra.mxu0 %v2608
        %2670 = vmatpush.bf16.msra.mxu0 %v2607
        %2671 = vmatpush.bf16.msra.mxu0 %v2606
        %2672 = vmatmul.bf16.gmra.mxu0 %v2522
        %v2673 = vpop.f32.mrf.mxu0
        %v2674 = vadd.f32 %v2640, %v2673
        %v2675 = vpop.f32.mrf.mxu0
        %v2676 = vadd.f32 %v2642, %v2675
        %2677 = vmatmul.bf16.gmra.mxu0 %v2524
        %v2678 = vpop.f32.mrf.mxu0
        %v2679 = vadd.f32 %v2645, %v2678
        %v2680 = vpop.f32.mrf.mxu0
        %v2681 = vadd.f32 %v2647, %v2680
        %2682 = vmatmul.bf16.gmra.mxu0 %v2526
        %v2683 = vpop.f32.mrf.mxu0
        %v2684 = vadd.f32 %v2650, %v2683
        %v2685 = vpop.f32.mrf.mxu0
        %v2686 = vadd.f32 %v2652, %v2685
        %2687 = vmatmul.bf16.gmra.mxu0 %v2528
        %v2688 = vpop.f32.mrf.mxu0
        %v2689 = vadd.f32 %v2655, %v2688
        %v2690 = vpop.f32.mrf.mxu0
        %v2691 = vadd.f32 %v2657, %v2690
        %2692 = vmatmul.bf16.gmra.mxu0 %v2530
        %v2693 = vpop.f32.mrf.mxu0
        %v2694 = vadd.f32 %v2660, %v2693
        %v2695 = vpop.f32.mrf.mxu0
        %v2696 = vadd.f32 %v2662, %v2695
        %2697 = vdwg.mxu0
        %2698 = vadd.xlane.f32.xlu0 %v2674
        %v2699 = vpop.xlane.xlu0 %2698
        %2700 = vadd.xlane.f32.xlu0 %v2676
        %v2701 = vpop.xlane.xlu0 %2700
        %2702 = vadd.xlane.f32.xlu0 %v2679
        %v2703 = vpop.xlane.xlu0 %2702
        %2704 = vadd.xlane.f32.xlu0 %v2681
        %v2705 = vpop.xlane.xlu0 %2704
        %2706 = vadd.xlane.f32.xlu0 %v2684
        %v2707 = vpop.xlane.xlu0 %2706
        %2708 = vadd.xlane.f32.xlu0 %v2686
        %v2709 = vpop.xlane.xlu0 %2708
        %2710 = vadd.xlane.f32.xlu0 %v2689
        %v2711 = vpop.xlane.xlu0 %2710
        %2712 = vadd.xlane.f32.xlu0 %v2691
        %v2713 = vpop.xlane.xlu0 %2712
        %2714 = vadd.xlane.f32.xlu0 %v2694
        %v2715 = vpop.xlane.xlu0 %2714
        %2716 = vadd.xlane.f32.xlu0 %v2696
        %v2717 = vpop.xlane.xlu0 %2716
        %v2718 = vrcp.pop 128.0
        %v2719 = vmul.f32 128.0, %v2718
        %v2720 = vsub.f32 1.0, %v2719
        %v2721 = vmul.f32 %v2718, %v2720
        %v2722 = vadd.f32 %v2718, %v2721
        %vm2723 = vweird.f32 %v2718
        %v2724 = vsel %vm2723, %v2718, %v2722
        %v2725 = vmul.f32 %v2699, %v2724
        %v2726 = vmul.f32 %v2701, %v2724
        %v2727 = vmul.f32 %v2703, %v2724
        %v2728 = vmul.f32 %v2705, %v2724
        %v2729 = vmul.f32 %v2707, %v2724
        %v2730 = vmul.f32 %v2709, %v2724
        %v2731 = vmul.f32 %v2711, %v2724
        %v2732 = vmul.f32 %v2713, %v2724
        %v2733 = vmul.f32 %v2715, %v2724
        %v2734 = vmul.f32 %v2717, %v2724
        %v2735 = vsub.f32 %v2674, %v2725
        %v2736 = vsub.f32 %v2676, %v2726
        %v2737 = vsub.f32 %v2679, %v2727
        %v2738 = vsub.f32 %v2681, %v2728
        %v2739 = vsub.f32 %v2684, %v2729
        %v2740 = vsub.f32 %v2686, %v2730
        %v2741 = vsub.f32 %v2689, %v2731
        %v2742 = vsub.f32 %v2691, %v2732
        %v2743 = vsub.f32 %v2694, %v2733
        %v2744 = vsub.f32 %v2696, %v2734
        %v2745 = vmul.f32 %v2735, %v2735
        %v2746 = vmul.f32 %v2736, %v2736
        %v2747 = vmul.f32 %v2737, %v2737
        %v2748 = vmul.f32 %v2738, %v2738
        %v2749 = vmul.f32 %v2739, %v2739
        %v2750 = vmul.f32 %v2740, %v2740
        %v2751 = vmul.f32 %v2741, %v2741
        %v2752 = vmul.f32 %v2742, %v2742
        %v2753 = vmul.f32 %v2743, %v2743
        %v2754 = vmul.f32 %v2744, %v2744
        %2755 = vadd.xlane.f32.xlu0 %v2745
        %v2756 = vpop.xlane.xlu0 %2755
        %2757 = vadd.xlane.f32.xlu0 %v2746
        %v2758 = vpop.xlane.xlu0 %2757
        %2759 = vadd.xlane.f32.xlu0 %v2747
        %v2760 = vpop.xlane.xlu0 %2759
        %2761 = vadd.xlane.f32.xlu0 %v2748
        %v2762 = vpop.xlane.xlu0 %2761
        %2763 = vadd.xlane.f32.xlu0 %v2749
        %v2764 = vpop.xlane.xlu0 %2763
        %2765 = vadd.xlane.f32.xlu0 %v2750
        %v2766 = vpop.xlane.xlu0 %2765
        %2767 = vadd.xlane.f32.xlu0 %v2751
        %v2768 = vpop.xlane.xlu0 %2767
        %2769 = vadd.xlane.f32.xlu0 %v2752
        %v2770 = vpop.xlane.xlu0 %2769
        %2771 = vadd.xlane.f32.xlu0 %v2753
        %v2772 = vpop.xlane.xlu0 %2771
        %2773 = vadd.xlane.f32.xlu0 %v2754
        %v2774 = vpop.xlane.xlu0 %2773
        %v2775 = vmul.f32 %v2756, %v2724
        %v2776 = vmul.f32 %v2758, %v2724
        %v2777 = vmul.f32 %v2760, %v2724
        %v2778 = vmul.f32 %v2762, %v2724
        %v2779 = vmul.f32 %v2764, %v2724
        %v2780 = vmul.f32 %v2766, %v2724
        %v2781 = vmul.f32 %v2768, %v2724
        %v2782 = vmul.f32 %v2770, %v2724
        %v2783 = vmul.f32 %v2772, %v2724
        %v2784 = vmul.f32 %v2774, %v2724
        %v2785 = vadd.f32 %v2775, 1e-05
        %v2786 = vadd.f32 %v2776, 1e-05
        %v2787 = vadd.f32 %v2777, 1e-05
        %v2788 = vadd.f32 %v2778, 1e-05
        %v2789 = vadd.f32 %v2779, 1e-05
        %v2790 = vadd.f32 %v2780, 1e-05
        %v2791 = vadd.f32 %v2781, 1e-05
        %v2792 = vadd.f32 %v2782, 1e-05
        %v2793 = vadd.f32 %v2783, 1e-05
        %v2794 = vadd.f32 %v2784, 1e-05
        %v2795 = vrsqrt.pop %v2785
        %v2796 = vmul.f32 %v2795, %v2785
        %v2797 = vmul.f32 %v2796, %v2795
        %v2798 = vmul.f32 0.5, %v2797
        %v2799 = vsub.f32 1.5, %v2798
        %v2800 = vmul.f32 %v2795, %v2799
        %vm2801 = vweird.f32 %v2785
        %vm2802 = vweird.f32 %v2795
        %vm2803 = vmor %vm2801, %vm2802
        %v2804 = vsel %vm2803, %v2795, %v2800
        %v2805 = vrsqrt.pop %v2786
        %v2806 = vmul.f32 %v2805, %v2786
        %v2807 = vmul.f32 %v2806, %v2805
        %v2808 = vmul.f32 0.5, %v2807
        %v2809 = vsub.f32 1.5, %v2808
        %v2810 = vmul.f32 %v2805, %v2809
        %vm2811 = vweird.f32 %v2786
        %vm2812 = vweird.f32 %v2805
        %vm2813 = vmor %vm2811, %vm2812
        %v2814 = vsel %vm2813, %v2805, %v2810
        %v2815 = vrsqrt.pop %v2787
        %v2816 = vmul.f32 %v2815, %v2787
        %v2817 = vmul.f32 %v2816, %v2815
        %v2818 = vmul.f32 0.5, %v2817
        %v2819 = vsub.f32 1.5, %v2818
        %v2820 = vmul.f32 %v2815, %v2819
        %vm2821 = vweird.f32 %v2787
        %vm2822 = vweird.f32 %v2815
        %vm2823 = vmor %vm2821, %vm2822
        %v2824 = vsel %vm2823, %v2815, %v2820
        %v2825 = vrsqrt.pop %v2788
        %v2826 = vmul.f32 %v2825, %v2788
        %v2827 = vmul.f32 %v2826, %v2825
        %v2828 = vmul.f32 0.5, %v2827
        %v2829 = vsub.f32 1.5, %v2828
        %v2830 = vmul.f32 %v2825, %v2829
        %vm2831 = vweird.f32 %v2788
        %vm2832 = vweird.f32 %v2825
        %vm2833 = vmor %vm2831, %vm2832
        %v2834 = vsel %vm2833, %v2825, %v2830
        %v2835 = vrsqrt.pop %v2789
        %v2836 = vmul.f32 %v2835, %v2789
        %v2837 = vmul.f32 %v2836, %v2835
        %v2838 = vmul.f32 0.5, %v2837
        %v2839 = vsub.f32 1.5, %v2838
        %v2840 = vmul.f32 %v2835, %v2839
        %vm2841 = vweird.f32 %v2789
        %vm2842 = vweird.f32 %v2835
        %vm2843 = vmor %vm2841, %vm2842
        %v2844 = vsel %vm2843, %v2835, %v2840
        %v2845 = vrsqrt.pop %v2790
        %v2846 = vmul.f32 %v2845, %v2790
        %v2847 = vmul.f32 %v2846, %v2845
        %v2848 = vmul.f32 0.5, %v2847
        %v2849 = vsub.f32 1.5, %v2848
        %v2850 = vmul.f32 %v2845, %v2849
        %vm2851 = vweird.f32 %v2790
        %vm2852 = vweird.f32 %v2845
        %vm2853 = vmor %vm2851, %vm2852
        %v2854 = vsel %vm2853, %v2845, %v2850
        %v2855 = vrsqrt.pop %v2791
        %v2856 = vmul.f32 %v2855, %v2791
        %v2857 = vmul.f32 %v2856, %v2855
        %v2858 = vmul.f32 0.5, %v2857
        %v2859 = vsub.f32 1.5, %v2858
        %v2860 = vmul.f32 %v2855, %v2859
        %vm2861 = vweird.f32 %v2791
        %vm2862 = vweird.f32 %v2855
        %vm2863 = vmor %vm2861, %vm2862
        %v2864 = vsel %vm2863, %v2855, %v2860
        %v2865 = vrsqrt.pop %v2792
        %v2866 = vmul.f32 %v2865, %v2792
        %v2867 = vmul.f32 %v2866, %v2865
        %v2868 = vmul.f32 0.5, %v2867
        %v2869 = vsub.f32 1.5, %v2868
        %v2870 = vmul.f32 %v2865, %v2869
        %vm2871 = vweird.f32 %v2792
        %vm2872 = vweird.f32 %v2865
        %vm2873 = vmor %vm2871, %vm2872
        %v2874 = vsel %vm2873, %v2865, %v2870
        %v2875 = vrsqrt.pop %v2793
        %v2876 = vmul.f32 %v2875, %v2793
        %v2877 = vmul.f32 %v2876, %v2875
        %v2878 = vmul.f32 0.5, %v2877
        %v2879 = vsub.f32 1.5, %v2878
        %v2880 = vmul.f32 %v2875, %v2879
        %vm2881 = vweird.f32 %v2793
        %vm2882 = vweird.f32 %v2875
        %vm2883 = vmor %vm2881, %vm2882
        %v2884 = vsel %vm2883, %v2875, %v2880
        %v2885 = vrsqrt.pop %v2794
        %v2886 = vmul.f32 %v2885, %v2794
        %v2887 = vmul.f32 %v2886, %v2885
        %v2888 = vmul.f32 0.5, %v2887
        %v2889 = vsub.f32 1.5, %v2888
        %v2890 = vmul.f32 %v2885, %v2889
        %vm2891 = vweird.f32 %v2794
        %vm2892 = vweird.f32 %v2885
        %vm2893 = vmor %vm2891, %vm2892
        %v2894 = vsel %vm2893, %v2885, %v2890
        %v2895 = vmul.f32 %v2735, %v2804
        %v2896 = vmul.f32 %v2736, %v2814
        %v2897 = vmul.f32 %v2737, %v2824
        %v2898 = vmul.f32 %v2738, %v2834
        %v2899 = vmul.f32 %v2739, %v2844
        %v2900 = vmul.f32 %v2740, %v2854
        %v2901 = vmul.f32 %v2741, %v2864
        %v2902 = vmul.f32 %v2742, %v2874
        %v2903 = vmul.f32 %v2743, %v2884
        %v2904 = vmul.f32 %v2744, %v2894
        %v2906 = vperm.slane %v2519, 0
        %v2908 = vmul.f32 %v2895, %v2906
        %v2909 = vmul.f32 %v2896, %v2906
        %v2910 = vmul.f32 %v2897, %v2906
        %v2911 = vmul.f32 %v2898, %v2906
        %v2912 = vmul.f32 %v2899, %v2906
        %v2913 = vmul.f32 %v2900, %v2906
        %v2914 = vmul.f32 %v2901, %v2906
        %v2915 = vmul.f32 %v2902, %v2906
        %v2916 = vmul.f32 %v2903, %v2906
        %v2917 = vmul.f32 %v2904, %v2906
        %v2919 = vperm.slane %v2520, 0
        %v2921 = vadd.f32 %v2908, %v2919
        %v2922 = vadd.f32 %v2909, %v2919
        %v2923 = vadd.f32 %v2910, %v2919
        %v2924 = vadd.f32 %v2911, %v2919
        %v2925 = vadd.f32 %v2912, %v2919
        %v2926 = vadd.f32 %v2913, %v2919
        %v2927 = vadd.f32 %v2914, %v2919
        %v2928 = vadd.f32 %v2915, %v2919
        %v2929 = vadd.f32 %v2916, %v2919
        %v2930 = vadd.f32 %v2917, %v2919
        %v2931 = vmax.f32 %v2921, 0.0
        %v2932 = vmax.f32 %v2922, 0.0
        %v2933 = vmax.f32 %v2923, 0.0
        %v2934 = vmax.f32 %v2924, 0.0
        %v2935 = vmax.f32 %v2925, 0.0
        %v2936 = vmax.f32 %v2926, 0.0
        %v2937 = vmax.f32 %v2927, 0.0
        %v2938 = vmax.f32 %v2928, 0.0
        %v2939 = vmax.f32 %v2929, 0.0
        %v2940 = vmax.f32 %v2930, 0.0
        %v2941 = vld [vmem:[%s13] sm:$0xf]
        %v2942 = vld [vmem:[%s13 + $0x4] sm:$0xf]
        %v2943 = vld [vmem:[%s13 + $0x8] sm:$0xf]
        %v2944 = vld [vmem:[%s13 + $0xc] sm:$0xf]
        %v2945 = vld [vmem:[%s13 + $0x10] sm:$0xf]
        %v2946 = vld [vmem:[%s13 + $0x14] sm:$0xf]
        %v2947 = vld [vmem:[%s13 + $0x18] sm:$0xf]
        %v2948 = vld [vmem:[%s13 + $0x1c] sm:$0xf]
        %v2949 = vld [vmem:[%s13 + $0x20] sm:$0xf]
        %v2950 = vld [vmem:[%s13 + $0x24] sm:$0xf]
        %v2951 = vld [vmem:[%s13 + $0x28] sm:$0xf]
        %v2952 = vld [vmem:[%s13 + $0x2c] sm:$0xf]
        %v2953 = vld [vmem:[%s13 + $0x30] sm:$0xf]
        %v2954 = vld [vmem:[%s13 + $0x34] sm:$0xf]
        %v2955 = vld [vmem:[%s13 + $0x38] sm:$0xf]
        %v2956 = vld [vmem:[%s13 + $0x3c] sm:$0xf]
        %v2957 = vld [vmem:[%s14] sm:$0x1]
        %v2958 = vld [vmem:[%s15] sm:$0x1]
        %v2959 = vld [vmem:[%s16] sm:$0x1]
        %v2960 = vpack.c.bf16 %v2932, %v2931
        %v2961 = vpack.c.bf16 %v2934, %v2933
        %v2962 = vpack.c.bf16 %v2936, %v2935
        %v2963 = vpack.c.bf16 %v2938, %v2937
        %v2964 = vpack.c.bf16 %v2940, %v2939
        %v2966 = vperm.slane %v2957, 0
        %v2984 = vunpack.c.l.b16 %v2941
        %v2985 = vunpack.c.l.b16 %v2942
        %v2986 = vunpack.c.l.b16 %v2943
        %v2987 = vunpack.c.l.b16 %v2944
        %v2988 = vunpack.c.l.b16 %v2945
        %v2989 = vunpack.c.l.b16 %v2946
        %v2990 = vunpack.c.l.b16 %v2947
        %v2991 = vunpack.c.l.b16 %v2948
        %v2992 = vunpack.c.l.b16 %v2949
        %v2993 = vunpack.c.l.b16 %v2950
        %v2994 = vunpack.c.l.b16 %v2951
        %v2995 = vunpack.c.l.b16 %v2952
        %v2996 = vunpack.c.l.b16 %v2953
        %v2997 = vunpack.c.l.b16 %v2954
        %v2998 = vunpack.c.l.b16 %v2955
        %v2999 = vunpack.c.l.b16 %v2956
        %v3000 = vpack.c.b16 %v2985, %v2984
        %v3001 = vpack.c.b16 %v2987, %v2986
        %v3002 = vpack.c.b16 %v2989, %v2988
        %v3003 = vpack.c.b16 %v2991, %v2990
        %v3004 = vpack.c.b16 %v2993, %v2992
        %v3005 = vpack.c.b16 %v2995, %v2994
        %v3006 = vpack.c.b16 %v2997, %v2996
        %v3007 = vpack.c.b16 %v2999, %v2998
        %3016 = vmatpush.bf16.msra.mxu0 %v3007
        %3017 = vmatpush.bf16.msra.mxu0 %v3006
        %3018 = vmatpush.bf16.msra.mxu0 %v3005
        %3019 = vmatpush.bf16.msra.mxu0 %v3004
        %3020 = vmatpush.bf16.msra.mxu0 %v3003
        %3021 = vmatpush.bf16.msra.mxu0 %v3002
        %3022 = vmatpush.bf16.msra.mxu0 %v3001
        %3023 = vmatpush.bf16.msra.mxu0 %v3000
        %3024 = vmatmul.bf16.gmra.mxu0 %v2960
        %v3025 = vpop.f32.mrf.mxu0
        %v3026 = vadd.f32 %v2966, %v3025
        %v3027 = vpop.f32.mrf.mxu0
        %v3028 = vadd.f32 %v2966, %v3027
        %3029 = vmatmul.bf16.gmra.mxu0 %v2961
        %v3030 = vpop.f32.mrf.mxu0
        %v3031 = vadd.f32 %v2966, %v3030
        %v3032 = vpop.f32.mrf.mxu0
        %v3033 = vadd.f32 %v2966, %v3032
        %3034 = vmatmul.bf16.gmra.mxu0 %v2962
        %v3035 = vpop.f32.mrf.mxu0
        %v3036 = vadd.f32 %v2966, %v3035
        %v3037 = vpop.f32.mrf.mxu0
        %v3038 = vadd.f32 %v2966, %v3037
        %3039 = vmatmul.bf16.gmra.mxu0 %v2963
        %v3040 = vpop.f32.mrf.mxu0
        %v3041 = vadd.f32 %v2966, %v3040
        %v3042 = vpop.f32.mrf.mxu0
        %v3043 = vadd.f32 %v2966, %v3042
        %3044 = vmatmul.bf16.gmra.mxu0 %v2964
        %v3045 = vpop.f32.mrf.mxu0
        %v3046 = vadd.f32 %v2966, %v3045
        %v3047 = vpop.f32.mrf.mxu0
        %v3048 = vadd.f32 %v2966, %v3047
        %3049 = vdwg.mxu0
        %vm3050 = vcmask 523264
        %v3051 = vsel %vm3050, %v3026, 0.0
        %3052 = vadd.xlane.f32.xlu0 %v3051
        %v3053 = vpop.xlane.xlu0 %3052
        %v3054 = vsel %vm3050, %v3028, 0.0
        %3055 = vadd.xlane.f32.xlu0 %v3054
        %v3056 = vpop.xlane.xlu0 %3055
        %v3057 = vsel %vm3050, %v3031, 0.0
        %3058 = vadd.xlane.f32.xlu0 %v3057
        %v3059 = vpop.xlane.xlu0 %3058
        %v3060 = vsel %vm3050, %v3033, 0.0
        %3061 = vadd.xlane.f32.xlu0 %v3060
        %v3062 = vpop.xlane.xlu0 %3061
        %v3063 = vsel %vm3050, %v3036, 0.0
        %3064 = vadd.xlane.f32.xlu0 %v3063
        %v3065 = vpop.xlane.xlu0 %3064
        %v3066 = vsel %vm3050, %v3038, 0.0
        %3067 = vadd.xlane.f32.xlu0 %v3066
        %v3068 = vpop.xlane.xlu0 %3067
        %v3069 = vsel %vm3050, %v3041, 0.0
        %3070 = vadd.xlane.f32.xlu0 %v3069
        %v3071 = vpop.xlane.xlu0 %3070
        %v3072 = vsel %vm3050, %v3043, 0.0
        %3073 = vadd.xlane.f32.xlu0 %v3072
        %v3074 = vpop.xlane.xlu0 %3073
        %v3075 = vsel %vm3050, %v3046, 0.0
        %3076 = vadd.xlane.f32.xlu0 %v3075
        %v3077 = vpop.xlane.xlu0 %3076
        %v3078 = vsel %vm3050, %v3048, 0.0
        %3079 = vadd.xlane.f32.xlu0 %v3078
        %v3080 = vpop.xlane.xlu0 %3079
        %v3081 = vrcp.pop 64.0
        %v3082 = vmul.f32 64.0, %v3081
        %v3083 = vsub.f32 1.0, %v3082
        %v3084 = vmul.f32 %v3081, %v3083
        %v3085 = vadd.f32 %v3081, %v3084
        %vm3086 = vweird.f32 %v3081
        %v3087 = vsel %vm3086, %v3081, %v3085
        %v3088 = vmul.f32 %v3053, %v3087
        %v3089 = vmul.f32 %v3056, %v3087
        %v3090 = vmul.f32 %v3059, %v3087
        %v3091 = vmul.f32 %v3062, %v3087
        %v3092 = vmul.f32 %v3065, %v3087
        %v3093 = vmul.f32 %v3068, %v3087
        %v3094 = vmul.f32 %v3071, %v3087
        %v3095 = vmul.f32 %v3074, %v3087
        %v3096 = vmul.f32 %v3077, %v3087
        %v3097 = vmul.f32 %v3080, %v3087
        %v3098 = vsub.f32 %v3026, %v3088
        %v3099 = vsub.f32 %v3028, %v3089
        %v3100 = vsub.f32 %v3031, %v3090
        %v3101 = vsub.f32 %v3033, %v3091
        %v3102 = vsub.f32 %v3036, %v3092
        %v3103 = vsub.f32 %v3038, %v3093
        %v3104 = vsub.f32 %v3041, %v3094
        %v3105 = vsub.f32 %v3043, %v3095
        %v3106 = vsub.f32 %v3046, %v3096
        %v3107 = vsub.f32 %v3048, %v3097
        %v3108 = vmul.f32 %v3098, %v3098
        %v3109 = vmul.f32 %v3099, %v3099
        %v3110 = vmul.f32 %v3100, %v3100
        %v3111 = vmul.f32 %v3101, %v3101
        %v3112 = vmul.f32 %v3102, %v3102
        %v3113 = vmul.f32 %v3103, %v3103
        %v3114 = vmul.f32 %v3104, %v3104
        %v3115 = vmul.f32 %v3105, %v3105
        %v3116 = vmul.f32 %v3106, %v3106
        %v3117 = vmul.f32 %v3107, %v3107
        %v3118 = vsel %vm3050, %v3108, 0.0
        %3119 = vadd.xlane.f32.xlu0 %v3118
        %v3120 = vpop.xlane.xlu0 %3119
        %v3121 = vsel %vm3050, %v3109, 0.0
        %3122 = vadd.xlane.f32.xlu0 %v3121
        %v3123 = vpop.xlane.xlu0 %3122
        %v3124 = vsel %vm3050, %v3110, 0.0
        %3125 = vadd.xlane.f32.xlu0 %v3124
        %v3126 = vpop.xlane.xlu0 %3125
        %v3127 = vsel %vm3050, %v3111, 0.0
        %3128 = vadd.xlane.f32.xlu0 %v3127
        %v3129 = vpop.xlane.xlu0 %3128
        %v3130 = vsel %vm3050, %v3112, 0.0
        %3131 = vadd.xlane.f32.xlu0 %v3130
        %v3132 = vpop.xlane.xlu0 %3131
        %v3133 = vsel %vm3050, %v3113, 0.0
        %3134 = vadd.xlane.f32.xlu0 %v3133
        %v3135 = vpop.xlane.xlu0 %3134
        %v3136 = vsel %vm3050, %v3114, 0.0
        %3137 = vadd.xlane.f32.xlu0 %v3136
        %v3138 = vpop.xlane.xlu0 %3137
        %v3139 = vsel %vm3050, %v3115, 0.0
        %3140 = vadd.xlane.f32.xlu0 %v3139
        %v3141 = vpop.xlane.xlu0 %3140
        %v3142 = vsel %vm3050, %v3116, 0.0
        %3143 = vadd.xlane.f32.xlu0 %v3142
        %v3144 = vpop.xlane.xlu0 %3143
        %v3145 = vsel %vm3050, %v3117, 0.0
        %3146 = vadd.xlane.f32.xlu0 %v3145
        %v3147 = vpop.xlane.xlu0 %3146
        %v3148 = vmul.f32 %v3120, %v3087
        %v3149 = vmul.f32 %v3123, %v3087
        %v3150 = vmul.f32 %v3126, %v3087
        %v3151 = vmul.f32 %v3129, %v3087
        %v3152 = vmul.f32 %v3132, %v3087
        %v3153 = vmul.f32 %v3135, %v3087
        %v3154 = vmul.f32 %v3138, %v3087
        %v3155 = vmul.f32 %v3141, %v3087
        %v3156 = vmul.f32 %v3144, %v3087
        %v3157 = vmul.f32 %v3147, %v3087
        %v3158 = vadd.f32 %v3148, 1e-05
        %v3159 = vadd.f32 %v3149, 1e-05
        %v3160 = vadd.f32 %v3150, 1e-05
        %v3161 = vadd.f32 %v3151, 1e-05
        %v3162 = vadd.f32 %v3152, 1e-05
        %v3163 = vadd.f32 %v3153, 1e-05
        %v3164 = vadd.f32 %v3154, 1e-05
        %v3165 = vadd.f32 %v3155, 1e-05
        %v3166 = vadd.f32 %v3156, 1e-05
        %v3167 = vadd.f32 %v3157, 1e-05
        %v3168 = vrsqrt.pop %v3158
        %v3169 = vmul.f32 %v3168, %v3158
        %v3170 = vmul.f32 %v3169, %v3168
        %v3171 = vmul.f32 0.5, %v3170
        %v3172 = vsub.f32 1.5, %v3171
        %v3173 = vmul.f32 %v3168, %v3172
        %vm3174 = vweird.f32 %v3158
        %vm3175 = vweird.f32 %v3168
        %vm3176 = vmor %vm3174, %vm3175
        %v3177 = vsel %vm3176, %v3168, %v3173
        %v3178 = vrsqrt.pop %v3159
        %v3179 = vmul.f32 %v3178, %v3159
        %v3180 = vmul.f32 %v3179, %v3178
        %v3181 = vmul.f32 0.5, %v3180
        %v3182 = vsub.f32 1.5, %v3181
        %v3183 = vmul.f32 %v3178, %v3182
        %vm3184 = vweird.f32 %v3159
        %vm3185 = vweird.f32 %v3178
        %vm3186 = vmor %vm3184, %vm3185
        %v3187 = vsel %vm3186, %v3178, %v3183
        %v3188 = vrsqrt.pop %v3160
        %v3189 = vmul.f32 %v3188, %v3160
        %v3190 = vmul.f32 %v3189, %v3188
        %v3191 = vmul.f32 0.5, %v3190
        %v3192 = vsub.f32 1.5, %v3191
        %v3193 = vmul.f32 %v3188, %v3192
        %vm3194 = vweird.f32 %v3160
        %vm3195 = vweird.f32 %v3188
        %vm3196 = vmor %vm3194, %vm3195
        %v3197 = vsel %vm3196, %v3188, %v3193
        %v3198 = vrsqrt.pop %v3161
        %v3199 = vmul.f32 %v3198, %v3161
        %v3200 = vmul.f32 %v3199, %v3198
        %v3201 = vmul.f32 0.5, %v3200
        %v3202 = vsub.f32 1.5, %v3201
        %v3203 = vmul.f32 %v3198, %v3202
        %vm3204 = vweird.f32 %v3161
        %vm3205 = vweird.f32 %v3198
        %vm3206 = vmor %vm3204, %vm3205
        %v3207 = vsel %vm3206, %v3198, %v3203
        %v3208 = vrsqrt.pop %v3162
        %v3209 = vmul.f32 %v3208, %v3162
        %v3210 = vmul.f32 %v3209, %v3208
        %v3211 = vmul.f32 0.5, %v3210
        %v3212 = vsub.f32 1.5, %v3211
        %v3213 = vmul.f32 %v3208, %v3212
        %vm3214 = vweird.f32 %v3162
        %vm3215 = vweird.f32 %v3208
        %vm3216 = vmor %vm3214, %vm3215
        %v3217 = vsel %vm3216, %v3208, %v3213
        %v3218 = vrsqrt.pop %v3163
        %v3219 = vmul.f32 %v3218, %v3163
        %v3220 = vmul.f32 %v3219, %v3218
        %v3221 = vmul.f32 0.5, %v3220
        %v3222 = vsub.f32 1.5, %v3221
        %v3223 = vmul.f32 %v3218, %v3222
        %vm3224 = vweird.f32 %v3163
        %vm3225 = vweird.f32 %v3218
        %vm3226 = vmor %vm3224, %vm3225
        %v3227 = vsel %vm3226, %v3218, %v3223
        %v3228 = vrsqrt.pop %v3164
        %v3229 = vmul.f32 %v3228, %v3164
        %v3230 = vmul.f32 %v3229, %v3228
        %v3231 = vmul.f32 0.5, %v3230
        %v3232 = vsub.f32 1.5, %v3231
        %v3233 = vmul.f32 %v3228, %v3232
        %vm3234 = vweird.f32 %v3164
        %vm3235 = vweird.f32 %v3228
        %vm3236 = vmor %vm3234, %vm3235
        %v3237 = vsel %vm3236, %v3228, %v3233
        %v3238 = vrsqrt.pop %v3165
        %v3239 = vmul.f32 %v3238, %v3165
        %v3240 = vmul.f32 %v3239, %v3238
        %v3241 = vmul.f32 0.5, %v3240
        %v3242 = vsub.f32 1.5, %v3241
        %v3243 = vmul.f32 %v3238, %v3242
        %vm3244 = vweird.f32 %v3165
        %vm3245 = vweird.f32 %v3238
        %vm3246 = vmor %vm3244, %vm3245
        %v3247 = vsel %vm3246, %v3238, %v3243
        %v3248 = vrsqrt.pop %v3166
        %v3249 = vmul.f32 %v3248, %v3166
        %v3250 = vmul.f32 %v3249, %v3248
        %v3251 = vmul.f32 0.5, %v3250
        %v3252 = vsub.f32 1.5, %v3251
        %v3253 = vmul.f32 %v3248, %v3252
        %vm3254 = vweird.f32 %v3166
        %vm3255 = vweird.f32 %v3248
        %vm3256 = vmor %vm3254, %vm3255
        %v3257 = vsel %vm3256, %v3248, %v3253
        %v3258 = vrsqrt.pop %v3167
        %v3259 = vmul.f32 %v3258, %v3167
        %v3260 = vmul.f32 %v3259, %v3258
        %v3261 = vmul.f32 0.5, %v3260
        %v3262 = vsub.f32 1.5, %v3261
        %v3263 = vmul.f32 %v3258, %v3262
        %vm3264 = vweird.f32 %v3167
        %vm3265 = vweird.f32 %v3258
        %vm3266 = vmor %vm3264, %vm3265
        %v3267 = vsel %vm3266, %v3258, %v3263
        %v3268 = vmul.f32 %v3098, %v3177
        %v3269 = vmul.f32 %v3099, %v3187
        %v3270 = vmul.f32 %v3100, %v3197
        %v3271 = vmul.f32 %v3101, %v3207
        %v3272 = vmul.f32 %v3102, %v3217
        %v3273 = vmul.f32 %v3103, %v3227
        %v3274 = vmul.f32 %v3104, %v3237
        %v3275 = vmul.f32 %v3105, %v3247
        %v3276 = vmul.f32 %v3106, %v3257
        %v3277 = vmul.f32 %v3107, %v3267
        %v3279 = vperm.slane %v2958, 0
        %v3281 = vmul.f32 %v3268, %v3279
        %v3282 = vmul.f32 %v3269, %v3279
        %v3283 = vmul.f32 %v3270, %v3279
        %v3284 = vmul.f32 %v3271, %v3279
        %v3285 = vmul.f32 %v3272, %v3279
        %v3286 = vmul.f32 %v3273, %v3279
        %v3287 = vmul.f32 %v3274, %v3279
        %v3288 = vmul.f32 %v3275, %v3279
        %v3289 = vmul.f32 %v3276, %v3279
        %v3290 = vmul.f32 %v3277, %v3279
        %v3292 = vperm.slane %v2959, 0
        %v3294 = vadd.f32 %v3281, %v3292
        %v3295 = vadd.f32 %v3282, %v3292
        %v3296 = vadd.f32 %v3283, %v3292
        %v3297 = vadd.f32 %v3284, %v3292
        %v3298 = vadd.f32 %v3285, %v3292
        %v3299 = vadd.f32 %v3286, %v3292
        %v3300 = vadd.f32 %v3287, %v3292
        %v3301 = vadd.f32 %v3288, %v3292
        %v3302 = vadd.f32 %v3289, %v3292
        %v3303 = vadd.f32 %v3290, %v3292
        %v3304 = vmax.f32 %v3294, 0.0
        %v3305 = vmax.f32 %v3295, 0.0
        %v3306 = vmax.f32 %v3296, 0.0
        %v3307 = vmax.f32 %v3297, 0.0
        %v3308 = vmax.f32 %v3298, 0.0
        %v3309 = vmax.f32 %v3299, 0.0
        %v3310 = vmax.f32 %v3300, 0.0
        %v3311 = vmax.f32 %v3301, 0.0
        %v3312 = vmax.f32 %v3302, 0.0
        %v3313 = vmax.f32 %v3303, 0.0
        %v3314 = vld [vmem:[%s17] sm:$0x1]
        %v3316 = vperm.slane %v3314, 0
        %v3318 = vmul.f32 %v3304, %v3316
        %v3319 = vmul.f32 %v3305, %v3316
        %v3320 = vmul.f32 %v3306, %v3316
        %v3321 = vmul.f32 %v3307, %v3316
        %v3322 = vmul.f32 %v3308, %v3316
        %v3323 = vmul.f32 %v3309, %v3316
        %v3324 = vmul.f32 %v3310, %v3316
        %v3325 = vmul.f32 %v3311, %v3316
        %v3326 = vmul.f32 %v3312, %v3316
        %v3327 = vmul.f32 %v3313, %v3316
        %v3328 = vsel %vm3050, %v3318, 0.0
        %3329 = vadd.xlane.f32.xlu0 %v3328
        %v3330 = vpop.xlane.xlu0 %3329
        %v3331 = vsel %vm3050, %v3319, 0.0
        %3332 = vadd.xlane.f32.xlu0 %v3331
        %v3333 = vpop.xlane.xlu0 %3332
        %v3334 = vsel %vm3050, %v3320, 0.0
        %3335 = vadd.xlane.f32.xlu0 %v3334
        %v3336 = vpop.xlane.xlu0 %3335
        %v3337 = vsel %vm3050, %v3321, 0.0
        %3338 = vadd.xlane.f32.xlu0 %v3337
        %v3339 = vpop.xlane.xlu0 %3338
        %v3340 = vsel %vm3050, %v3322, 0.0
        %3341 = vadd.xlane.f32.xlu0 %v3340
        %v3342 = vpop.xlane.xlu0 %3341
        %v3343 = vsel %vm3050, %v3323, 0.0
        %3344 = vadd.xlane.f32.xlu0 %v3343
        %v3345 = vpop.xlane.xlu0 %3344
        %v3346 = vsel %vm3050, %v3324, 0.0
        %3347 = vadd.xlane.f32.xlu0 %v3346
        %v3348 = vpop.xlane.xlu0 %3347
        %v3349 = vsel %vm3050, %v3325, 0.0
        %3350 = vadd.xlane.f32.xlu0 %v3349
        %v3351 = vpop.xlane.xlu0 %3350
        %v3352 = vsel %vm3050, %v3326, 0.0
        %3353 = vadd.xlane.f32.xlu0 %v3352
        %v3354 = vpop.xlane.xlu0 %3353
        %v3355 = vsel %vm3050, %v3327, 0.0
        %3356 = vadd.xlane.f32.xlu0 %v3355
        %v3357 = vpop.xlane.xlu0 %3356
        %v3358 = vld [vmem:[#allocation2] sm:$0x1]
        %v3360 = vperm.slane %v3358, 0
        %v3362 = vadd.f32 %v3330, %v3360
        %v3363 = vadd.f32 %v3333, %v3360
        %v3364 = vadd.f32 %v3336, %v3360
        %v3365 = vadd.f32 %v3339, %v3360
        %v3366 = vadd.f32 %v3342, %v3360
        %v3367 = vadd.f32 %v3345, %v3360
        %v3368 = vadd.f32 %v3348, %v3360
        %v3369 = vadd.f32 %v3351, %v3360
        %v3370 = vadd.f32 %v3354, %v3360
        %v3371 = vadd.f32 %v3357, %v3360
        %v3372 = vxor.u32 %v3362, 2147483648
        %v3373 = vxor.u32 %v3363, 2147483648
        %v3374 = vxor.u32 %v3364, 2147483648
        %v3375 = vxor.u32 %v3365, 2147483648
        %v3376 = vxor.u32 %v3366, 2147483648
        %v3377 = vxor.u32 %v3367, 2147483648
        %v3378 = vxor.u32 %v3368, 2147483648
        %v3379 = vxor.u32 %v3369, 2147483648
        %v3380 = vxor.u32 %v3370, 2147483648
        %v3381 = vxor.u32 %v3371, 2147483648
        %v3382 = vmul.f32 %v3372, 1.442695
        %v3383 = vpow.pop %v3382
        %v3384 = vmul.f32 %v3373, 1.442695
        %v3385 = vpow.pop %v3384
        %v3386 = vmul.f32 %v3374, 1.442695
        %v3387 = vpow.pop %v3386
        %v3388 = vmul.f32 %v3375, 1.442695
        %v3389 = vpow.pop %v3388
        %v3390 = vmul.f32 %v3376, 1.442695
        %v3391 = vpow.pop %v3390
        %v3392 = vmul.f32 %v3377, 1.442695
        %v3393 = vpow.pop %v3392
        %v3394 = vmul.f32 %v3378, 1.442695
        %v3395 = vpow.pop %v3394
        %v3396 = vmul.f32 %v3379, 1.442695
        %v3397 = vpow.pop %v3396
        %v3398 = vmul.f32 %v3380, 1.442695
        %v3399 = vpow.pop %v3398
        %v3400 = vmul.f32 %v3381, 1.442695
        %v3401 = vpow.pop %v3400
        %v3402 = vadd.f32 %v3383, 1.0
        %v3403 = vadd.f32 %v3385, 1.0
        %v3404 = vadd.f32 %v3387, 1.0
        %v3405 = vadd.f32 %v3389, 1.0
        %v3406 = vadd.f32 %v3391, 1.0
        %v3407 = vadd.f32 %v3393, 1.0
        %v3408 = vadd.f32 %v3395, 1.0
        %v3409 = vadd.f32 %v3397, 1.0
        %v3410 = vadd.f32 %v3399, 1.0
        %v3411 = vadd.f32 %v3401, 1.0
        %v3412 = vrcp.pop %v3402
        %v3413 = vmul.f32 %v3402, %v3412
        %v3414 = vsub.f32 1.0, %v3413
        %v3415 = vmul.f32 %v3412, %v3414
        %v3416 = vadd.f32 %v3412, %v3415
        %vm3417 = vweird.f32 %v3402
        %vm3418 = vweird.f32 %v3412
        %vm3419 = vmor %vm3417, %vm3418
        %v3420 = vsel %vm3419, %v3412, %v3416
        %v3421 = vand.u32 2147483647, %v3402
        %vm3422 = vcmp.eq.f32.partialorder %v3421, 8.507059e+37
        %v3423 = vand.u32 %v3402, 2147483648
        %v3424 = vor.u32 1.1754944e-38, %v3423
        %v3425 = vsel %vm3422, %v3424, %v3420
        %v3426 = vmul.f32 1.0, %v3425
        %v3427 = vrcp.pop %v3403
        %v3428 = vmul.f32 %v3403, %v3427
        %v3429 = vsub.f32 1.0, %v3428
        %v3430 = vmul.f32 %v3427, %v3429
        %v3431 = vadd.f32 %v3427, %v3430
        %vm3432 = vweird.f32 %v3403
        %vm3433 = vweird.f32 %v3427
        %vm3434 = vmor %vm3432, %vm3433
        %v3435 = vsel %vm3434, %v3427, %v3431
        %v3436 = vand.u32 2147483647, %v3403
        %vm3437 = vcmp.eq.f32.partialorder %v3436, 8.507059e+37
        %v3438 = vand.u32 %v3403, 2147483648
        %v3439 = vor.u32 1.1754944e-38, %v3438
        %v3440 = vsel %vm3437, %v3439, %v3435
        %v3441 = vmul.f32 1.0, %v3440
        %v3442 = vrcp.pop %v3404
        %v3443 = vmul.f32 %v3404, %v3442
        %v3444 = vsub.f32 1.0, %v3443
        %v3445 = vmul.f32 %v3442, %v3444
        %v3446 = vadd.f32 %v3442, %v3445
        %vm3447 = vweird.f32 %v3404
        %vm3448 = vweird.f32 %v3442
        %vm3449 = vmor %vm3447, %vm3448
        %v3450 = vsel %vm3449, %v3442, %v3446
        %v3451 = vand.u32 2147483647, %v3404
        %vm3452 = vcmp.eq.f32.partialorder %v3451, 8.507059e+37
        %v3453 = vand.u32 %v3404, 2147483648
        %v3454 = vor.u32 1.1754944e-38, %v3453
        %v3455 = vsel %vm3452, %v3454, %v3450
        %v3456 = vmul.f32 1.0, %v3455
        %v3457 = vrcp.pop %v3405
        %v3458 = vmul.f32 %v3405, %v3457
        %v3459 = vsub.f32 1.0, %v3458
        %v3460 = vmul.f32 %v3457, %v3459
        %v3461 = vadd.f32 %v3457, %v3460
        %vm3462 = vweird.f32 %v3405
        %vm3463 = vweird.f32 %v3457
        %vm3464 = vmor %vm3462, %vm3463
        %v3465 = vsel %vm3464, %v3457, %v3461
        %v3466 = vand.u32 2147483647, %v3405
        %vm3467 = vcmp.eq.f32.partialorder %v3466, 8.507059e+37
        %v3468 = vand.u32 %v3405, 2147483648
        %v3469 = vor.u32 1.1754944e-38, %v3468
        %v3470 = vsel %vm3467, %v3469, %v3465
        %v3471 = vmul.f32 1.0, %v3470
        %v3472 = vrcp.pop %v3406
        %v3473 = vmul.f32 %v3406, %v3472
        %v3474 = vsub.f32 1.0, %v3473
        %v3475 = vmul.f32 %v3472, %v3474
        %v3476 = vadd.f32 %v3472, %v3475
        %vm3477 = vweird.f32 %v3406
        %vm3478 = vweird.f32 %v3472
        %vm3479 = vmor %vm3477, %vm3478
        %v3480 = vsel %vm3479, %v3472, %v3476
        %v3481 = vand.u32 2147483647, %v3406
        %vm3482 = vcmp.eq.f32.partialorder %v3481, 8.507059e+37
        %v3483 = vand.u32 %v3406, 2147483648
        %v3484 = vor.u32 1.1754944e-38, %v3483
        %v3485 = vsel %vm3482, %v3484, %v3480
        %v3486 = vmul.f32 1.0, %v3485
        %v3487 = vrcp.pop %v3407
        %v3488 = vmul.f32 %v3407, %v3487
        %v3489 = vsub.f32 1.0, %v3488
        %v3490 = vmul.f32 %v3487, %v3489
        %v3491 = vadd.f32 %v3487, %v3490
        %vm3492 = vweird.f32 %v3407
        %vm3493 = vweird.f32 %v3487
        %vm3494 = vmor %vm3492, %vm3493
        %v3495 = vsel %vm3494, %v3487, %v3491
        %v3496 = vand.u32 2147483647, %v3407
        %vm3497 = vcmp.eq.f32.partialorder %v3496, 8.507059e+37
        %v3498 = vand.u32 %v3407, 2147483648
        %v3499 = vor.u32 1.1754944e-38, %v3498
        %v3500 = vsel %vm3497, %v3499, %v3495
        %v3501 = vmul.f32 1.0, %v3500
        %v3502 = vrcp.pop %v3408
        %v3503 = vmul.f32 %v3408, %v3502
        %v3504 = vsub.f32 1.0, %v3503
        %v3505 = vmul.f32 %v3502, %v3504
        %v3506 = vadd.f32 %v3502, %v3505
        %vm3507 = vweird.f32 %v3408
        %vm3508 = vweird.f32 %v3502
        %vm3509 = vmor %vm3507, %vm3508
        %v3510 = vsel %vm3509, %v3502, %v3506
        %v3511 = vand.u32 2147483647, %v3408
        %vm3512 = vcmp.eq.f32.partialorder %v3511, 8.507059e+37
        %v3513 = vand.u32 %v3408, 2147483648
        %v3514 = vor.u32 1.1754944e-38, %v3513
        %v3515 = vsel %vm3512, %v3514, %v3510
        %v3516 = vmul.f32 1.0, %v3515
        %v3517 = vrcp.pop %v3409
        %v3518 = vmul.f32 %v3409, %v3517
        %v3519 = vsub.f32 1.0, %v3518
        %v3520 = vmul.f32 %v3517, %v3519
        %v3521 = vadd.f32 %v3517, %v3520
        %vm3522 = vweird.f32 %v3409
        %vm3523 = vweird.f32 %v3517
        %vm3524 = vmor %vm3522, %vm3523
        %v3525 = vsel %vm3524, %v3517, %v3521
        %v3526 = vand.u32 2147483647, %v3409
        %vm3527 = vcmp.eq.f32.partialorder %v3526, 8.507059e+37
        %v3528 = vand.u32 %v3409, 2147483648
        %v3529 = vor.u32 1.1754944e-38, %v3528
        %v3530 = vsel %vm3527, %v3529, %v3525
        %v3531 = vmul.f32 1.0, %v3530
        %v3532 = vrcp.pop %v3410
        %v3533 = vmul.f32 %v3410, %v3532
        %v3534 = vsub.f32 1.0, %v3533
        %v3535 = vmul.f32 %v3532, %v3534
        %v3536 = vadd.f32 %v3532, %v3535
        %vm3537 = vweird.f32 %v3410
        %vm3538 = vweird.f32 %v3532
        %vm3539 = vmor %vm3537, %vm3538
        %v3540 = vsel %vm3539, %v3532, %v3536
        %v3541 = vand.u32 2147483647, %v3410
        %vm3542 = vcmp.eq.f32.partialorder %v3541, 8.507059e+37
        %v3543 = vand.u32 %v3410, 2147483648
        %v3544 = vor.u32 1.1754944e-38, %v3543
        %v3545 = vsel %vm3542, %v3544, %v3540
        %v3546 = vmul.f32 1.0, %v3545
        %v3547 = vrcp.pop %v3411
        %v3548 = vmul.f32 %v3411, %v3547
        %v3549 = vsub.f32 1.0, %v3548
        %v3550 = vmul.f32 %v3547, %v3549
        %v3551 = vadd.f32 %v3547, %v3550
        %vm3552 = vweird.f32 %v3411
        %vm3553 = vweird.f32 %v3547
        %vm3554 = vmor %vm3552, %vm3553
        %v3555 = vsel %vm3554, %v3547, %v3551
        %v3556 = vand.u32 2147483647, %v3411
        %vm3557 = vcmp.eq.f32.partialorder %v3556, 8.507059e+37
        %v3558 = vand.u32 %v3411, 2147483648
        %v3559 = vor.u32 1.1754944e-38, %v3558
        %v3560 = vsel %vm3557, %v3559, %v3555
        %v3561 = vmul.f32 1.0, %v3560
        %vm3562 = vcmask 7168
        %3563 = vst.msk [vmem:[%s623] sm:$0xff] %vm3562, %v3426
        %3564 = vst.msk [vmem:[%s623 + $0x8] sm:$0xff] %vm3562, %v3441
        %3565 = vst.msk [vmem:[%s623 + $0x10] sm:$0xff] %vm3562, %v3456
        %3566 = vst.msk [vmem:[%s623 + $0x18] sm:$0xff] %vm3562, %v3471
        %3567 = vst.msk [vmem:[%s623 + $0x20] sm:$0xff] %vm3562, %v3486
        %3568 = vst.msk [vmem:[%s623 + $0x28] sm:$0xff] %vm3562, %v3501
        %3569 = vst.msk [vmem:[%s623 + $0x30] sm:$0xff] %vm3562, %v3516
        %3570 = vst.msk [vmem:[%s623 + $0x38] sm:$0xff] %vm3562, %v3531
        %3571 = vst.msk [vmem:[%s623 + $0x40] sm:$0xff] %vm3562, %v3546
        %3572 = vst.msk [vmem:[%s623 + $0x48] sm:$0xff] %vm3562, %v3561
        %s3573 = smul.u32 10, %s33
        %p3574 = scmp.lt.s32.totalorder %s3573, 39
        %s3575 = scalar_select %p3574, %s3573, 39
        %s3576 = smul.addr %s3575, 8
        %s3577 = scalar_lea.vmem %s19, %s3576
        // Predicated region
        $region101: #{mlp_forward.1} parent=95 // pred_check
          %p3578 = pneg %p455
        $region102: #{mlp_forward.1} parent=95 // pred_check_branch
          %3580 = sbr.rel (%p3578) target = $region104
        $region103: #{mlp_forward.1} parent=95 // pred_region
          %s3581 = smul.u32 10, %s33
        $region104: #{mlp_forward.1} parent=95 // pred_fallthru
          _
      $region96: #{mlp_forward.1} parent=5 // pred_fallthru
        _
      %p3582 = scmp.le.s32.totalorder 2, %s28
      // Predicated region
      $region105: #{mlp_forward.1} parent=5 // pred_check
        %p3583 = pneg %p3582
      $region106: #{mlp_forward.1} parent=5 // pred_check_branch
        %3585 = sbr.rel (%p3583) target = $region108
      $region107: #{mlp_forward.1} parent=5 // pred_region
        %s3586 = ssub.s32 %s28, 2
        // Predicated region
        $region109: #{mlp_forward.1} parent=107 // pred_check
          %p3587 = pneg %p461
        $region110: #{mlp_forward.1} parent=107 // pred_check_branch
          %3589 = sbr.rel (%p3587) target = $region112
        $region111: #{mlp_forward.1} parent=107 // pred_region
          %s3590 = smul.u32 10, %s34
          %p3591 = scmp.lt.s32.totalorder %s3590, 39
          %s3592 = scalar_select %p3591, %s3590, 39
          %s3593 = smul.addr %s3592, 8
          %s3594 = scalar_lea.vmem %s19, %s3593
        $region112: #{mlp_forward.1} parent=107 // pred_fallthru
          _
      $region108: #{mlp_forward.1} parent=5 // pred_fallthru
        _
    $region6: #{mlp_forward.1} parent=1 // loop_footer
      %s32 = sadd.s32 1, %s28
    $region7: #{mlp_forward.1} parent=1 // loop_footer_branch
      %27 = sbr.rel target = $region3
    $region8: #{mlp_forward.1} parent=1 // loop_exit
      _
    %3595 = vsyncpa [#allocation4], 1
    %s3596 = scalar_lea.sflag [#allocation4], 1
    %3597 = vsyncpa %s3596, 1

</llo_original>
